<compile_context>
chip_gen: v7x
topology: tpu7x:2x2x1
jax: 0.10.0
libtpu: 0.0.40
codegen_flags: <defaults>
</compile_context>

<pallas_src>
import math
from functools import partial

import jax
import jax.numpy as jnp
from jax.experimental import pallas as pl
from jax.experimental.pallas import tpu as pltpu


# ------------------------- generation-aware VMEM limit ------------------------

_VMEM_LIMIT = None


def _vmem_limit_bytes():
    """~110 MiB on 128-MiB parts (v5e/v6e), capacity minus headroom on v7x."""
    global _VMEM_LIMIT
    if _VMEM_LIMIT is None:
        try:
            cap = int(pltpu.get_tpu_info().vmem_capacity_bytes)
        except Exception:  # pragma: no cover - conservative fallback, safe on all gens
            cap = 64 * 1024 * 1024
        _VMEM_LIMIT = int(max(32 << 20, min(cap - (12 << 20), 110 << 20)))
    return _VMEM_LIMIT


# ------------------------------ in-kernel math -------------------------------

def _erf(v):
    # Abramowitz & Stegun 7.1.26 polynomial (|err| < 1.5e-7). exp runs on the
    # EUP.  Exact divide here (not approx reciprocal) to keep GELU close to
    # PyTorch's exact erf-GELU.
    a1, a2, a3, a4, a5 = 0.254829592, -0.284496736, 1.421413741, -1.453152027, 1.061405429
    p = 0.3275911
    sgn = jnp.where(v >= 0.0, 1.0, -1.0)
    av = jnp.abs(v)
    t = 1.0 / (1.0 + p * av)
    poly = ((((a5 * t + a4) * t + a3) * t + a2) * t + a1) * t
    return sgn * (1.0 - poly * jnp.exp(-av * av))


def _gelu_exact(v):
    # PyTorch nn.GELU default (exact, erf-based).
    return 0.5 * v * (1.0 + _erf(v * (1.0 / math.sqrt(2.0))))


def _layer_norm(v, w, b, eps=1e-5):
    # eps=1e-5 matches torch.nn.LayerNorm's default (what the spec instantiates).
    mu = jnp.mean(v, axis=-1, keepdims=True)
    var = jnp.mean(jnp.square(v - mu), axis=-1, keepdims=True)
    return (v - mu) * jax.lax.rsqrt(var + eps) * w + b


# ------------------------------ Pallas kernels --------------------------------

def _embed_kernel(p_ref, w_ref, b_ref, cls_ref, pos_ref, o_ref):
    # p: [1, P, K] bf16, w: [K, D] bf16, b/cls: [1, D] f32, pos: [S, D] f32
    # Patch-embedding linear + cls-token prepend + positional add, all fused.
    emb = (jnp.dot(p_ref[0], w_ref[...], preferred_element_type=jnp.float32)
           + b_ref[...])                                        # [P, D] f32
    seq = jnp.concatenate([cls_ref[...], emb], axis=0) + pos_ref[...]
    o_ref[0] = seq.astype(o_ref.dtype)                          # [S, D]


def _encoder_kernel(x_ref, ln1_w, ln1_b, qkv_w, qkv_b, proj_w, proj_b,
                    ln2_w, ln2_b, fc1_w, fc1_b, fc2_w, fc2_b, o_ref,
                    *, num_heads):
    # One pre-norm ViT encoder layer; grid = (batch, layer).  The residual
    # stream lives in o_ref (same output block for every layer of a given
    # batch element -> VMEM-resident, written to HBM only when batch changes).
    @pl.when(pl.program_id(1) == 0)
    def _():
        o_ref[...] = x_ref[...]

    x = o_ref[0]                                               # [S, D] f32
    S, D = x.shape
    hd = D // num_heads
    scale = 1.0 / math.sqrt(hd)

    # ---- multi-head self-attention ----
    xn = _layer_norm(x, ln1_w[0], ln1_b[0])
    qkv = (jnp.dot(xn.astype(jnp.bfloat16), qkv_w[0],
                   preferred_element_type=jnp.float32) + qkv_b[0])   # [S, 3D] f32

    # Head-major [H, S, hd] Q/K/V (static lane slices + leading-axis stack);
    # all per-head matmuls below are batched over the leading head axis, so
    # there is no per-head matmul loop, no k.T materialisation, and the output
    # projection is a single dense K=D matmul.
    # TODO(synk): at real ViT scale, store qkv_w head-major and replace the
    # per-head lane slices with one reshape.
    def heads(t):  # [S, D] -> [H, S, hd]
        return jnp.stack(
            [t[:, h * hd:(h + 1) * hd] for h in range(num_heads)],
            axis=0).astype(jnp.bfloat16)

    q = heads(qkv[:, 0:D])
    k = heads(qkv[:, D:2 * D])
    v = heads(qkv[:, 2 * D:3 * D])

    s = jnp.einsum('hqd,hkd->hqk', q, k,
                   preferred_element_type=jnp.float32) * scale       # [H, S, S]
    s = s - jnp.max(s, axis=-1, keepdims=True)
    e = jnp.exp(s)                                                   # EUP
    p = e * pl.reciprocal(jnp.sum(e, axis=-1, keepdims=True), approx=True)
    o = jnp.einsum('hqk,hkd->hqd', p.astype(jnp.bfloat16), v,
                   preferred_element_type=jnp.float32)               # [H, S, hd]

    o_cat = jnp.concatenate([o[h] for h in range(num_heads)], axis=-1)  # [S, D]
    attn = (jnp.dot(o_cat.astype(jnp.bfloat16), proj_w[0],
                    preferred_element_type=jnp.float32) + proj_b[0])
    x = x + attn                                  # residual (dropout/drop_path = 0)

    # ---- MLP ----
    xn2 = _layer_norm(x, ln2_w[0], ln2_b[0])
    h1 = (jnp.dot(xn2.astype(jnp.bfloat16), fc1_w[0],
                  preferred_element_type=jnp.float32) + fc1_b[0])
    h1 = _gelu_exact(h1)
    h2 = (jnp.dot(h1.astype(jnp.bfloat16), fc2_w[0],
                  preferred_element_type=jnp.float32) + fc2_b[0])
    o_ref[0] = (x + h2).astype(o_ref.dtype)


def _norm_head_kernel(cls_ref, nw_ref, nb_ref, hw_ref, hb_ref, o_ref):
    # Final LayerNorm on the (pre-sliced) CLS token + classification head.
    cls = _layer_norm(cls_ref[...].astype(jnp.float32), nw_ref[...], nb_ref[...])
    o_ref[...] = (jnp.dot(cls.astype(jnp.bfloat16), hw_ref[...],
                          preferred_element_type=jnp.float32)
                  + hb_ref[...]).astype(o_ref.dtype)


# ------------------------------ wrappers --------------------------------------

def embed_sequence(patches_bf16, w, b, cls_token, positions):
    """Patch embedding (Conv2d as im2col+matmul) fused with cls/positions."""
    B, P, K = patches_bf16.shape
    S, D = positions.shape
    return pl.pallas_call(
        _embed_kernel,
        out_shape=jax.ShapeDtypeStruct((B, S, D), jnp.float32),
        grid=(B,),
        in_specs=[pl.BlockSpec((1, P, K), lambda b: (b, 0, 0)),
                  pl.BlockSpec((K, D), lambda b: (0, 0)),
                  pl.BlockSpec((1, D), lambda b: (0, 0)),
                  pl.BlockSpec((1, D), lambda b: (0, 0)),
                  pl.BlockSpec((S, D), lambda b: (0, 0))],
        out_specs=pl.BlockSpec((1, S, D), lambda b: (b, 0, 0)),
        compiler_params=pltpu.CompilerParams(
            dimension_semantics=("parallel",),
            vmem_limit_bytes=_vmem_limit_bytes()),
    )(patches_bf16, w, b, cls_token, positions)


_BLOCK_PARAM_ORDER = ["ln1_w", "ln1_b", "qkv_w", "qkv_b", "proj_w", "proj_b",
                      "ln2_w", "ln2_b", "fc1_w", "fc1_b", "fc2_w", "fc2_b"]


def encoder(x, blocks, *, num_heads):
    """All L encoder layers in one pallas_call, grid=(B, L).

    The batch axis is "parallel" (megacore on v7x); the layer axis is
    "arbitrary" and the output block index is constant across it, so the
    residual stream stays resident in VMEM for all L layers while the stacked
    [L, ...] weights are streamed (double-buffered -> layer l+1 weight DMA
    overlaps layer l compute).
    """
    B, S, D = x.shape
    args = [blocks[n] for n in _BLOCK_PARAM_ORDER]
    L = blocks["qkv_w"].shape[0]
    in_specs = [pl.BlockSpec((1, S, D), lambda b, l: (b, 0, 0))]
    in_specs += [pl.BlockSpec((1,) + a.shape[1:], lambda b, l: (l, 0, 0))
                 for a in args]
    return pl.pallas_call(
        partial(_encoder_kernel, num_heads=num_heads),
        out_shape=jax.ShapeDtypeStruct((B, S, D), jnp.float32),
        grid=(B, L),
        in_specs=in_specs,
        out_specs=pl.BlockSpec((1, S, D), lambda b, l: (b, 0, 0)),
        compiler_params=pltpu.CompilerParams(
            dimension_semantics=("parallel", "arbitrary"),
            vmem_limit_bytes=_vmem_limit_bytes()),
    )(x, *args)


def norm_head(cls_tok, norm_w, norm_b, head_w, head_b):
    B, _ = cls_tok.shape
    C = head_w.shape[1]
    return pl.pallas_call(
        _norm_head_kernel,
        out_shape=jax.ShapeDtypeStruct((B, C), jnp.float32),
        compiler_params=pltpu.CompilerParams(
            vmem_limit_bytes=_vmem_limit_bytes()),
    )(cls_tok, norm_w, norm_b, head_w, head_b)


def vit_forward(params, x, *, patch_size, num_heads):
    """VisionTransformer.forward (non-distilled, classifier='token', eval)."""
    B, C, H, W = x.shape
    p = patch_size
    gh, gw = H // p, W // p

    # Conv2d(in_ch, D, p, stride=p) == im2col + matmul.  im2col is glue:
    # [B,C,H,W] -> [B, gh, gw, C, p, p] -> [B, P, C*p*p] (row-major over
    # patches, channel-major within a patch, matching torch Conv2d weight
    # [D, C, p, p]).
    patches = x.reshape(B, C, gh, p, gw, p).transpose(0, 2, 4, 1, 3, 5)
    patches = patches.reshape(B, gh * gw, C * p * p).astype(jnp.bfloat16)

    # Patch embedding + cls prepend + positions, fused in one kernel.
    x_seq = embed_sequence(patches, params["embed_w"], params["embed_b"],
                           params["cls_token"], params["positions"])
    # TODO(synk): nn.Dropout / drop_path have rate 0.0 (and eval mode) -> identity.

    # All encoder blocks fused into one pipelined pallas_call.
    x_seq = encoder(x_seq, params["blocks"], num_heads=num_heads)

    # Slice the CLS token in the wrapper so the final kernel only DMAs [B, D]
    # instead of the whole [B, S, D] sequence.  (LayerNorm is per-token, so
    # norm(x)[:, 0] == norm(x[:, 0]).)
    cls_tok = x_seq[:, 0, :]
    return norm_head(cls_tok, params["norm_w"], params["norm_b"],
                     params["head_w"], params["head_b"])


# ------------------------------ parameters ------------------------------------

def init_params(key, *, image_size, in_channels, num_classes, patch_size,
                hidden_dim, num_blocks, num_heads, mlp_ratio):
    del num_heads
    P = (image_size // patch_size) ** 2
    D = hidden_dim
    K = in_channels * patch_size * patch_size
    Dm = int(D * mlp_ratio)
    L = num_blocks
    keys = jax.random.split(key, 8)

    def nrm(k, shape, scale=0.02):
        # Matmul weights live in HBM as bf16 (halves DMA, feeds bf16 MXU).
        return (scale * jax.random.normal(k, shape)).astype(jnp.bfloat16)

    return {
        "cls_token": jax.random.normal(keys[0], (1, D), dtype=jnp.float32),
        "positions": jax.random.normal(keys[1], (P + 1, D), dtype=jnp.float32),
        # Conv2d weight [D, C, p, p] pre-flattened/transposed to [C*p*p, D].
        "embed_w": nrm(keys[2], (K, D)),
        "embed_b": jnp.zeros((1, D), jnp.float32),
        "norm_w": jnp.ones((1, D), jnp.float32),
        "norm_b": jnp.zeros((1, D), jnp.float32),
        "head_w": nrm(keys[3], (D, num_classes)),
        "head_b": jnp.zeros((1, num_classes), jnp.float32),
        # Per-layer weights stacked on a leading L axis for the fused encoder.
        "blocks": {
            "ln1_w": jnp.ones((L, 1, D), jnp.float32),
            "ln1_b": jnp.zeros((L, 1, D), jnp.float32),
            "qkv_w": nrm(keys[4], (L, D, 3 * D)),     # stored transposed: x @ W
            "qkv_b": jnp.zeros((L, 1, 3 * D), jnp.float32),
            "proj_w": nrm(keys[5], (L, D, D)),
            "proj_b": jnp.zeros((L, 1, D), jnp.float32),
            "ln2_w": jnp.ones((L, 1, D), jnp.float32),
            "ln2_b": jnp.zeros((L, 1, D), jnp.float32),
            "fc1_w": nrm(keys[6], (L, D, Dm)),
            "fc1_b": jnp.zeros((L, 1, Dm), jnp.float32),
            "fc2_w": nrm(keys[7], (L, Dm, D)),
            "fc2_b": jnp.zeros((L, 1, D), jnp.float32),
        },
    }


# --------------------------------- main ----------------------------------------

if __name__ == "__main__":
    # Toy config (D=32, S=17). NOTE: lane width < 128 means masked vregs; at
    # real ViT scale D is a multiple of 128 and these kernels become MXU-dense.
    cfg = dict(image_size=16, in_channels=4, num_classes=10, patch_size=4,
               hidden_dim=32, num_blocks=2, num_heads=4, mlp_ratio=4.0)

    key = jax.random.PRNGKey(0)
    pkey, xkey = jax.random.split(key)
    params = init_params(pkey, **cfg)
    x = jax.random.normal(
        xkey, (2, cfg["in_channels"], cfg["image_size"], cfg["image_size"]),
        dtype=jnp.float32)

    fwd = jax.jit(partial(vit_forward, patch_size=cfg["patch_size"],
                          num_heads=cfg["num_heads"]))
    out = fwd(params, x)
    jax.block_until_ready(out)
    assert out.shape == (2, cfg["num_classes"]), out.shape
    print("KERNEL_OK")
</pallas_src>

<mosaic_0001>
module attributes {stable_mosaic.version = 11 : i64} {
  func.func @_embed_kernel(%arg0: i32, %arg1: memref<1x16x64xbf16, #tpu.memory_space<vmem>>, %arg2: memref<64x32xbf16, #tpu.memory_space<vmem>>, %arg3: memref<1x32xf32, #tpu.memory_space<vmem>>, %arg4: memref<1x32xf32, #tpu.memory_space<vmem>>, %arg5: memref<17x32xf32, #tpu.memory_space<vmem>>, %arg6: memref<1x17x32xf32, #tpu.memory_space<vmem>>) attributes {dimension_semantics = [#tpu.dimension_semantics<parallel>], iteration_bounds = array<i64: 2>, scalar_prefetch = 0 : i64, scratch_operands = 0 : i64, tpu.core_type = #tpu.core_type<tc>, window_params = [{transform_indices = @transform_0, window_bounds = array<i64: 1, 16, 64>}, {pipeline_mode = #tpu.pipeline_mode<synchronous>, transform_indices = @transform_1, window_bounds = array<i64: 64, 32>}, {pipeline_mode = #tpu.pipeline_mode<synchronous>, transform_indices = @transform_2, window_bounds = array<i64: 1, 32>}, {pipeline_mode = #tpu.pipeline_mode<synchronous>, transform_indices = @transform_3, window_bounds = array<i64: 1, 32>}, {pipeline_mode = #tpu.pipeline_mode<synchronous>, transform_indices = @transform_4, window_bounds = array<i64: 17, 32>}, {transform_indices = @transform_5, window_bounds = array<i64: 1, 17, 32>}]} {
    %c0 = arith.constant 0 : index
    %c0_0 = arith.constant 0 : index
    %c0_1 = arith.constant 0 : index
    %0 = vector.load %arg1[%c0, %c0_0, %c0_1] : memref<1x16x64xbf16, #tpu.memory_space<vmem>>, vector<1x16x64xbf16>
    %1 = vector.shape_cast %0 : vector<1x16x64xbf16> to vector<16x64xbf16>
    %c0_2 = arith.constant 0 : index
    %c0_3 = arith.constant 0 : index
    %2 = vector.load %arg2[%c0_2, %c0_3] : memref<64x32xbf16, #tpu.memory_space<vmem>>, vector<64x32xbf16>
    %cst = arith.constant dense<0.000000e+00> : vector<16x32xf32>
    %3 = tpu.matmul %1, %2, %cst {dimension_numbers = #tpu.dot_dimension_numbers<[1], [0], [0], [1], [0, 0, 1, 1], [], []>} : vector<16x64xbf16>, vector<64x32xbf16>, vector<16x32xf32> -> vector<16x32xf32>
    %c0_4 = arith.constant 0 : index
    %c0_5 = arith.constant 0 : index
    %4 = vector.load %arg3[%c0_4, %c0_5] : memref<1x32xf32, #tpu.memory_space<vmem>>, vector<1x32xf32>
    %5 = vector.broadcast %4 : vector<1x32xf32> to vector<16x32xf32>
    %6 = arith.addf %3, %5 : vector<16x32xf32>
    %c0_6 = arith.constant 0 : index
    %c0_7 = arith.constant 0 : index
    %7 = vector.load %arg4[%c0_6, %c0_7] : memref<1x32xf32, #tpu.memory_space<vmem>>, vector<1x32xf32>
    %8 = tpu.concatenate %7, %6 in 0 : vector<1x32xf32>, vector<16x32xf32> -> vector<17x32xf32>
    %c0_8 = arith.constant 0 : index
    %c0_9 = arith.constant 0 : index
    %9 = vector.load %arg5[%c0_8, %c0_9] : memref<17x32xf32, #tpu.memory_space<vmem>>, vector<17x32xf32>
    %10 = arith.addf %8, %9 : vector<17x32xf32>
    %c0_10 = arith.constant 0 : index
    %c0_11 = arith.constant 0 : index
    %c0_12 = arith.constant 0 : index
    %11 = vector.load %arg6[%c0_10, %c0_11, %c0_12] : memref<1x17x32xf32, #tpu.memory_space<vmem>>, vector<1x17x32xf32>
    %12 = vector.shape_cast %11 : vector<1x17x32xf32> to vector<17x32xf32>
    %13 = vector.shape_cast %10 : vector<17x32xf32> to vector<1x17x32xf32>
    tpu.vector_store %arg6[%c0_10, %c0_11, %c0_12], %13 {strides = array<i32>} : memref<1x17x32xf32, #tpu.memory_space<vmem>>, vector<1x17x32xf32>,
    return
  }
  func.func @transform_0(%arg0: i32) -> (i32, i32, i32) {
    %c0_i32 = arith.constant 0 : i32
    %c0_i32_0 = arith.constant 0 : i32
    %c0_i32_1 = arith.constant 0 : i32
    return %arg0, %c0_i32, %c0_i32_0 : i32, i32, i32
  }
  func.func @transform_1(%arg0: i32) -> (i32, i32) {
    %c0_i32 = arith.constant 0 : i32
    %c0_i32_0 = arith.constant 0 : i32
    %c0_i32_1 = arith.constant 0 : i32
    return %c0_i32, %c0_i32_0 : i32, i32
  }
  func.func @transform_2(%arg0: i32) -> (i32, i32) {
    %c0_i32 = arith.constant 0 : i32
    %c0_i32_0 = arith.constant 0 : i32
    %c0_i32_1 = arith.constant 0 : i32
    return %c0_i32, %c0_i32_0 : i32, i32
  }
  func.func @transform_3(%arg0: i32) -> (i32, i32) {
    %c0_i32 = arith.constant 0 : i32
    %c0_i32_0 = arith.constant 0 : i32
    %c0_i32_1 = arith.constant 0 : i32
    return %c0_i32, %c0_i32_0 : i32, i32
  }
  func.func @transform_4(%arg0: i32) -> (i32, i32) {
    %c0_i32 = arith.constant 0 : i32
    %c0_i32_0 = arith.constant 0 : i32
    %c0_i32_1 = arith.constant 0 : i32
    return %c0_i32, %c0_i32_0 : i32, i32
  }
  func.func @transform_5(%arg0: i32) -> (i32, i32, i32) {
    %c0_i32 = arith.constant 0 : i32
    %c0_i32_0 = arith.constant 0 : i32
    %c0_i32_1 = arith.constant 0 : i32
    return %arg0, %c0_i32, %c0_i32_0 : i32, i32, i32
  }
}

module attributes {stable_mosaic.version = 11 : i64} {
  func.func @_encoder_kernel(%arg0: i32, %arg1: i32, %arg2: memref<1x17x32xf32, #tpu.memory_space<vmem>>, %arg3: memref<1x1x32xf32, #tpu.memory_space<vmem>>, %arg4: memref<1x1x32xf32, #tpu.memory_space<vmem>>, %arg5: memref<1x32x96xbf16, #tpu.memory_space<vmem>>, %arg6: memref<1x1x96xf32, #tpu.memory_space<vmem>>, %arg7: memref<1x32x32xbf16, #tpu.memory_space<vmem>>, %arg8: memref<1x1x32xf32, #tpu.memory_space<vmem>>, %arg9: memref<1x1x32xf32, #tpu.memory_space<vmem>>, %arg10: memref<1x1x32xf32, #tpu.memory_space<vmem>>, %arg11: memref<1x32x128xbf16, #tpu.memory_space<vmem>>, %arg12: memref<1x1x128xf32, #tpu.memory_space<vmem>>, %arg13: memref<1x128x32xbf16, #tpu.memory_space<vmem>>, %arg14: memref<1x1x32xf32, #tpu.memory_space<vmem>>, %arg15: memref<1x17x32xf32, #tpu.memory_space<vmem>>) attributes {dimension_semantics = [#tpu.dimension_semantics<parallel>, #tpu.dimension_semantics<arbitrary>], iteration_bounds = array<i64: 2, 2>, scalar_prefetch = 0 : i64, scratch_operands = 0 : i64, tpu.core_type = #tpu.core_type<tc>, window_params = [{transform_indices = @transform_0, window_bounds = array<i64: 1, 17, 32>}, {transform_indices = @transform_1, window_bounds = array<i64: 1, 1, 32>}, {transform_indices = @transform_2, window_bounds = array<i64: 1, 1, 32>}, {transform_indices = @transform_3, window_bounds = array<i64: 1, 32, 96>}, {transform_indices = @transform_4, window_bounds = array<i64: 1, 1, 96>}, {transform_indices = @transform_5, window_bounds = array<i64: 1, 32, 32>}, {transform_indices = @transform_6, window_bounds = array<i64: 1, 1, 32>}, {transform_indices = @transform_7, window_bounds = array<i64: 1, 1, 32>}, {transform_indices = @transform_8, window_bounds = array<i64: 1, 1, 32>}, {transform_indices = @transform_9, window_bounds = array<i64: 1, 32, 128>}, {transform_indices = @transform_10, window_bounds = array<i64: 1, 1, 128>}, {transform_indices = @transform_11, window_bounds = array<i64: 1, 128, 32>}, {transform_indices = @transform_12, window_bounds = array<i64: 1, 1, 32>}, {transform_indices = @transform_13, window_bounds = array<i64: 1, 17, 32>}]} {
    %c0_i32 = arith.constant 0 : i32
    %0 = arith.cmpi eq, %arg1, %c0_i32 : i32
    %1 = arith.extui %0 : i1 to i32
    %c0_i32_0 = arith.constant 0 : i32
    %2 = arith.cmpi ne, %1, %c0_i32_0 : i32
    scf.if %2 {
      %c0_76 = arith.constant 0 : index
      %c0_77 = arith.constant 0 : index
      %c0_78 = arith.constant 0 : index
      %192 = vector.load %arg2[%c0_76, %c0_77, %c0_78] : memref<1x17x32xf32, #tpu.memory_space<vmem>>, vector<1x17x32xf32>
      %c0_79 = arith.constant 0 : index
      %c0_80 = arith.constant 0 : index
      %c0_81 = arith.constant 0 : index
      %193 = vector.load %arg15[%c0_79, %c0_80, %c0_81] : memref<1x17x32xf32, #tpu.memory_space<vmem>>, vector<1x17x32xf32>
      tpu.vector_store %arg15[%c0_79, %c0_80, %c0_81], %192 {strides = array<i32>} : memref<1x17x32xf32, #tpu.memory_space<vmem>>, vector<1x17x32xf32>,
    } else {
    }
    %c0 = arith.constant 0 : index
    %c0_1 = arith.constant 0 : index
    %c0_2 = arith.constant 0 : index
    %3 = vector.load %arg15[%c0, %c0_1, %c0_2] : memref<1x17x32xf32, #tpu.memory_space<vmem>>, vector<1x17x32xf32>
    %4 = vector.shape_cast %3 : vector<1x17x32xf32> to vector<17x32xf32>
    %c0_3 = arith.constant 0 : index
    %c0_4 = arith.constant 0 : index
    %c0_5 = arith.constant 0 : index
    %5 = vector.load %arg3[%c0_3, %c0_4, %c0_5] : memref<1x1x32xf32, #tpu.memory_space<vmem>>, vector<1x1x32xf32>
    %6 = vector.shape_cast %5 : vector<1x1x32xf32> to vector<1x32xf32>
    %c0_6 = arith.constant 0 : index
    %c0_7 = arith.constant 0 : index
    %c0_8 = arith.constant 0 : index
    %7 = vector.load %arg4[%c0_6, %c0_7, %c0_8] : memref<1x1x32xf32, #tpu.memory_space<vmem>>, vector<1x1x32xf32>
    %8 = vector.shape_cast %7 : vector<1x1x32xf32> to vector<1x32xf32>
    %cst = arith.constant dense<0.000000e+00> : vector<17xf32>
    %9 = vector.multi_reduction <add>, %4, %cst [1] : vector<17x32xf32> to vector<17xf32>
    %10 = vector.shape_cast %9 : vector<17xf32> to vector<17x1xf32>
    %cst_9 = arith.constant 3.200000e+01 : f32
    %11 = vector.broadcast %cst_9 : f32 to vector<17x1xf32>
    %12 = arith.divf %10, %11 : vector<17x1xf32>
    %13 = vector.broadcast %12 : vector<17x1xf32> to vector<17x32xf32>
    %14 = arith.subf %4, %13 : vector<17x32xf32>
    %15 = arith.mulf %14, %14 : vector<17x32xf32>
    %cst_10 = arith.constant dense<0.000000e+00> : vector<17xf32>
    %16 = vector.multi_reduction <add>, %15, %cst_10 [1] : vector<17x32xf32> to vector<17xf32>
    %17 = vector.shape_cast %16 : vector<17xf32> to vector<17x1xf32>
    %cst_11 = arith.constant 3.200000e+01 : f32
    %18 = vector.broadcast %cst_11 : f32 to vector<17x1xf32>
    %19 = arith.divf %17, %18 : vector<17x1xf32>
    %20 = vector.broadcast %12 : vector<17x1xf32> to vector<17x32xf32>
    %21 = arith.subf %4, %20 : vector<17x32xf32>
    %cst_12 = arith.constant 9.99999974E-6 : f32
    %22 = vector.broadcast %cst_12 : f32 to vector<17x1xf32>
    %23 = arith.addf %19, %22 : vector<17x1xf32>
    %24 = math.rsqrt %23 : vector<17x1xf32>
    %25 = vector.broadcast %24 : vector<17x1xf32> to vector<17x32xf32>
    %26 = arith.mulf %21, %25 : vector<17x32xf32>
    %27 = vector.broadcast %6 : vector<1x32xf32> to vector<17x32xf32>
    %28 = arith.mulf %26, %27 : vector<17x32xf32>
    %29 = vector.broadcast %8 : vector<1x32xf32> to vector<17x32xf32>
    %30 = arith.addf %28, %29 : vector<17x32xf32>
    %31 = arith.truncf %30 : vector<17x32xf32> to vector<17x32xbf16>
    %c0_13 = arith.constant 0 : index
    %c0_14 = arith.constant 0 : index
    %c0_15 = arith.constant 0 : index
    %32 = vector.load %arg5[%c0_13, %c0_14, %c0_15] : memref<1x32x96xbf16, #tpu.memory_space<vmem>>, vector<1x32x96xbf16>
    %33 = vector.shape_cast %32 : vector<1x32x96xbf16> to vector<32x96xbf16>
    %cst_16 = arith.constant dense<0.000000e+00> : vector<17x96xf32>
    %34 = tpu.matmul %31, %33, %cst_16 {dimension_numbers = #tpu.dot_dimension_numbers<[1], [0], [0], [1], [0, 0, 1, 1], [], []>} : vector<17x32xbf16>, vector<32x96xbf16>, vector<17x96xf32> -> vector<17x96xf32>
    %c0_17 = arith.constant 0 : index
    %c0_18 = arith.constant 0 : index
    %c0_19 = arith.constant 0 : index
    %35 = vector.load %arg6[%c0_17, %c0_18, %c0_19] : memref<1x1x96xf32, #tpu.memory_space<vmem>>, vector<1x1x96xf32>
    %36 = vector.shape_cast %35 : vector<1x1x96xf32> to vector<1x96xf32>
    %37 = vector.broadcast %36 : vector<1x96xf32> to vector<17x96xf32>
    %38 = arith.addf %34, %37 : vector<17x96xf32>
    %39 = vector.extract_strided_slice %38 {offsets = [0, 0], sizes = [17, 32], strides = [1, 1]} : vector<17x96xf32> to vector<17x32xf32>
    %40 = vector.extract_strided_slice %39 {offsets = [0, 0], sizes = [17, 8], strides = [1, 1]} : vector<17x32xf32> to vector<17x8xf32>
    %41 = vector.extract_strided_slice %39 {offsets = [0, 8], sizes = [17, 8], strides = [1, 1]} : vector<17x32xf32> to vector<17x8xf32>
    %42 = vector.extract_strided_slice %39 {offsets = [0, 16], sizes = [17, 8], strides = [1, 1]} : vector<17x32xf32> to vector<17x8xf32>
    %43 = vector.extract_strided_slice %39 {offsets = [0, 24], sizes = [17, 8], strides = [1, 1]} : vector<17x32xf32> to vector<17x8xf32>
    %44 = vector.shape_cast %40 : vector<17x8xf32> to vector<1x17x8xf32>
    %45 = vector.shape_cast %41 : vector<17x8xf32> to vector<1x17x8xf32>
    %46 = vector.shape_cast %42 : vector<17x8xf32> to vector<1x17x8xf32>
    %47 = vector.shape_cast %43 : vector<17x8xf32> to vector<1x17x8xf32>
    %48 = tpu.concatenate %44, %45, %46, %47 in 0 : vector<1x17x8xf32>, vector<1x17x8xf32>, vector<1x17x8xf32>, vector<1x17x8xf32> -> vector<4x17x8xf32>
    %49 = arith.truncf %48 : vector<4x17x8xf32> to vector<4x17x8xbf16>
    %50 = vector.extract_strided_slice %38 {offsets = [0, 32], sizes = [17, 32], strides = [1, 1]} : vector<17x96xf32> to vector<17x32xf32>
    %51 = vector.extract_strided_slice %50 {offsets = [0, 0], sizes = [17, 8], strides = [1, 1]} : vector<17x32xf32> to vector<17x8xf32>
    %52 = vector.extract_strided_slice %50 {offsets = [0, 8], sizes = [17, 8], strides = [1, 1]} : vector<17x32xf32> to vector<17x8xf32>
    %53 = vector.extract_strided_slice %50 {offsets = [0, 16], sizes = [17, 8], strides = [1, 1]} : vector<17x32xf32> to vector<17x8xf32>
    %54 = vector.extract_strided_slice %50 {offsets = [0, 24], sizes = [17, 8], strides = [1, 1]} : vector<17x32xf32> to vector<17x8xf32>
    %55 = vector.shape_cast %51 : vector<17x8xf32> to vector<1x17x8xf32>
    %56 = vector.shape_cast %52 : vector<17x8xf32> to vector<1x17x8xf32>
    %57 = vector.shape_cast %53 : vector<17x8xf32> to vector<1x17x8xf32>
    %58 = vector.shape_cast %54 : vector<17x8xf32> to vector<1x17x8xf32>
    %59 = tpu.concatenate %55, %56, %57, %58 in 0 : vector<1x17x8xf32>, vector<1x17x8xf32>, vector<1x17x8xf32>, vector<1x17x8xf32> -> vector<4x17x8xf32>
    %60 = arith.truncf %59 : vector<4x17x8xf32> to vector<4x17x8xbf16>
    %61 = vector.extract_strided_slice %38 {offsets = [0, 64], sizes = [17, 32], strides = [1, 1]} : vector<17x96xf32> to vector<17x32xf32>
    %62 = vector.extract_strided_slice %61 {offsets = [0, 0], sizes = [17, 8], strides = [1, 1]} : vector<17x32xf32> to vector<17x8xf32>
    %63 = vector.extract_strided_slice %61 {offsets = [0, 8], sizes = [17, 8], strides = [1, 1]} : vector<17x32xf32> to vector<17x8xf32>
    %64 = vector.extract_strided_slice %61 {offsets = [0, 16], sizes = [17, 8], strides = [1, 1]} : vector<17x32xf32> to vector<17x8xf32>
    %65 = vector.extract_strided_slice %61 {offsets = [0, 24], sizes = [17, 8], strides = [1, 1]} : vector<17x32xf32> to vector<17x8xf32>
    %66 = vector.shape_cast %62 : vector<17x8xf32> to vector<1x17x8xf32>
    %67 = vector.shape_cast %63 : vector<17x8xf32> to vector<1x17x8xf32>
    %68 = vector.shape_cast %64 : vector<17x8xf32> to vector<1x17x8xf32>
    %69 = vector.shape_cast %65 : vector<17x8xf32> to vector<1x17x8xf32>
    %70 = tpu.concatenate %66, %67, %68, %69 in 0 : vector<1x17x8xf32>, vector<1x17x8xf32>, vector<1x17x8xf32>, vector<1x17x8xf32> -> vector<4x17x8xf32>
    %71 = arith.truncf %70 : vector<4x17x8xf32> to vector<4x17x8xbf16>
    "tpu.trace_start"() <{level = 10 : i32, message = "hqd,hkd->hqk"}> : () -> ()
    %cst_20 = arith.constant dense<0.000000e+00> : vector<4x17x17xf32>
    %72 = tpu.matmul %49, %60, %cst_20 {dimension_numbers = #tpu.dot_dimension_numbers<[2], [2], [1], [1], [0, 0, 0, 1, 1, 1], [0], [0]>} : vector<4x17x8xbf16>, vector<4x17x8xbf16>, vector<4x17x17xf32> -> vector<4x17x17xf32>
    "tpu.trace_stop"() : () -> ()
    %cst_21 = arith.constant 0.353553385 : f32
    %73 = vector.broadcast %cst_21 : f32 to vector<4x17x17xf32>
    %74 = arith.mulf %72, %73 : vector<4x17x17xf32>
    %cst_22 = arith.constant dense<0xFF800000> : vector<4x17xf32>
    %75 = vector.multi_reduction <maximumf>, %74, %cst_22 [2] : vector<4x17x17xf32> to vector<4x17xf32>
    %76 = vector.shape_cast %75 : vector<4x17xf32> to vector<4x17x1xf32>
    %77 = vector.broadcast %76 : vector<4x17x1xf32> to vector<4x17x17xf32>
    %78 = arith.subf %74, %77 : vector<4x17x17xf32>
    %79 = math.exp %78 : vector<4x17x17xf32>
    %cst_23 = arith.constant dense<0.000000e+00> : vector<4x17xf32>
    %80 = vector.multi_reduction <add>, %79, %cst_23 [2] : vector<4x17x17xf32> to vector<4x17xf32>
    %81 = vector.shape_cast %80 : vector<4x17xf32> to vector<4x17x1xf32>
    %82 = tpu.reciprocal %81 {approx = true} : vector<4x17x1xf32> -> vector<4x17x1xf32>
    %83 = vector.broadcast %82 : vector<4x17x1xf32> to vector<4x17x17xf32>
    %84 = arith.mulf %79, %83 : vector<4x17x17xf32>
    %85 = arith.truncf %84 : vector<4x17x17xf32> to vector<4x17x17xbf16>
    "tpu.trace_start"() <{level = 10 : i32, message = "hqk,hkd->hqd"}> : () -> ()
    %cst_24 = arith.constant dense<0.000000e+00> : vector<4x17x8xf32>
    %86 = tpu.matmul %85, %71, %cst_24 {dimension_numbers = #tpu.dot_dimension_numbers<[2], [1], [1], [2], [0, 0, 0, 1, 1, 2], [0], [0]>} : vector<4x17x17xbf16>, vector<4x17x8xbf16>, vector<4x17x8xf32> -> vector<4x17x8xf32>
    "tpu.trace_stop"() : () -> ()
    %87 = vector.extract_strided_slice %86 {offsets = [0, 0, 0], sizes = [1, 17, 8], strides = [1, 1, 1]} : vector<4x17x8xf32> to vector<1x17x8xf32>
    %88 = vector.shape_cast %87 : vector<1x17x8xf32> to vector<17x8xf32>
    %89 = vector.extract_strided_slice %86 {offsets = [1, 0, 0], sizes = [1, 17, 8], strides = [1, 1, 1]} : vector<4x17x8xf32> to vector<1x17x8xf32>
    %90 = vector.shape_cast %89 : vector<1x17x8xf32> to vector<17x8xf32>
    %91 = vector.extract_strided_slice %86 {offsets = [2, 0, 0], sizes = [1, 17, 8], strides = [1, 1, 1]} : vector<4x17x8xf32> to vector<1x17x8xf32>
    %92 = vector.shape_cast %91 : vector<1x17x8xf32> to vector<17x8xf32>
    %93 = vector.extract_strided_slice %86 {offsets = [3, 0, 0], sizes = [1, 17, 8], strides = [1, 1, 1]} : vector<4x17x8xf32> to vector<1x17x8xf32>
    %94 = vector.shape_cast %93 : vector<1x17x8xf32> to vector<17x8xf32>
    %95 = tpu.concatenate %88, %90, %92, %94 in 1 : vector<17x8xf32>, vector<17x8xf32>, vector<17x8xf32>, vector<17x8xf32> -> vector<17x32xf32>
    %96 = arith.truncf %95 : vector<17x32xf32> to vector<17x32xbf16>
    %c0_25 = arith.constant 0 : index
    %c0_26 = arith.constant 0 : index
    %c0_27 = arith.constant 0 : index
    %97 = vector.load %arg7[%c0_25, %c0_26, %c0_27] : memref<1x32x32xbf16, #tpu.memory_space<vmem>>, vector<1x32x32xbf16>
    %98 = vector.shape_cast %97 : vector<1x32x32xbf16> to vector<32x32xbf16>
    %cst_28 = arith.constant dense<0.000000e+00> : vector<17x32xf32>
    %99 = tpu.matmul %96, %98, %cst_28 {dimension_numbers = #tpu.dot_dimension_numbers<[1], [0], [0], [1], [0, 0, 1, 1], [], []>} : vector<17x32xbf16>, vector<32x32xbf16>, vector<17x32xf32> -> vector<17x32xf32>
    %c0_29 = arith.constant 0 : index
    %c0_30 = arith.constant 0 : index
    %c0_31 = arith.constant 0 : index
    %100 = vector.load %arg8[%c0_29, %c0_30, %c0_31] : memref<1x1x32xf32, #tpu.memory_space<vmem>>, vector<1x1x32xf32>
    %101 = vector.shape_cast %100 : vector<1x1x32xf32> to vector<1x32xf32>
    %102 = vector.broadcast %101 : vector<1x32xf32> to vector<17x32xf32>
    %103 = arith.addf %99, %102 : vector<17x32xf32>
    %104 = arith.addf %4, %103 : vector<17x32xf32>
    %c0_32 = arith.constant 0 : index
    %c0_33 = arith.constant 0 : index
    %c0_34 = arith.constant 0 : index
    %105 = vector.load %arg9[%c0_32, %c0_33, %c0_34] : memref<1x1x32xf32, #tpu.memory_space<vmem>>, vector<1x1x32xf32>
    %106 = vector.shape_cast %105 : vector<1x1x32xf32> to vector<1x32xf32>
    %c0_35 = arith.constant 0 : index
    %c0_36 = arith.constant 0 : index
    %c0_37 = arith.constant 0 : index
    %107 = vector.load %arg10[%c0_35, %c0_36, %c0_37] : memref<1x1x32xf32, #tpu.memory_space<vmem>>, vector<1x1x32xf32>
    %108 = vector.shape_cast %107 : vector<1x1x32xf32> to vector<1x32xf32>
    %cst_38 = arith.constant dense<0.000000e+00> : vector<17xf32>
    %109 = vector.multi_reduction <add>, %104, %cst_38 [1] : vector<17x32xf32> to vector<17xf32>
    %110 = vector.shape_cast %109 : vector<17xf32> to vector<17x1xf32>
    %cst_39 = arith.constant 3.200000e+01 : f32
    %111 = vector.broadcast %cst_39 : f32 to vector<17x1xf32>
    %112 = arith.divf %110, %111 : vector<17x1xf32>
    %113 = vector.broadcast %112 : vector<17x1xf32> to vector<17x32xf32>
    %114 = arith.subf %104, %113 : vector<17x32xf32>
    %115 = arith.mulf %114, %114 : vector<17x32xf32>
    %cst_40 = arith.constant dense<0.000000e+00> : vector<17xf32>
    %116 = vector.multi_reduction <add>, %115, %cst_40 [1] : vector<17x32xf32> to vector<17xf32>
    %117 = vector.shape_cast %116 : vector<17xf32> to vector<17x1xf32>
    %cst_41 = arith.constant 3.200000e+01 : f32
    %118 = vector.broadcast %cst_41 : f32 to vector<17x1xf32>
    %119 = arith.divf %117, %118 : vector<17x1xf32>
    %120 = vector.broadcast %112 : vector<17x1xf32> to vector<17x32xf32>
    %121 = arith.subf %104, %120 : vector<17x32xf32>
    %cst_42 = arith.constant 9.99999974E-6 : f32
    %122 = vector.broadcast %cst_42 : f32 to vector<17x1xf32>
    %123 = arith.addf %119, %122 : vector<17x1xf32>
    %124 = math.rsqrt %123 : vector<17x1xf32>
    %125 = vector.broadcast %124 : vector<17x1xf32> to vector<17x32xf32>
    %126 = arith.mulf %121, %125 : vector<17x32xf32>
    %127 = vector.broadcast %106 : vector<1x32xf32> to vector<17x32xf32>
    %128 = arith.mulf %126, %127 : vector<17x32xf32>
    %129 = vector.broadcast %108 : vector<1x32xf32> to vector<17x32xf32>
    %130 = arith.addf %128, %129 : vector<17x32xf32>
    %131 = arith.truncf %130 : vector<17x32xf32> to vector<17x32xbf16>
    %c0_43 = arith.constant 0 : index
    %c0_44 = arith.constant 0 : index
    %c0_45 = arith.constant 0 : index
    %132 = vector.load %arg11[%c0_43, %c0_44, %c0_45] : memref<1x32x128xbf16, #tpu.memory_space<vmem>>, vector<1x32x128xbf16>
    %133 = vector.shape_cast %132 : vector<1x32x128xbf16> to vector<32x128xbf16>
    %cst_46 = arith.constant dense<0.000000e+00> : vector<17x128xf32>
    %134 = tpu.matmul %131, %133, %cst_46 {dimension_numbers = #tpu.dot_dimension_numbers<[1], [0], [0], [1], [0, 0, 1, 1], [], []>} : vector<17x32xbf16>, vector<32x128xbf16>, vector<17x128xf32> -> vector<17x128xf32>
    %c0_47 = arith.constant 0 : index
    %c0_48 = arith.constant 0 : index
    %c0_49 = arith.constant 0 : index
    %135 = vector.load %arg12[%c0_47, %c0_48, %c0_49] : memref<1x1x128xf32, #tpu.memory_space<vmem>>, vector<1x1x128xf32>
    %136 = vector.shape_cast %135 : vector<1x1x128xf32> to vector<1x128xf32>
    %137 = vector.broadcast %136 : vector<1x128xf32> to vector<17x128xf32>
    %138 = arith.addf %134, %137 : vector<17x128xf32>
    %cst_50 = arith.constant 5.000000e-01 : f32
    %139 = vector.broadcast %cst_50 : f32 to vector<17x128xf32>
    %140 = arith.mulf %139, %138 : vector<17x128xf32>
    %cst_51 = arith.constant 0.707106769 : f32
    %141 = vector.broadcast %cst_51 : f32 to vector<17x128xf32>
    %142 = arith.mulf %138, %141 : vector<17x128xf32>
    %cst_52 = arith.constant 0.000000e+00 : f32
    %143 = vector.broadcast %cst_52 : f32 to vector<17x128xf32>
    %144 = arith.cmpf oge, %142, %143 : vector<17x128xf32>
    %cst_53 = arith.constant 1.000000e+00 : f32
    %cst_54 = arith.constant -1.000000e+00 : f32
    %145 = vector.broadcast %cst_53 : f32 to vector<17x128xf32>
    %146 = vector.broadcast %cst_54 : f32 to vector<17x128xf32>
    %147 = arith.select %144, %145, %146 : vector<17x128xi1>, vector<17x128xf32>
    %148 = math.absf %142 : vector<17x128xf32>
    %cst_55 = arith.constant 0.327591091 : f32
    %149 = vector.broadcast %cst_55 : f32 to vector<17x128xf32>
    %150 = arith.mulf %149, %148 : vector<17x128xf32>
    %cst_56 = arith.constant 1.000000e+00 : f32
    %151 = vector.broadcast %cst_56 : f32 to vector<17x128xf32>
    %152 = arith.addf %151, %150 : vector<17x128xf32>
    %cst_57 = arith.constant 1.000000e+00 : f32
    %153 = vector.broadcast %cst_57 : f32 to vector<17x128xf32>
    %154 = arith.divf %153, %152 : vector<17x128xf32>
    %cst_58 = arith.constant 1.06140542 : f32
    %155 = vector.broadcast %cst_58 : f32 to vector<17x128xf32>
    %156 = arith.mulf %155, %154 : vector<17x128xf32>
    %cst_59 = arith.constant -1.45315206 : f32
    %157 = vector.broadcast %cst_59 : f32 to vector<17x128xf32>
    %158 = arith.addf %156, %157 : vector<17x128xf32>
    %159 = arith.mulf %158, %154 : vector<17x128xf32>
    %cst_60 = arith.constant 1.42141378 : f32
    %160 = vector.broadcast %cst_60 : f32 to vector<17x128xf32>
    %161 = arith.addf %159, %160 : vector<17x128xf32>
    %162 = arith.mulf %161, %154 : vector<17x128xf32>
    %cst_61 = arith.constant -0.284496725 : f32
    %163 = vector.broadcast %cst_61 : f32 to vector<17x128xf32>
    %164 = arith.addf %162, %163 : vector<17x128xf32>
    %165 = arith.mulf %164, %154 : vector<17x128xf32>
    %cst_62 = arith.constant 0.254829586 : f32
    %166 = vector.broadcast %cst_62 : f32 to vector<17x128xf32>
    %167 = arith.addf %165, %166 : vector<17x128xf32>
    %168 = arith.mulf %167, %154 : vector<17x128xf32>
    %cst_63 = arith.constant 0.000000e+00 : f32
    %169 = vector.broadcast %cst_63 : f32 to vector<17x128xf32>
    %170 = arith.subf %169, %148 : vector<17x128xf32>
    %171 = arith.mulf %170, %148 : vector<17x128xf32>
    %172 = math.exp %171 : vector<17x128xf32>
    %173 = arith.mulf %168, %172 : vector<17x128xf32>
    %cst_64 = arith.constant 1.000000e+00 : f32
    %174 = vector.broadcast %cst_64 : f32 to vector<17x128xf32>
    %175 = arith.subf %174, %173 : vector<17x128xf32>
    %176 = arith.mulf %147, %175 : vector<17x128xf32>
    %cst_65 = arith.constant 1.000000e+00 : f32
    %177 = vector.broadcast %cst_65 : f32 to vector<17x128xf32>
    %178 = arith.addf %177, %176 : vector<17x128xf32>
    %179 = arith.mulf %140, %178 : vector<17x128xf32>
    %180 = arith.truncf %179 : vector<17x128xf32> to vector<17x128xbf16>
    %c0_66 = arith.constant 0 : index
    %c0_67 = arith.constant 0 : index
    %c0_68 = arith.constant 0 : index
    %181 = vector.load %arg13[%c0_66, %c0_67, %c0_68] : memref<1x128x32xbf16, #tpu.memory_space<vmem>>, vector<1x128x32xbf16>
    %182 = vector.shape_cast %181 : vector<1x128x32xbf16> to vector<128x32xbf16>
    %cst_69 = arith.constant dense<0.000000e+00> : vector<17x32xf32>
    %183 = tpu.matmul %180, %182, %cst_69 {dimension_numbers = #tpu.dot_dimension_numbers<[1], [0], [0], [1], [0, 0, 1, 1], [], []>} : vector<17x128xbf16>, vector<128x32xbf16>, vector<17x32xf32> -> vector<17x32xf32>
    %c0_70 = arith.constant 0 : index
    %c0_71 = arith.constant 0 : index
    %c0_72 = arith.constant 0 : index
    %184 = vector.load %arg14[%c0_70, %c0_71, %c0_72] : memref<1x1x32xf32, #tpu.memory_space<vmem>>, vector<1x1x32xf32>
    %185 = vector.shape_cast %184 : vector<1x1x32xf32> to vector<1x32xf32>
    %186 = vector.broadcast %185 : vector<1x32xf32> to vector<17x32xf32>
    %187 = arith.addf %183, %186 : vector<17x32xf32>
    %188 = arith.addf %104, %187 : vector<17x32xf32>
    %c0_73 = arith.constant 0 : index
    %c0_74 = arith.constant 0 : index
    %c0_75 = arith.constant 0 : index
    %189 = vector.load %arg15[%c0_73, %c0_74, %c0_75] : memref<1x17x32xf32, #tpu.memory_space<vmem>>, vector<1x17x32xf32>
    %190 = vector.shape_cast %189 : vector<1x17x32xf32> to vector<17x32xf32>
    %191 = vector.shape_cast %188 : vector<17x32xf32> to vector<1x17x32xf32>
    tpu.vector_store %arg15[%c0_73, %c0_74, %c0_75], %191 {strides = array<i32>} : memref<1x17x32xf32, #tpu.memory_space<vmem>>, vector<1x17x32xf32>,
    return
  }
  func.func @transform_0(%arg0: i32, %arg1: i32) -> (i32, i32, i32) {
    %c0_i32 = arith.constant 0 : i32
    %c0_i32_0 = arith.constant 0 : i32
    %c0_i32_1 = arith.constant 0 : i32
    return %arg0, %c0_i32, %c0_i32_0 : i32, i32, i32
  }
  func.func @transform_1(%arg0: i32, %arg1: i32) -> (i32, i32, i32) {
    %c0_i32 = arith.constant 0 : i32
    %c0_i32_0 = arith.constant 0 : i32
    %c0_i32_1 = arith.constant 0 : i32
    return %arg1, %c0_i32, %c0_i32_0 : i32, i32, i32
  }
  func.func @transform_2(%arg0: i32, %arg1: i32) -> (i32, i32, i32) {
    %c0_i32 = arith.constant 0 : i32
    %c0_i32_0 = arith.constant 0 : i32
    %c0_i32_1 = arith.constant 0 : i32
    return %arg1, %c0_i32, %c0_i32_0 : i32, i32, i32
  }
  func.func @transform_3(%arg0: i32, %arg1: i32) -> (i32, i32, i32) {
    %c0_i32 = arith.constant 0 : i32
    %c0_i32_0 = arith.constant 0 : i32
    %c0_i32_1 = arith.constant 0 : i32
    return %arg1, %c0_i32, %c0_i32_0 : i32, i32, i32
  }
  func.func @transform_4(%arg0: i32, %arg1: i32) -> (i32, i32, i32) {
    %c0_i32 = arith.constant 0 : i32
    %c0_i32_0 = arith.constant 0 : i32
    %c0_i32_1 = arith.constant 0 : i32
    return %arg1, %c0_i32, %c0_i32_0 : i32, i32, i32
  }
  func.func @transform_5(%arg0: i32, %arg1: i32) -> (i32, i32, i32) {
    %c0_i32 = arith.constant 0 : i32
    %c0_i32_0 = arith.constant 0 : i32
    %c0_i32_1 = arith.constant 0 : i32
    return %arg1, %c0_i32, %c0_i32_0 : i32, i32, i32
  }
  func.func @transform_6(%arg0: i32, %arg1: i32) -> (i32, i32, i32) {
    %c0_i32 = arith.constant 0 : i32
    %c0_i32_0 = arith.constant 0 : i32
    %c0_i32_1 = arith.constant 0 : i32
    return %arg1, %c0_i32, %c0_i32_0 : i32, i32, i32
  }
  func.func @transform_7(%arg0: i32, %arg1: i32) -> (i32, i32, i32) {
    %c0_i32 = arith.constant 0 : i32
    %c0_i32_0 = arith.constant 0 : i32
    %c0_i32_1 = arith.constant 0 : i32
    return %arg1, %c0_i32, %c0_i32_0 : i32, i32, i32
  }
  func.func @transform_8(%arg0: i32, %arg1: i32) -> (i32, i32, i32) {
    %c0_i32 = arith.constant 0 : i32
    %c0_i32_0 = arith.constant 0 : i32
    %c0_i32_1 = arith.constant 0 : i32
    return %arg1, %c0_i32, %c0_i32_0 : i32, i32, i32
  }
  func.func @transform_9(%arg0: i32, %arg1: i32) -> (i32, i32, i32) {
    %c0_i32 = arith.constant 0 : i32
    %c0_i32_0 = arith.constant 0 : i32
    %c0_i32_1 = arith.constant 0 : i32
    return %arg1, %c0_i32, %c0_i32_0 : i32, i32, i32
  }
  func.func @transform_10(%arg0: i32, %arg1: i32) -> (i32, i32, i32) {
    %c0_i32 = arith.constant 0 : i32
    %c0_i32_0 = arith.constant 0 : i32
    %c0_i32_1 = arith.constant 0 : i32
    return %arg1, %c0_i32, %c0_i32_0 : i32, i32, i32
  }
  func.func @transform_11(%arg0: i32, %arg1: i32) -> (i32, i32, i32) {
    %c0_i32 = arith.constant 0 : i32
    %c0_i32_0 = arith.constant 0 : i32
    %c0_i32_1 = arith.constant 0 : i32
    return %arg1, %c0_i32, %c0_i32_0 : i32, i32, i32
  }
  func.func @transform_12(%arg0: i32, %arg1: i32) -> (i32, i32, i32) {
    %c0_i32 = arith.constant 0 : i32
    %c0_i32_0 = arith.constant 0 : i32
    %c0_i32_1 = arith.constant 0 : i32
    return %arg1, %c0_i32, %c0_i32_0 : i32, i32, i32
  }
  func.func @transform_13(%arg0: i32, %arg1: i32) -> (i32, i32, i32) {
    %c0_i32 = arith.constant 0 : i32
    %c0_i32_0 = arith.constant 0 : i32
    %c0_i32_1 = arith.constant 0 : i32
    return %arg0, %c0_i32, %c0_i32_0 : i32, i32, i32
  }
}

module attributes {stable_mosaic.version = 11 : i64} {
  func.func @_norm_head_kernel(%arg0: memref<2x32xf32, #tpu.memory_space<vmem>>, %arg1: memref<1x32xf32, #tpu.memory_space<vmem>>, %arg2: memref<1x32xf32, #tpu.memory_space<vmem>>, %arg3: memref<32x10xbf16, #tpu.memory_space<vmem>>, %arg4: memref<1x10xf32, #tpu.memory_space<vmem>>, %arg5: memref<2x10xf32, #tpu.memory_space<vmem>>) attributes {dimension_semantics = [], scalar_prefetch = 0 : i64, scratch_operands = 0 : i64, tpu.core_type = #tpu.core_type<tc>} {
    %c0 = arith.constant 0 : index
    %c0_0 = arith.constant 0 : index
    %0 = vector.load %arg0[%c0, %c0_0] : memref<2x32xf32, #tpu.memory_space<vmem>>, vector<2x32xf32>
    %c0_1 = arith.constant 0 : index
    %c0_2 = arith.constant 0 : index
    %1 = vector.load %arg1[%c0_1, %c0_2] : memref<1x32xf32, #tpu.memory_space<vmem>>, vector<1x32xf32>
    %c0_3 = arith.constant 0 : index
    %c0_4 = arith.constant 0 : index
    %2 = vector.load %arg2[%c0_3, %c0_4] : memref<1x32xf32, #tpu.memory_space<vmem>>, vector<1x32xf32>
    %cst = arith.constant dense<0.000000e+00> : vector<2xf32>
    %3 = vector.multi_reduction <add>, %0, %cst [1] : vector<2x32xf32> to vector<2xf32>
    %4 = vector.shape_cast %3 : vector<2xf32> to vector<2x1xf32>
    %cst_5 = arith.constant 3.200000e+01 : f32
    %5 = vector.broadcast %cst_5 : f32 to vector<2x1xf32>
    %6 = arith.divf %4, %5 : vector<2x1xf32>
    %7 = vector.broadcast %6 : vector<2x1xf32> to vector<2x32xf32>
    %8 = arith.subf %0, %7 : vector<2x32xf32>
    %9 = arith.mulf %8, %8 : vector<2x32xf32>
    %cst_6 = arith.constant dense<0.000000e+00> : vector<2xf32>
    %10 = vector.multi_reduction <add>, %9, %cst_6 [1] : vector<2x32xf32> to vector<2xf32>
    %11 = vector.shape_cast %10 : vector<2xf32> to vector<2x1xf32>
    %cst_7 = arith.constant 3.200000e+01 : f32
    %12 = vector.broadcast %cst_7 : f32 to vector<2x1xf32>
    %13 = arith.divf %11, %12 : vector<2x1xf32>
    %14 = vector.broadcast %6 : vector<2x1xf32> to vector<2x32xf32>
    %15 = arith.subf %0, %14 : vector<2x32xf32>
    %cst_8 = arith.constant 9.99999974E-6 : f32
    %16 = vector.broadcast %cst_8 : f32 to vector<2x1xf32>
    %17 = arith.addf %13, %16 : vector<2x1xf32>
    %18 = math.rsqrt %17 : vector<2x1xf32>
    %19 = vector.broadcast %18 : vector<2x1xf32> to vector<2x32xf32>
    %20 = arith.mulf %15, %19 : vector<2x32xf32>
    %21 = vector.broadcast %1 : vector<1x32xf32> to vector<2x32xf32>
    %22 = arith.mulf %20, %21 : vector<2x32xf32>
    %23 = vector.broadcast %2 : vector<1x32xf32> to vector<2x32xf32>
    %24 = arith.addf %22, %23 : vector<2x32xf32>
    %25 = arith.truncf %24 : vector<2x32xf32> to vector<2x32xbf16>
    %c0_9 = arith.constant 0 : index
    %c0_10 = arith.constant 0 : index
    %26 = vector.load %arg3[%c0_9, %c0_10] : memref<32x10xbf16, #tpu.memory_space<vmem>>, vector<32x10xbf16>
    %cst_11 = arith.constant dense<0.000000e+00> : vector<2x10xf32>
    %27 = tpu.matmul %25, %26, %cst_11 {dimension_numbers = #tpu.dot_dimension_numbers<[1], [0], [0], [1], [0, 0, 1, 1], [], []>} : vector<2x32xbf16>, vector<32x10xbf16>, vector<2x10xf32> -> vector<2x10xf32>
    %c0_12 = arith.constant 0 : index
    %c0_13 = arith.constant 0 : index
    %28 = vector.load %arg4[%c0_12, %c0_13] : memref<1x10xf32, #tpu.memory_space<vmem>>, vector<1x10xf32>
    %29 = vector.broadcast %28 : vector<1x10xf32> to vector<2x10xf32>
    %30 = arith.addf %27, %29 : vector<2x10xf32>
    %c0_14 = arith.constant 0 : index
    %c0_15 = arith.constant 0 : index
    %31 = vector.load %arg5[%c0_14, %c0_15] : memref<2x10xf32, #tpu.memory_space<vmem>>, vector<2x10xf32>
    tpu.vector_store %arg5[%c0_14, %c0_15], %30 {strides = array<i32>} : memref<2x10xf32, #tpu.memory_space<vmem>>, vector<2x10xf32>,
    return
  }
}

</mosaic_0001>

<llo_original>
// kernel: vit_forward.3
$region0: #{vit_forward.3}
  #allocation0 [shape = 'u32[]', space=smem, size = 0x4, offset = 0x4, fixed_abs, tag = 'smem constant byte address 0x4 - core index']
  #allocation1 [shape = 'u32[144,128]{1,0:T(1,128)}', space=vmem, size = 0x12000, scoped, tag = 'internal scratch']
  %s0 = inlined_call_operand.vmem [shape: bf16[2,16,64], index: 0, kind: input, shape index: {}]
  %s1 = inlined_call_operand.vmem [shape: bf16[64,32], index: 1, kind: input, shape index: {}]
  %s2 = inlined_call_operand.vmem [shape: f32[1,32], index: 2, kind: input, shape index: {}]
  %s3 = inlined_call_operand.vmem [shape: f32[1,32], index: 3, kind: input, shape index: {}]
  %s4 = inlined_call_operand.vmem [shape: f32[17,32], index: 4, kind: input, shape index: {}]
  %s5 = inlined_call_operand.vmem [shape: f32[2,17,32], index: 5, kind: output, shape index: {}]
  %s6 = sld [smem:[#allocation0]]
  $region53: #{vit_forward.3} parent=0
    _
  %s8 = ssub.s32 1, %s6
  %s9 = scalar_select 0, %s8, %s6
  loop: start=0, step=1, limit=4
  $region2: #{vit_forward.3} parent=0 // loop_pre_header
    _
  $region3: #{vit_forward.3} parent=0 // loop_header
    %s11 = sphi 0, %s15
    %p12 = scmp.ge.s32.totalorder %s11, 4
    %s21 = sphi 0, %s23
    %s24 = sphi 0, %s21
    %s25 = sphi 0, %s24
    %s41 = sphi 0, %s25
    %s45 = sphi 0, %s45
    %s47 = sphi 0, %s45
    %s48 = sphi 0, %s47
    %s62 = sphi 0, %s48
    %s66 = sphi 0, %s66
    %s68 = sphi 0, %s66
    %s69 = sphi 0, %s68
    %s83 = sphi 0, %s69
    %s87 = sphi 0, %s87
    %s89 = sphi 0, %s87
    %s90 = sphi 0, %s89
    %s104 = sphi 0, %s90
    %s108 = sphi 0, %s108
    %s110 = sphi 0, %s108
    %s111 = sphi 0, %s110
    %s125 = sphi 0, %s111
    %s131 = sphi 0, %s133
    %s134 = sphi 0, %s131
    %s135 = sphi 0, %s134
    %s151 = sphi 0, %s135
  $region4: #{vit_forward.3} parent=0 // loop_header_branch
    %14 = sbr.rel (%p12) target = $region8
  $region5: #{vit_forward.3} parent=0 // loop_body
    %s16 = ssub.s32 %s11, 1
    %s17 = ssub.s32 %s11, 2
    %s18 = sadd.s32 %s11, 1
    %s19 = ssub.s32 %s11, %s18
    %p20 = scmp.eq.s32.totalorder %s19, 0
    %s22 = sadd.s32 %s21, 1
    %s23 = scalar_select %p20, %s21, %s22
    %p26 = pneg %p20
    %p27 = scmp.eq.s32.totalorder %s11, 1
    %p28 = por %p26, %p27
    %p29 = scmp.ne.s32.totalorder %s21, %s24
    %p30 = scmp.eq.s32.totalorder %s11, 0
    %p31 = por %p29, %p30
    %p32 = scmp.ne.s32.totalorder %s21, %s24
    %p33 = scmp.eq.s32.totalorder %s16, 1
    %p34 = por %p32, %p33
    %p35 = scmp.ne.s32.totalorder %s24, %s25
    %p36 = scmp.eq.s32.totalorder %s16, 0
    %p37 = por %p35, %p36
    %p38 = scmp.ne.s32.totalorder %s24, %s25
    %p39 = scmp.eq.s32.totalorder %s17, 1
    %p40 = por %p38, %p39
    %p42 = scmp.ne.s32.totalorder %s25, %s41
    %p43 = scmp.eq.s32.totalorder %s17, 0
    %p44 = por %p42, %p43
    %s46 = sadd.s32 %s45, 1
    %p49 = scmp.eq.s32.totalorder %s11, 1
    %p50 = scmp.ne.s32.totalorder %s45, %s47
    %p51 = scmp.eq.s32.totalorder %s11, 0
    %p52 = por %p50, %p51
    %p53 = scmp.ne.s32.totalorder %s45, %s47
    %p54 = scmp.eq.s32.totalorder %s16, 1
    %p55 = por %p53, %p54
    %p56 = scmp.ne.s32.totalorder %s47, %s48
    %p57 = scmp.eq.s32.totalorder %s16, 0
    %p58 = por %p56, %p57
    %p59 = scmp.ne.s32.totalorder %s47, %s48
    %p60 = scmp.eq.s32.totalorder %s17, 1
    %p61 = por %p59, %p60
    %p63 = scmp.ne.s32.totalorder %s48, %s62
    %p64 = scmp.eq.s32.totalorder %s17, 0
    %p65 = por %p63, %p64
    %s67 = sadd.s32 %s66, 1
    %p70 = scmp.eq.s32.totalorder %s11, 1
    %p71 = scmp.ne.s32.totalorder %s66, %s68
    %p72 = scmp.eq.s32.totalorder %s11, 0
    %p73 = por %p71, %p72
    %p74 = scmp.ne.s32.totalorder %s66, %s68
    %p75 = scmp.eq.s32.totalorder %s16, 1
    %p76 = por %p74, %p75
    %p77 = scmp.ne.s32.totalorder %s68, %s69
    %p78 = scmp.eq.s32.totalorder %s16, 0
    %p79 = por %p77, %p78
    %p80 = scmp.ne.s32.totalorder %s68, %s69
    %p81 = scmp.eq.s32.totalorder %s17, 1
    %p82 = por %p80, %p81
    %p84 = scmp.ne.s32.totalorder %s69, %s83
    %p85 = scmp.eq.s32.totalorder %s17, 0
    %p86 = por %p84, %p85
    %s88 = sadd.s32 %s87, 1
    %p91 = scmp.eq.s32.totalorder %s11, 1
    %p92 = scmp.ne.s32.totalorder %s87, %s89
    %p93 = scmp.eq.s32.totalorder %s11, 0
    %p94 = por %p92, %p93
    %p95 = scmp.ne.s32.totalorder %s87, %s89
    %p96 = scmp.eq.s32.totalorder %s16, 1
    %p97 = por %p95, %p96
    %p98 = scmp.ne.s32.totalorder %s89, %s90
    %p99 = scmp.eq.s32.totalorder %s16, 0
    %p100 = por %p98, %p99
    %p101 = scmp.ne.s32.totalorder %s89, %s90
    %p102 = scmp.eq.s32.totalorder %s17, 1
    %p103 = por %p101, %p102
    %p105 = scmp.ne.s32.totalorder %s90, %s104
    %p106 = scmp.eq.s32.totalorder %s17, 0
    %p107 = por %p105, %p106
    %s109 = sadd.s32 %s108, 1
    %p112 = scmp.eq.s32.totalorder %s11, 1
    %p113 = scmp.ne.s32.totalorder %s108, %s110
    %p114 = scmp.eq.s32.totalorder %s11, 0
    %p115 = por %p113, %p114
    %p116 = scmp.ne.s32.totalorder %s108, %s110
    %p117 = scmp.eq.s32.totalorder %s16, 1
    %p118 = por %p116, %p117
    %p119 = scmp.ne.s32.totalorder %s110, %s111
    %p120 = scmp.eq.s32.totalorder %s16, 0
    %p121 = por %p119, %p120
    %p122 = scmp.ne.s32.totalorder %s110, %s111
    %p123 = scmp.eq.s32.totalorder %s17, 1
    %p124 = por %p122, %p123
    %p126 = scmp.ne.s32.totalorder %s111, %s125
    %p127 = scmp.eq.s32.totalorder %s17, 0
    %p128 = por %p126, %p127
    %s129 = ssub.s32 %s11, %s18
    %p130 = scmp.eq.s32.totalorder %s129, 0
    %s132 = sadd.s32 %s131, 1
    %s133 = scalar_select %p130, %s131, %s132
    %p136 = pneg %p130
    %p137 = scmp.eq.s32.totalorder %s11, 1
    %p138 = por %p136, %p137
    %p139 = scmp.ne.s32.totalorder %s131, %s134
    %p140 = scmp.eq.s32.totalorder %s11, 0
    %p141 = por %p139, %p140
    %p142 = scmp.ne.s32.totalorder %s131, %s134
    %p143 = scmp.eq.s32.totalorder %s16, 1
    %p144 = por %p142, %p143
    %p145 = scmp.ne.s32.totalorder %s134, %s135
    %p146 = scmp.eq.s32.totalorder %s16, 0
    %p147 = por %p145, %p146
    %p148 = scmp.ne.s32.totalorder %s134, %s135
    %p149 = scmp.eq.s32.totalorder %s17, 1
    %p150 = por %p148, %p149
    %p152 = scmp.ne.s32.totalorder %s135, %s151
    %p153 = scmp.eq.s32.totalorder %s17, 0
    %p154 = por %p152, %p153
    %p155 = scmp.le.s32.totalorder 1, %s11
    %p156 = scmp.lt.s32.totalorder %s11, 3
    %p157 = pnand %p155, %p156
    %p158 = pneg %p157
    // Predicated region
    $region9: #{vit_forward.3} parent=5 // pred_check
      _
    $region10: #{vit_forward.3} parent=5 // pred_check_branch
      %160 = sbr.rel (%p157) target = $region12
    $region11: #{vit_forward.3} parent=5 // pred_region
      %s161 = ssub.s32 %s11, 1
      // Predicated region
      $region13: #{vit_forward.3} parent=11 // pred_check
        %p162 = pneg %p58
      $region14: #{vit_forward.3} parent=11 // pred_check_branch
        %164 = sbr.rel (%p162) target = $region16
      $region15: #{vit_forward.3} parent=11 // pred_region
        _
      $region16: #{vit_forward.3} parent=11 // pred_fallthru
        _
      // Predicated region
      $region17: #{vit_forward.3} parent=11 // pred_check
        %p165 = pneg %p79
      $region18: #{vit_forward.3} parent=11 // pred_check_branch
        %167 = sbr.rel (%p165) target = $region20
      $region19: #{vit_forward.3} parent=11 // pred_region
        _
      $region20: #{vit_forward.3} parent=11 // pred_fallthru
        _
      // Predicated region
      $region21: #{vit_forward.3} parent=11 // pred_check
        %p168 = pneg %p100
      $region22: #{vit_forward.3} parent=11 // pred_check_branch
        %170 = sbr.rel (%p168) target = $region24
      $region23: #{vit_forward.3} parent=11 // pred_region
        _
      $region24: #{vit_forward.3} parent=11 // pred_fallthru
        _
      // Predicated region
      $region25: #{vit_forward.3} parent=11 // pred_check
        %p171 = pneg %p121
      $region26: #{vit_forward.3} parent=11 // pred_check_branch
        %173 = sbr.rel (%p171) target = $region28
      $region27: #{vit_forward.3} parent=11 // pred_region
        _
      $region28: #{vit_forward.3} parent=11 // pred_fallthru
        _
    $region12: #{vit_forward.3} parent=5 // pred_fallthru
      _
    %p174 = scmp.lt.s32.totalorder %s11, 2
    // Predicated region
    $region29: #{vit_forward.3} parent=5 // pred_check
      %p175 = pneg %p174
    $region30: #{vit_forward.3} parent=5 // pred_check_branch
      %177 = sbr.rel (%p175) target = $region32
    $region31: #{vit_forward.3} parent=5 // pred_region
      // Predicated region
      $region33: #{vit_forward.3} parent=31 // pred_check
        %p178 = pneg %p31
      $region34: #{vit_forward.3} parent=31 // pred_check_branch
        %180 = sbr.rel (%p178) target = $region36
      $region35: #{vit_forward.3} parent=31 // pred_region
        %p181 = scmp.lt.s32.totalorder %s11, 1
        %s182 = scalar_select %p181, %s11, 1
        %s183 = smul.addr %s182, 2
        %s184 = smul.addr %s183, 4
        %s185 = scalar_lea.vmem %s0, %s184
      $region36: #{vit_forward.3} parent=31 // pred_fallthru
        _
    $region32: #{vit_forward.3} parent=5 // pred_fallthru
      _
    %p186 = scmp.le.s32.totalorder 1, %s11
    %p187 = scmp.lt.s32.totalorder %s11, 3
    %p188 = pnand %p186, %p187
    %p189 = pneg %p188
    // Predicated region
    $region37: #{vit_forward.3} parent=5 // pred_check
      _
    $region38: #{vit_forward.3} parent=5 // pred_check_branch
      %191 = sbr.rel (%p188) target = $region40
    $region39: #{vit_forward.3} parent=5 // pred_region
      %s192 = ssub.s32 %s11, 1
      %p193 = scmp.lt.s32.totalorder %s16, 1
      %s194 = scalar_select %p193, %s16, 1
      %s195 = smul.addr %s194, 2
      %s196 = smul.addr %s195, 4
      %s197 = scalar_lea.vmem %s0, %s196
      %p198 = pneg %p37
      %p199 = pneg %p34
      %p200 = pneg %p58
      %p201 = pneg %p55
      %p202 = pneg %p79
      %p203 = pneg %p76
      %p204 = pneg %p100
      %p205 = pneg %p97
      %p206 = pneg %p121
      %p207 = pneg %p118
      %p208 = pneg %p147
      %p209 = pneg %p144
      %p210 = scmp.lt.s32.totalorder %s16, 1
      %s211 = scalar_select %p210, %s16, 1
      %s212 = smul.addr %s211, 3
      %s213 = smul.addr %s212, 8
      %s214 = scalar_lea.vmem %s5, %s213
      %p215 = scmp.lt.s32.totalorder %s16, 1
      %s216 = scalar_select %p215, %s16, 1
      %s217 = smul.addr %s216, 2
      %s218 = smul.addr %s217, 4
      %s219 = scalar_lea.vmem %s0, %s218
      %p220 = scmp.lt.s32.totalorder %s16, 1
      %s221 = scalar_select %p220, %s16, 1
      %s222 = smul.addr %s221, 3
      %s223 = smul.addr %s222, 8
      %s224 = scalar_lea.vmem %s5, %s223
      %v226 = vld [vmem:[%s219] sm:$0xf]
      %v227 = vld [vmem:[%s219 + $0x4] sm:$0xf]
      %v228 = vld [vmem:[%s1] sm:$0xf]
      %v229 = vld [vmem:[%s1 + $0x4] sm:$0xf]
      %v230 = vld [vmem:[%s1 + $0x8] sm:$0xf]
      %v231 = vld [vmem:[%s1 + $0xc] sm:$0xf]
      %v232 = vld [vmem:[%s1 + $0x10] sm:$0xf]
      %v233 = vld [vmem:[%s1 + $0x14] sm:$0xf]
      %v234 = vld [vmem:[%s1 + $0x18] sm:$0xf]
      %v235 = vld [vmem:[%s1 + $0x1c] sm:$0xf]
      %v236 = vld [vmem:[%s2] sm:$0x1]
      %v238 = vlaneseq
      %v239 = vshrl.u32 %v238, 7
      %v240 = vsub.s32 0, %v239
      %v241 = vrot.slane %v236, %v240
      %v245 = vunpack.c.l.b16 %v226
      %v246 = vunpack.c.l.b16 %v227
      %v247 = vpack.c.b16 %v246, %v245
      %v256 = vunpack.c.l.b16 %v228
      %v257 = vunpack.c.l.b16 %v229
      %v258 = vunpack.c.l.b16 %v230
      %v259 = vunpack.c.l.b16 %v231
      %v260 = vunpack.c.l.b16 %v232
      %v261 = vunpack.c.l.b16 %v233
      %v262 = vunpack.c.l.b16 %v234
      %v263 = vunpack.c.l.b16 %v235
      %v264 = vpack.c.b16 %v257, %v256
      %v265 = vpack.c.b16 %v259, %v258
      %v266 = vpack.c.b16 %v261, %v260
      %v267 = vpack.c.b16 %v263, %v262
      %vm272 = vcmask 523264
      %v274 = vsel %vm272, %v247, 0
      %276 = vmatprep.subr.bf16.mxu0 0
      %277 = vmatpush1.bf16.msra.mxu0 %v264
      %278 = vmatprep.subr.bf16.mxu0 0
      %279 = vmatpush1.bf16.msra.mxu0 %v265
      %280 = vmatprep.subr.bf16.mxu0 0
      %281 = vmatpush1.bf16.msra.mxu0 %v266
      %282 = vmatprep.subr.bf16.mxu0 0
      %283 = vmatpush1.bf16.msra.mxu0 %v267
      %284 = vmatprep.subr.bf16.mxu0 0
      %285 = vmatpush1.bf16.msra.mxu0 0
      %286 = vmatprep.subr.bf16.mxu0 0
      %287 = vmatpush1.bf16.msra.mxu0 0
      %288 = vmatprep.subr.bf16.mxu0 0
      %289 = vmatpush1.bf16.msra.mxu0 0
      %290 = vmatprep.subr.bf16.mxu0 0
      %291 = vmatpush1.bf16.msra.mxu0 0
      %292 = vmatprep.subr.bf16.mxu0 0
      %293 = vmatpush1.bf16.msra.mxu0 0
      %294 = vmatprep.subr.bf16.mxu0 0
      %295 = vmatpush1.bf16.msra.mxu0 0
      %296 = vmatprep.subr.bf16.mxu0 0
      %297 = vmatpush1.bf16.msra.mxu0 0
      %298 = vmatprep.subr.bf16.mxu0 0
      %299 = vmatpush1.bf16.msra.mxu0 0
      %300 = vmatprep.subr.bf16.mxu0 0
      %301 = vmatpush1.bf16.msra.mxu0 0
      %302 = vmatprep.subr.bf16.mxu0 0
      %303 = vmatpush1.bf16.msra.mxu0 0
      %304 = vmatprep.subr.bf16.mxu0 0
      %305 = vmatpush1.bf16.msra.mxu0 0
      %306 = vmatprep.subr.bf16.mxu0 0
      %307 = vmatpush1.bf16.msra.mxu0 0
      %308 = vmatprep.mubr.bf16.mxu0 0
      %309 = vmatmul.mubr.bf16.gmra.mrb[0].mxu0 %v274
      %v310 = vpop.f32.mrb[0].mxu0
      %v311 = vadd.f32 %v241, %v310
      %v312 = vpop.f32.mrb[0].mxu0
      %v313 = vpop.f32.mrb[0].mxu0
      %v314 = vadd.f32 %v241, %v313
      %v315 = vpop.f32.mrb[0].mxu0
      %316 = vdwg.mxu0
      %v317 = vld [vmem:[%s3] sm:$0x1]
      %vm320 = vcmask 1040384
      %v321 = vrot.slane %v311, 7
      %v322 = vrot.slane %v314, 7
      %v323 = vsel %vm320, %v321, %v322
      %v327 = vsel %vm320, %v317, %v321
      %v328 = vld [vmem:[%s4] sm:$0xff]
      %v329 = vld [vmem:[%s4 + $0x8] sm:$0xff]
      %v330 = vld [vmem:[%s4 + $0x10] sm:$0x1]
      %v331 = vadd.f32 %v327, %v328
      %v332 = vadd.f32 %v323, %v329
      %v333 = vadd.f32 %v322, %v330
      %vm334 = vcmask 261120
      %335 = vst.msk [vmem:[%s224] sm:$0xff] %vm334, %v331
      %336 = vst.msk [vmem:[%s224 + $0x8] sm:$0xff] %vm334, %v332
      %vm337 = vcmask 253952
      %338 = vst.msk [vmem:[%s224 + $0x10] sm:$0x1] %vm337, %v333
      %p339 = scmp.lt.s32.totalorder %s16, 1
      %s340 = scalar_select %p339, %s16, 1
      %s341 = smul.addr %s340, 3
      %s342 = smul.addr %s341, 8
      %s343 = scalar_lea.vmem %s5, %s342
      // Predicated region
      $region41: #{vit_forward.3} parent=39 // pred_check
        %p344 = pneg %p144
      $region42: #{vit_forward.3} parent=39 // pred_check_branch
        %346 = sbr.rel (%p344) target = $region44
      $region43: #{vit_forward.3} parent=39 // pred_region
        _
      $region44: #{vit_forward.3} parent=39 // pred_fallthru
        _
    $region40: #{vit_forward.3} parent=5 // pred_fallthru
      _
    %p347 = scmp.le.s32.totalorder 2, %s11
    // Predicated region
    $region45: #{vit_forward.3} parent=5 // pred_check
      %p348 = pneg %p347
    $region46: #{vit_forward.3} parent=5 // pred_check_branch
      %350 = sbr.rel (%p348) target = $region48
    $region47: #{vit_forward.3} parent=5 // pred_region
      %s351 = ssub.s32 %s11, 2
      // Predicated region
      $region49: #{vit_forward.3} parent=47 // pred_check
        %p352 = pneg %p150
      $region50: #{vit_forward.3} parent=47 // pred_check_branch
        %354 = sbr.rel (%p352) target = $region52
      $region51: #{vit_forward.3} parent=47 // pred_region
        %p355 = scmp.lt.s32.totalorder %s17, 1
        %s356 = scalar_select %p355, %s17, 1
        %s357 = smul.addr %s356, 3
        %s358 = smul.addr %s357, 8
        %s359 = scalar_lea.vmem %s5, %s358
      $region52: #{vit_forward.3} parent=47 // pred_fallthru
        _
    $region48: #{vit_forward.3} parent=5 // pred_fallthru
      _
  $region6: #{vit_forward.3} parent=0 // loop_footer
    %s15 = sadd.s32 1, %s11
  $region7: #{vit_forward.3} parent=0 // loop_footer_branch
    %10 = sbr.rel target = $region3
  $region8: #{vit_forward.3} parent=0 // loop_exit
    _

// kernel: vit_forward.5
$region0: #{vit_forward.5}
  #allocation0 [shape = 'u32[]', space=smem, size = 0x4, offset = 0x4, fixed_abs, tag = 'smem constant byte address 0x4 - core index']
  #allocation1 [shape = 'u32[144,128]{1,0:T(1,128)}', space=vmem, size = 0x12000, scoped, tag = 'internal scratch']
  %s0 = inlined_call_operand.vmem [shape: f32[2,32], index: 0, kind: input, shape index: {}]
  %s1 = inlined_call_operand.vmem [shape: f32[1,32], index: 1, kind: input, shape index: {}]
  %s2 = inlined_call_operand.vmem [shape: f32[1,32], index: 2, kind: input, shape index: {}]
  %s3 = inlined_call_operand.vmem [shape: bf16[32,10], index: 3, kind: input, shape index: {}]
  %s4 = inlined_call_operand.vmem [shape: f32[1,10], index: 4, kind: input, shape index: {}]
  %s5 = inlined_call_operand.hbm [shape: f32[2,10], index: 5, kind: output, shape index: {}]
  %s6 = sld [smem:[#allocation0]]
  $region30: #{vit_forward.5} parent=0
    _
  %s8 = ssub.s32 1, %s6
  %s9 = scalar_select 0, %s8, %s6
  $region1: #{vit_forward.5} parent=0
    #allocation2 [shape = 'u8[1024]{0}', space=vmem, size = 0x400, scoped, tag = 'output window, operand 0, single buffered']
    #allocation3 [shape = 's32[1]{0}', space=sflag, size = 0x4, scoped, tag = 'scoped memory for vit_forward.5']
    %10 = vsyncpa [#allocation3], 0
    // Predicated region
    $region2: #{vit_forward.5} parent=1 // pred_check
      _
    $region3: #{vit_forward.5} parent=1 // pred_check_branch
      %12 = sbr.rel (0) target = $region5
    $region4: #{vit_forward.5} parent=1 // pred_region
      _
    $region5: #{vit_forward.5} parent=1 // pred_fallthru
      _
    // Predicated region
    $region6: #{vit_forward.5} parent=1 // pred_check
      _
    $region7: #{vit_forward.5} parent=1 // pred_check_branch
      %14 = sbr.rel (0) target = $region9
    $region8: #{vit_forward.5} parent=1 // pred_region
      _
    $region9: #{vit_forward.5} parent=1 // pred_fallthru
      _
    // Predicated region
    $region10: #{vit_forward.5} parent=1 // pred_check
      _
    $region11: #{vit_forward.5} parent=1 // pred_check_branch
      %16 = sbr.rel (0) target = $region13
    $region12: #{vit_forward.5} parent=1 // pred_region
      _
    $region13: #{vit_forward.5} parent=1 // pred_fallthru
      _
    // Predicated region
    $region14: #{vit_forward.5} parent=1 // pred_check
      _
    $region15: #{vit_forward.5} parent=1 // pred_check_branch
      %18 = sbr.rel (0) target = $region17
    $region16: #{vit_forward.5} parent=1 // pred_region
      _
    $region17: #{vit_forward.5} parent=1 // pred_fallthru
      _
    // Predicated region
    $region18: #{vit_forward.5} parent=1 // pred_check
      _
    $region19: #{vit_forward.5} parent=1 // pred_check_branch
      %20 = sbr.rel (0) target = $region21
    $region20: #{vit_forward.5} parent=1 // pred_region
      _
    $region21: #{vit_forward.5} parent=1 // pred_fallthru
      _
    %v22 = vld [vmem:[%s0] sm:$0x3]
    %v23 = vld [vmem:[%s1] sm:$0x1]
    %v24 = vld [vmem:[%s2] sm:$0x1]
    %vm25 = vcmask 254976
    %v26 = vsel %vm25, %v22, 0.0
    %27 = vadd.xlane.f32.xlu0 %v26
    %v28 = vpop.xlane.xlu0 %27
    %v29 = vrcp.pop 32.0
    %v30 = vmul.f32 %v28, %v29
    %v31 = vsub.f32 %v22, %v30
    %v32 = vmul.f32 %v31, %v31
    %v33 = vsel %vm25, %v32, 0.0
    %34 = vadd.xlane.f32.xlu0 %v33
    %v35 = vpop.xlane.xlu0 %34
    %v36 = vmul.f32 %v35, %v29
    %v37 = vadd.f32 %v36, 1e-05
    %v38 = vrsqrt.pop %v37
    %v39 = vmul.f32 %v31, %v38
    %v41 = vlaneseq
    %v42 = vshrl.u32 %v41, 7
    %v43 = vsub.s32 0, %v42
    %v44 = vrot.slane %v23, %v43
    %v46 = vmul.f32 %v39, %v44
    %v48 = vlaneseq
    %v49 = vshrl.u32 %v48, 7
    %v50 = vsub.s32 0, %v49
    %v51 = vrot.slane %v24, %v50
    %v53 = vadd.f32 %v46, %v51
    %v54 = vpack.c.bf16 %v53, %v53
    %v55 = vld [vmem:[%s3] sm:$0xf]
    %v56 = vld [vmem:[%s3 + $0x4] sm:$0xf]
    %v57 = vld [vmem:[%s3 + $0x8] sm:$0xf]
    %v58 = vld [vmem:[%s3 + $0xc] sm:$0xf]
    %v59 = vld [vmem:[%s4] sm:$0x1]
    %v61 = vlaneseq
    %v62 = vshrl.u32 %v61, 7
    %v63 = vsub.s32 0, %v62
    %v64 = vrot.slane %v59, %v63
    %v70 = vunpack.c.l.b16 %v55
    %v71 = vunpack.c.l.b16 %v56
    %v72 = vunpack.c.l.b16 %v57
    %v73 = vunpack.c.l.b16 %v58
    %v74 = vpack.c.b16 %v71, %v70
    %v75 = vpack.c.b16 %v73, %v72
    %vm78 = vcmask 261120
    %v80 = vsel %vm78, %v54, 0
    %82 = vmatprep.subr.bf16.mxu0 0
    %83 = vmatpush1.bf16.msra.mxu0 %v74
    %84 = vmatprep.subr.bf16.mxu0 0
    %85 = vmatpush1.bf16.msra.mxu0 %v75
    %86 = vmatprep.subr.bf16.mxu0 0
    %87 = vmatpush1.bf16.msra.mxu0 0
    %88 = vmatprep.subr.bf16.mxu0 0
    %89 = vmatpush1.bf16.msra.mxu0 0
    %90 = vmatprep.subr.bf16.mxu0 0
    %91 = vmatpush1.bf16.msra.mxu0 0
    %92 = vmatprep.subr.bf16.mxu0 0
    %93 = vmatpush1.bf16.msra.mxu0 0
    %94 = vmatprep.subr.bf16.mxu0 0
    %95 = vmatpush1.bf16.msra.mxu0 0
    %96 = vmatprep.subr.bf16.mxu0 0
    %97 = vmatpush1.bf16.msra.mxu0 0
    %98 = vmatprep.subr.bf16.mxu0 0
    %99 = vmatpush1.bf16.msra.mxu0 0
    %100 = vmatprep.subr.bf16.mxu0 0
    %101 = vmatpush1.bf16.msra.mxu0 0
    %102 = vmatprep.subr.bf16.mxu0 0
    %103 = vmatpush1.bf16.msra.mxu0 0
    %104 = vmatprep.subr.bf16.mxu0 0
    %105 = vmatpush1.bf16.msra.mxu0 0
    %106 = vmatprep.subr.bf16.mxu0 0
    %107 = vmatpush1.bf16.msra.mxu0 0
    %108 = vmatprep.subr.bf16.mxu0 0
    %109 = vmatpush1.bf16.msra.mxu0 0
    %110 = vmatprep.subr.bf16.mxu0 0
    %111 = vmatpush1.bf16.msra.mxu0 0
    %112 = vmatprep.subr.bf16.mxu0 0
    %113 = vmatpush1.bf16.msra.mxu0 0
    %114 = vmatprep.mubr.bf16.mxu0 0
    %115 = vmatmul.mubr.bf16.gmra.mrb[0].mxu0 %v80
    %v116 = vpop.f32.mrb[0].mxu0
    %v117 = vadd.f32 %v64, %v116
    %v118 = vpop.f32.mrb[0].mxu0
    %v119 = vpop.f32.mrb[0].mxu0
    %v120 = vpop.f32.mrb[0].mxu0
    %121 = vdwg.mxu0
    %vm122 = vcmask 74752
    %123 = vst.msk [vmem:[#allocation2] sm:$0x3] %vm122, %v117
    // Predicated region
    $region22: #{vit_forward.5} parent=1 // pred_check
      _
    $region23: #{vit_forward.5} parent=1 // pred_check_branch
      %125 = sbr.rel (0) target = $region25
    $region24: #{vit_forward.5} parent=1 // pred_region
      %s127 = ssub.s32 32, 32
      %128 = vsyncadd [#allocation3], %s127
      %s130 = sshll.u32 [#allocation2], 4
      %s131 = int_to_ptr.vmem [resolvable:$true] %s130
      %133 = dma.vmem_to_hbm [thread:$0]  %s131, 32, %s5, [#allocation3]
    $region25: #{vit_forward.5} parent=1 // pred_fallthru
      _
    // Predicated region
    $region26: #{vit_forward.5} parent=1 // pred_check
      _
    $region27: #{vit_forward.5} parent=1 // pred_check_branch
      %135 = sbr.rel (0) target = $region29
    $region28: #{vit_forward.5} parent=1 // pred_region
      %136 = dma.done [#allocation3], 32
    $region29: #{vit_forward.5} parent=1 // pred_fallthru
      _
    %137 = vsyncpa [#allocation3], 1

// kernel: vit_forward.4
$region0: #{vit_forward.4}
  #allocation0 [shape = 'u32[]', space=smem, size = 0x4, offset = 0x4, fixed_abs, tag = 'smem constant byte address 0x4 - core index']
  #allocation1 [shape = 'u32[144,128]{1,0:T(1,128)}', space=vmem, size = 0x12000, scoped, tag = 'internal scratch']
  %s0 = inlined_call_operand.vmem [shape: f32[2,17,32], index: 0, kind: input, shape index: {}]
  %s1 = inlined_call_operand.vmem [shape: f32[2,1,32], index: 1, kind: input, shape index: {}]
  %s2 = inlined_call_operand.vmem [shape: f32[2,1,32], index: 2, kind: input, shape index: {}]
  %s3 = inlined_call_operand.vmem [shape: bf16[2,32,96], index: 3, kind: input, shape index: {}]
  %s4 = inlined_call_operand.vmem [shape: f32[2,1,96], index: 4, kind: input, shape index: {}]
  %s5 = inlined_call_operand.vmem [shape: bf16[2,32,32], index: 5, kind: input, shape index: {}]
  %s6 = inlined_call_operand.vmem [shape: f32[2,1,32], index: 6, kind: input, shape index: {}]
  %s7 = inlined_call_operand.vmem [shape: f32[2,1,32], index: 7, kind: input, shape index: {}]
  %s8 = inlined_call_operand.vmem [shape: f32[2,1,32], index: 8, kind: input, shape index: {}]
  %s9 = inlined_call_operand.vmem [shape: bf16[2,32,128], index: 9, kind: input, shape index: {}]
  %s10 = inlined_call_operand.vmem [shape: f32[2,1,128], index: 10, kind: input, shape index: {}]
  %s11 = inlined_call_operand.vmem [shape: bf16[2,128,32], index: 11, kind: input, shape index: {}]
  %s12 = inlined_call_operand.vmem [shape: f32[2,1,32], index: 12, kind: input, shape index: {}]
  %s13 = inlined_call_operand.vmem [shape: f32[2,17,32], index: 13, kind: output, shape index: {}]
  %s14 = sld [smem:[#allocation0]]
  $region89: #{vit_forward.4} parent=0
    _
  %s16 = ssub.s32 1, %s14
  %s17 = scalar_select 0, %s16, %s14
  loop: start=0, step=1, limit=6
  $region2: #{vit_forward.4} parent=0 // loop_pre_header
    _
  $region3: #{vit_forward.4} parent=0 // loop_header
    %s19 = sphi 0, %s23
    %p20 = scmp.ge.s32.totalorder %s19, 6
    %s26 = sphi 0, %s38
    %s27 = sphi 0, %s34
    %s28 = sphi 0, %s26
    %s29 = sphi 0, %s27
    %s30 = sphi 0, %s28
    %s31 = sphi 0, %s29
    %s41 = sphi 0, %s43
    %s44 = sphi 0, %s41
    %s45 = sphi 0, %s44
    %s61 = sphi 0, %s45
    %s67 = sphi 0, %s69
    %s70 = sphi 0, %s67
    %s71 = sphi 0, %s70
    %s87 = sphi 0, %s71
    %s93 = sphi 0, %s95
    %s96 = sphi 0, %s93
    %s97 = sphi 0, %s96
    %s113 = sphi 0, %s97
    %s119 = sphi 0, %s121
    %s122 = sphi 0, %s119
    %s123 = sphi 0, %s122
    %s139 = sphi 0, %s123
    %s145 = sphi 0, %s147
    %s148 = sphi 0, %s145
    %s149 = sphi 0, %s148
    %s165 = sphi 0, %s149
    %s171 = sphi 0, %s173
    %s174 = sphi 0, %s171
    %s175 = sphi 0, %s174
    %s191 = sphi 0, %s175
    %s197 = sphi 0, %s199
    %s200 = sphi 0, %s197
    %s201 = sphi 0, %s200
    %s217 = sphi 0, %s201
    %s223 = sphi 0, %s225
    %s226 = sphi 0, %s223
    %s227 = sphi 0, %s226
    %s243 = sphi 0, %s227
    %s249 = sphi 0, %s251
    %s252 = sphi 0, %s249
    %s253 = sphi 0, %s252
    %s269 = sphi 0, %s253
    %s275 = sphi 0, %s277
    %s278 = sphi 0, %s275
    %s279 = sphi 0, %s278
    %s295 = sphi 0, %s279
    %s301 = sphi 0, %s303
    %s304 = sphi 0, %s301
    %s305 = sphi 0, %s304
    %s321 = sphi 0, %s305
    %s327 = sphi 0, %s329
    %s330 = sphi 0, %s327
    %s331 = sphi 0, %s330
    %s347 = sphi 0, %s331
    %s353 = sphi 0, %s355
    %s356 = sphi 0, %s353
    %s357 = sphi 0, %s356
    %s373 = sphi 0, %s357
    %s379 = sphi 0, %s381
    %s382 = sphi 0, %s379
    %s383 = sphi 0, %s382
    %s399 = sphi 0, %s383
  $region4: #{vit_forward.4} parent=0 // loop_header_branch
    %22 = sbr.rel (%p20) target = $region8
  $region5: #{vit_forward.4} parent=0 // loop_body
    %s24 = ssub.s32 %s19, 1
    %s25 = ssub.s32 %s19, 2
    %s32 = sadd.s32 1, %s27
    %p33 = scmp.ge.s32.totalorder %s32, 2
    %s34 = scalar_select %p33, 0, %s32
    %s35 = sadd.s32 1, %s26
    %s36 = scalar_select %p33, %s35, %s26
    %p37 = scmp.ge.s32.totalorder %s36, 2
    %s38 = scalar_select %p37, 0, %s36
    %s39 = ssub.s32 %s26, %s38
    %p40 = scmp.eq.s32.totalorder %s39, 0
    %s42 = sadd.s32 %s41, 1
    %s43 = scalar_select %p40, %s41, %s42
    %p46 = pneg %p40
    %p47 = scmp.eq.s32.totalorder %s19, 3
    %p48 = por %p46, %p47
    %p49 = scmp.ne.s32.totalorder %s41, %s44
    %p50 = scmp.eq.s32.totalorder %s19, 0
    %p51 = por %p49, %p50
    %p52 = scmp.ne.s32.totalorder %s41, %s44
    %p53 = scmp.eq.s32.totalorder %s24, 3
    %p54 = por %p52, %p53
    %p55 = scmp.ne.s32.totalorder %s44, %s45
    %p56 = scmp.eq.s32.totalorder %s24, 0
    %p57 = por %p55, %p56
    %p58 = scmp.ne.s32.totalorder %s44, %s45
    %p59 = scmp.eq.s32.totalorder %s25, 3
    %p60 = por %p58, %p59
    %p62 = scmp.ne.s32.totalorder %s45, %s61
    %p63 = scmp.eq.s32.totalorder %s25, 0
    %p64 = por %p62, %p63
    %s65 = ssub.s32 %s27, %s34
    %p66 = scmp.eq.s32.totalorder %s65, 0
    %s68 = sadd.s32 %s67, 1
    %s69 = scalar_select %p66, %s67, %s68
    %p72 = pneg %p66
    %p73 = scmp.eq.s32.totalorder %s19, 3
    %p74 = por %p72, %p73
    %p75 = scmp.ne.s32.totalorder %s67, %s70
    %p76 = scmp.eq.s32.totalorder %s19, 0
    %p77 = por %p75, %p76
    %p78 = scmp.ne.s32.totalorder %s67, %s70
    %p79 = scmp.eq.s32.totalorder %s24, 3
    %p80 = por %p78, %p79
    %p81 = scmp.ne.s32.totalorder %s70, %s71
    %p82 = scmp.eq.s32.totalorder %s24, 0
    %p83 = por %p81, %p82
    %p84 = scmp.ne.s32.totalorder %s70, %s71
    %p85 = scmp.eq.s32.totalorder %s25, 3
    %p86 = por %p84, %p85
    %p88 = scmp.ne.s32.totalorder %s71, %s87
    %p89 = scmp.eq.s32.totalorder %s25, 0
    %p90 = por %p88, %p89
    %s91 = ssub.s32 %s27, %s34
    %p92 = scmp.eq.s32.totalorder %s91, 0
    %s94 = sadd.s32 %s93, 1
    %s95 = scalar_select %p92, %s93, %s94
    %p98 = pneg %p92
    %p99 = scmp.eq.s32.totalorder %s19, 3
    %p100 = por %p98, %p99
    %p101 = scmp.ne.s32.totalorder %s93, %s96
    %p102 = scmp.eq.s32.totalorder %s19, 0
    %p103 = por %p101, %p102
    %p104 = scmp.ne.s32.totalorder %s93, %s96
    %p105 = scmp.eq.s32.totalorder %s24, 3
    %p106 = por %p104, %p105
    %p107 = scmp.ne.s32.totalorder %s96, %s97
    %p108 = scmp.eq.s32.totalorder %s24, 0
    %p109 = por %p107, %p108
    %p110 = scmp.ne.s32.totalorder %s96, %s97
    %p111 = scmp.eq.s32.totalorder %s25, 3
    %p112 = por %p110, %p111
    %p114 = scmp.ne.s32.totalorder %s97, %s113
    %p115 = scmp.eq.s32.totalorder %s25, 0
    %p116 = por %p114, %p115
    %s117 = ssub.s32 %s27, %s34
    %p118 = scmp.eq.s32.totalorder %s117, 0
    %s120 = sadd.s32 %s119, 1
    %s121 = scalar_select %p118, %s119, %s120
    %p124 = pneg %p118
    %p125 = scmp.eq.s32.totalorder %s19, 3
    %p126 = por %p124, %p125
    %p127 = scmp.ne.s32.totalorder %s119, %s122
    %p128 = scmp.eq.s32.totalorder %s19, 0
    %p129 = por %p127, %p128
    %p130 = scmp.ne.s32.totalorder %s119, %s122
    %p131 = scmp.eq.s32.totalorder %s24, 3
    %p132 = por %p130, %p131
    %p133 = scmp.ne.s32.totalorder %s122, %s123
    %p134 = scmp.eq.s32.totalorder %s24, 0
    %p135 = por %p133, %p134
    %p136 = scmp.ne.s32.totalorder %s122, %s123
    %p137 = scmp.eq.s32.totalorder %s25, 3
    %p138 = por %p136, %p137
    %p140 = scmp.ne.s32.totalorder %s123, %s139
    %p141 = scmp.eq.s32.totalorder %s25, 0
    %p142 = por %p140, %p141
    %s143 = ssub.s32 %s27, %s34
    %p144 = scmp.eq.s32.totalorder %s143, 0
    %s146 = sadd.s32 %s145, 1
    %s147 = scalar_select %p144, %s145, %s146
    %p150 = pneg %p144
    %p151 = scmp.eq.s32.totalorder %s19, 3
    %p152 = por %p150, %p151
    %p153 = scmp.ne.s32.totalorder %s145, %s148
    %p154 = scmp.eq.s32.totalorder %s19, 0
    %p155 = por %p153, %p154
    %p156 = scmp.ne.s32.totalorder %s145, %s148
    %p157 = scmp.eq.s32.totalorder %s24, 3
    %p158 = por %p156, %p157
    %p159 = scmp.ne.s32.totalorder %s148, %s149
    %p160 = scmp.eq.s32.totalorder %s24, 0
    %p161 = por %p159, %p160
    %p162 = scmp.ne.s32.totalorder %s148, %s149
    %p163 = scmp.eq.s32.totalorder %s25, 3
    %p164 = por %p162, %p163
    %p166 = scmp.ne.s32.totalorder %s149, %s165
    %p167 = scmp.eq.s32.totalorder %s25, 0
    %p168 = por %p166, %p167
    %s169 = ssub.s32 %s27, %s34
    %p170 = scmp.eq.s32.totalorder %s169, 0
    %s172 = sadd.s32 %s171, 1
    %s173 = scalar_select %p170, %s171, %s172
    %p176 = pneg %p170
    %p177 = scmp.eq.s32.totalorder %s19, 3
    %p178 = por %p176, %p177
    %p179 = scmp.ne.s32.totalorder %s171, %s174
    %p180 = scmp.eq.s32.totalorder %s19, 0
    %p181 = por %p179, %p180
    %p182 = scmp.ne.s32.totalorder %s171, %s174
    %p183 = scmp.eq.s32.totalorder %s24, 3
    %p184 = por %p182, %p183
    %p185 = scmp.ne.s32.totalorder %s174, %s175
    %p186 = scmp.eq.s32.totalorder %s24, 0
    %p187 = por %p185, %p186
    %p188 = scmp.ne.s32.totalorder %s174, %s175
    %p189 = scmp.eq.s32.totalorder %s25, 3
    %p190 = por %p188, %p189
    %p192 = scmp.ne.s32.totalorder %s175, %s191
    %p193 = scmp.eq.s32.totalorder %s25, 0
    %p194 = por %p192, %p193
    %s195 = ssub.s32 %s27, %s34
    %p196 = scmp.eq.s32.totalorder %s195, 0
    %s198 = sadd.s32 %s197, 1
    %s199 = scalar_select %p196, %s197, %s198
    %p202 = pneg %p196
    %p203 = scmp.eq.s32.totalorder %s19, 3
    %p204 = por %p202, %p203
    %p205 = scmp.ne.s32.totalorder %s197, %s200
    %p206 = scmp.eq.s32.totalorder %s19, 0
    %p207 = por %p205, %p206
    %p208 = scmp.ne.s32.totalorder %s197, %s200
    %p209 = scmp.eq.s32.totalorder %s24, 3
    %p210 = por %p208, %p209
    %p211 = scmp.ne.s32.totalorder %s200, %s201
    %p212 = scmp.eq.s32.totalorder %s24, 0
    %p213 = por %p211, %p212
    %p214 = scmp.ne.s32.totalorder %s200, %s201
    %p215 = scmp.eq.s32.totalorder %s25, 3
    %p216 = por %p214, %p215
    %p218 = scmp.ne.s32.totalorder %s201, %s217
    %p219 = scmp.eq.s32.totalorder %s25, 0
    %p220 = por %p218, %p219
    %s221 = ssub.s32 %s27, %s34
    %p222 = scmp.eq.s32.totalorder %s221, 0
    %s224 = sadd.s32 %s223, 1
    %s225 = scalar_select %p222, %s223, %s224
    %p228 = pneg %p222
    %p229 = scmp.eq.s32.totalorder %s19, 3
    %p230 = por %p228, %p229
    %p231 = scmp.ne.s32.totalorder %s223, %s226
    %p232 = scmp.eq.s32.totalorder %s19, 0
    %p233 = por %p231, %p232
    %p234 = scmp.ne.s32.totalorder %s223, %s226
    %p235 = scmp.eq.s32.totalorder %s24, 3
    %p236 = por %p234, %p235
    %p237 = scmp.ne.s32.totalorder %s226, %s227
    %p238 = scmp.eq.s32.totalorder %s24, 0
    %p239 = por %p237, %p238
    %p240 = scmp.ne.s32.totalorder %s226, %s227
    %p241 = scmp.eq.s32.totalorder %s25, 3
    %p242 = por %p240, %p241
    %p244 = scmp.ne.s32.totalorder %s227, %s243
    %p245 = scmp.eq.s32.totalorder %s25, 0
    %p246 = por %p244, %p245
    %s247 = ssub.s32 %s27, %s34
    %p248 = scmp.eq.s32.totalorder %s247, 0
    %s250 = sadd.s32 %s249, 1
    %s251 = scalar_select %p248, %s249, %s250
    %p254 = pneg %p248
    %p255 = scmp.eq.s32.totalorder %s19, 3
    %p256 = por %p254, %p255
    %p257 = scmp.ne.s32.totalorder %s249, %s252
    %p258 = scmp.eq.s32.totalorder %s19, 0
    %p259 = por %p257, %p258
    %p260 = scmp.ne.s32.totalorder %s249, %s252
    %p261 = scmp.eq.s32.totalorder %s24, 3
    %p262 = por %p260, %p261
    %p263 = scmp.ne.s32.totalorder %s252, %s253
    %p264 = scmp.eq.s32.totalorder %s24, 0
    %p265 = por %p263, %p264
    %p266 = scmp.ne.s32.totalorder %s252, %s253
    %p267 = scmp.eq.s32.totalorder %s25, 3
    %p268 = por %p266, %p267
    %p270 = scmp.ne.s32.totalorder %s253, %s269
    %p271 = scmp.eq.s32.totalorder %s25, 0
    %p272 = por %p270, %p271
    %s273 = ssub.s32 %s27, %s34
    %p274 = scmp.eq.s32.totalorder %s273, 0
    %s276 = sadd.s32 %s275, 1
    %s277 = scalar_select %p274, %s275, %s276
    %p280 = pneg %p274
    %p281 = scmp.eq.s32.totalorder %s19, 3
    %p282 = por %p280, %p281
    %p283 = scmp.ne.s32.totalorder %s275, %s278
    %p284 = scmp.eq.s32.totalorder %s19, 0
    %p285 = por %p283, %p284
    %p286 = scmp.ne.s32.totalorder %s275, %s278
    %p287 = scmp.eq.s32.totalorder %s24, 3
    %p288 = por %p286, %p287
    %p289 = scmp.ne.s32.totalorder %s278, %s279
    %p290 = scmp.eq.s32.totalorder %s24, 0
    %p291 = por %p289, %p290
    %p292 = scmp.ne.s32.totalorder %s278, %s279
    %p293 = scmp.eq.s32.totalorder %s25, 3
    %p294 = por %p292, %p293
    %p296 = scmp.ne.s32.totalorder %s279, %s295
    %p297 = scmp.eq.s32.totalorder %s25, 0
    %p298 = por %p296, %p297
    %s299 = ssub.s32 %s27, %s34
    %p300 = scmp.eq.s32.totalorder %s299, 0
    %s302 = sadd.s32 %s301, 1
    %s303 = scalar_select %p300, %s301, %s302
    %p306 = pneg %p300
    %p307 = scmp.eq.s32.totalorder %s19, 3
    %p308 = por %p306, %p307
    %p309 = scmp.ne.s32.totalorder %s301, %s304
    %p310 = scmp.eq.s32.totalorder %s19, 0
    %p311 = por %p309, %p310
    %p312 = scmp.ne.s32.totalorder %s301, %s304
    %p313 = scmp.eq.s32.totalorder %s24, 3
    %p314 = por %p312, %p313
    %p315 = scmp.ne.s32.totalorder %s304, %s305
    %p316 = scmp.eq.s32.totalorder %s24, 0
    %p317 = por %p315, %p316
    %p318 = scmp.ne.s32.totalorder %s304, %s305
    %p319 = scmp.eq.s32.totalorder %s25, 3
    %p320 = por %p318, %p319
    %p322 = scmp.ne.s32.totalorder %s305, %s321
    %p323 = scmp.eq.s32.totalorder %s25, 0
    %p324 = por %p322, %p323
    %s325 = ssub.s32 %s27, %s34
    %p326 = scmp.eq.s32.totalorder %s325, 0
    %s328 = sadd.s32 %s327, 1
    %s329 = scalar_select %p326, %s327, %s328
    %p332 = pneg %p326
    %p333 = scmp.eq.s32.totalorder %s19, 3
    %p334 = por %p332, %p333
    %p335 = scmp.ne.s32.totalorder %s327, %s330
    %p336 = scmp.eq.s32.totalorder %s19, 0
    %p337 = por %p335, %p336
    %p338 = scmp.ne.s32.totalorder %s327, %s330
    %p339 = scmp.eq.s32.totalorder %s24, 3
    %p340 = por %p338, %p339
    %p341 = scmp.ne.s32.totalorder %s330, %s331
    %p342 = scmp.eq.s32.totalorder %s24, 0
    %p343 = por %p341, %p342
    %p344 = scmp.ne.s32.totalorder %s330, %s331
    %p345 = scmp.eq.s32.totalorder %s25, 3
    %p346 = por %p344, %p345
    %p348 = scmp.ne.s32.totalorder %s331, %s347
    %p349 = scmp.eq.s32.totalorder %s25, 0
    %p350 = por %p348, %p349
    %s351 = ssub.s32 %s27, %s34
    %p352 = scmp.eq.s32.totalorder %s351, 0
    %s354 = sadd.s32 %s353, 1
    %s355 = scalar_select %p352, %s353, %s354
    %p358 = pneg %p352
    %p359 = scmp.eq.s32.totalorder %s19, 3
    %p360 = por %p358, %p359
    %p361 = scmp.ne.s32.totalorder %s353, %s356
    %p362 = scmp.eq.s32.totalorder %s19, 0
    %p363 = por %p361, %p362
    %p364 = scmp.ne.s32.totalorder %s353, %s356
    %p365 = scmp.eq.s32.totalorder %s24, 3
    %p366 = por %p364, %p365
    %p367 = scmp.ne.s32.totalorder %s356, %s357
    %p368 = scmp.eq.s32.totalorder %s24, 0
    %p369 = por %p367, %p368
    %p370 = scmp.ne.s32.totalorder %s356, %s357
    %p371 = scmp.eq.s32.totalorder %s25, 3
    %p372 = por %p370, %p371
    %p374 = scmp.ne.s32.totalorder %s357, %s373
    %p375 = scmp.eq.s32.totalorder %s25, 0
    %p376 = por %p374, %p375
    %s377 = ssub.s32 %s26, %s38
    %p378 = scmp.eq.s32.totalorder %s377, 0
    %s380 = sadd.s32 %s379, 1
    %s381 = scalar_select %p378, %s379, %s380
    %p384 = pneg %p378
    %p385 = scmp.eq.s32.totalorder %s19, 3
    %p386 = por %p384, %p385
    %p387 = scmp.ne.s32.totalorder %s379, %s382
    %p388 = scmp.eq.s32.totalorder %s19, 0
    %p389 = por %p387, %p388
    %p390 = scmp.ne.s32.totalorder %s379, %s382
    %p391 = scmp.eq.s32.totalorder %s24, 3
    %p392 = por %p390, %p391
    %p393 = scmp.ne.s32.totalorder %s382, %s383
    %p394 = scmp.eq.s32.totalorder %s24, 0
    %p395 = por %p393, %p394
    %p396 = scmp.ne.s32.totalorder %s382, %s383
    %p397 = scmp.eq.s32.totalorder %s25, 3
    %p398 = por %p396, %p397
    %p400 = scmp.ne.s32.totalorder %s383, %s399
    %p401 = scmp.eq.s32.totalorder %s25, 0
    %p402 = por %p400, %p401
    %p403 = scmp.le.s32.totalorder 1, %s19
    %p404 = scmp.lt.s32.totalorder %s19, 5
    %p405 = pnand %p403, %p404
    %p406 = pneg %p405
    // Predicated region
    $region9: #{vit_forward.4} parent=5 // pred_check
      _
    $region10: #{vit_forward.4} parent=5 // pred_check_branch
      %408 = sbr.rel (%p405) target = $region12
    $region11: #{vit_forward.4} parent=5 // pred_region
      %s409 = ssub.s32 %s19, 1
    $region12: #{vit_forward.4} parent=5 // pred_fallthru
      _
    %p410 = scmp.lt.s32.totalorder %s19, 4
    // Predicated region
    $region13: #{vit_forward.4} parent=5 // pred_check
      %p411 = pneg %p410
    $region14: #{vit_forward.4} parent=5 // pred_check_branch
      %413 = sbr.rel (%p411) target = $region16
    $region15: #{vit_forward.4} parent=5 // pred_region
      // Predicated region
      $region17: #{vit_forward.4} parent=15 // pred_check
        %p414 = pneg %p51
      $region18: #{vit_forward.4} parent=15 // pred_check_branch
        %416 = sbr.rel (%p414) target = $region20
      $region19: #{vit_forward.4} parent=15 // pred_region
        %p417 = scmp.lt.s32.totalorder %s26, 1
        %s418 = scalar_select %p417, %s26, 1
        %s419 = smul.addr %s418, 3
        %s420 = smul.addr %s419, 8
        %s421 = scalar_lea.vmem %s0, %s420
      $region20: #{vit_forward.4} parent=15 // pred_fallthru
        _
      // Predicated region
      $region21: #{vit_forward.4} parent=15 // pred_check
        %p422 = pneg %p77
      $region22: #{vit_forward.4} parent=15 // pred_check_branch
        %424 = sbr.rel (%p422) target = $region24
      $region23: #{vit_forward.4} parent=15 // pred_region
        %p425 = scmp.lt.s32.totalorder %s27, 1
        %s426 = scalar_select %p425, %s27, 1
        %s427 = scalar_lea.vmem %s1, %s426
      $region24: #{vit_forward.4} parent=15 // pred_fallthru
        _
      // Predicated region
      $region25: #{vit_forward.4} parent=15 // pred_check
        %p428 = pneg %p103
      $region26: #{vit_forward.4} parent=15 // pred_check_branch
        %430 = sbr.rel (%p428) target = $region28
      $region27: #{vit_forward.4} parent=15 // pred_region
        %p431 = scmp.lt.s32.totalorder %s27, 1
        %s432 = scalar_select %p431, %s27, 1
        %s433 = scalar_lea.vmem %s2, %s432
      $region28: #{vit_forward.4} parent=15 // pred_fallthru
        _
      // Predicated region
      $region29: #{vit_forward.4} parent=15 // pred_check
        %p434 = pneg %p129
      $region30: #{vit_forward.4} parent=15 // pred_check_branch
        %436 = sbr.rel (%p434) target = $region32
      $region31: #{vit_forward.4} parent=15 // pred_region
        %p437 = scmp.lt.s32.totalorder %s27, 1
        %s438 = scalar_select %p437, %s27, 1
        %s439 = smul.addr %s438, 4
        %s440 = smul.addr %s439, 4
        %s441 = scalar_lea.vmem %s3, %s440
      $region32: #{vit_forward.4} parent=15 // pred_fallthru
        _
      // Predicated region
      $region33: #{vit_forward.4} parent=15 // pred_check
        %p442 = pneg %p155
      $region34: #{vit_forward.4} parent=15 // pred_check_branch
        %444 = sbr.rel (%p442) target = $region36
      $region35: #{vit_forward.4} parent=15 // pred_region
        %p445 = scmp.lt.s32.totalorder %s27, 1
        %s446 = scalar_select %p445, %s27, 1
        %s447 = scalar_lea.vmem %s4, %s446
      $region36: #{vit_forward.4} parent=15 // pred_fallthru
        _
      // Predicated region
      $region37: #{vit_forward.4} parent=15 // pred_check
        %p448 = pneg %p181
      $region38: #{vit_forward.4} parent=15 // pred_check_branch
        %450 = sbr.rel (%p448) target = $region40
      $region39: #{vit_forward.4} parent=15 // pred_region
        %p451 = scmp.lt.s32.totalorder %s27, 1
        %s452 = scalar_select %p451, %s27, 1
        %s453 = smul.addr %s452, 4
        %s454 = smul.addr %s453, 4
        %s455 = scalar_lea.vmem %s5, %s454
      $region40: #{vit_forward.4} parent=15 // pred_fallthru
        _
      // Predicated region
      $region41: #{vit_forward.4} parent=15 // pred_check
        %p456 = pneg %p207
      $region42: #{vit_forward.4} parent=15 // pred_check_branch
        %458 = sbr.rel (%p456) target = $region44
      $region43: #{vit_forward.4} parent=15 // pred_region
        %p459 = scmp.lt.s32.totalorder %s27, 1
        %s460 = scalar_select %p459, %s27, 1
        %s461 = scalar_lea.vmem %s6, %s460
      $region44: #{vit_forward.4} parent=15 // pred_fallthru
        _
      // Predicated region
      $region45: #{vit_forward.4} parent=15 // pred_check
        %p462 = pneg %p233
      $region46: #{vit_forward.4} parent=15 // pred_check_branch
        %464 = sbr.rel (%p462) target = $region48
      $region47: #{vit_forward.4} parent=15 // pred_region
        %p465 = scmp.lt.s32.totalorder %s27, 1
        %s466 = scalar_select %p465, %s27, 1
        %s467 = scalar_lea.vmem %s7, %s466
      $region48: #{vit_forward.4} parent=15 // pred_fallthru
        _
      // Predicated region
      $region49: #{vit_forward.4} parent=15 // pred_check
        %p468 = pneg %p259
      $region50: #{vit_forward.4} parent=15 // pred_check_branch
        %470 = sbr.rel (%p468) target = $region52
      $region51: #{vit_forward.4} parent=15 // pred_region
        %p471 = scmp.lt.s32.totalorder %s27, 1
        %s472 = scalar_select %p471, %s27, 1
        %s473 = scalar_lea.vmem %s8, %s472
      $region52: #{vit_forward.4} parent=15 // pred_fallthru
        _
      // Predicated region
      $region53: #{vit_forward.4} parent=15 // pred_check
        %p474 = pneg %p285
      $region54: #{vit_forward.4} parent=15 // pred_check_branch
        %476 = sbr.rel (%p474) target = $region56
      $region55: #{vit_forward.4} parent=15 // pred_region
        %p477 = scmp.lt.s32.totalorder %s27, 1
        %s478 = scalar_select %p477, %s27, 1
        %s479 = smul.addr %s478, 4
        %s480 = smul.addr %s479, 4
        %s481 = scalar_lea.vmem %s9, %s480
      $region56: #{vit_forward.4} parent=15 // pred_fallthru
        _
      // Predicated region
      $region57: #{vit_forward.4} parent=15 // pred_check
        %p482 = pneg %p311
      $region58: #{vit_forward.4} parent=15 // pred_check_branch
        %484 = sbr.rel (%p482) target = $region60
      $region59: #{vit_forward.4} parent=15 // pred_region
        %p485 = scmp.lt.s32.totalorder %s27, 1
        %s486 = scalar_select %p485, %s27, 1
        %s487 = scalar_lea.vmem %s10, %s486
      $region60: #{vit_forward.4} parent=15 // pred_fallthru
        _
      // Predicated region
      $region61: #{vit_forward.4} parent=15 // pred_check
        %p488 = pneg %p337
      $region62: #{vit_forward.4} parent=15 // pred_check_branch
        %490 = sbr.rel (%p488) target = $region64
      $region63: #{vit_forward.4} parent=15 // pred_region
        %p491 = scmp.lt.s32.totalorder %s27, 1
        %s492 = scalar_select %p491, %s27, 1
        %s493 = smul.addr %s492, 16
        %s494 = smul.addr %s493, 4
        %s495 = scalar_lea.vmem %s11, %s494
      $region64: #{vit_forward.4} parent=15 // pred_fallthru
        _
      // Predicated region
      $region65: #{vit_forward.4} parent=15 // pred_check
        %p496 = pneg %p363
      $region66: #{vit_forward.4} parent=15 // pred_check_branch
        %498 = sbr.rel (%p496) target = $region68
      $region67: #{vit_forward.4} parent=15 // pred_region
        %p499 = scmp.lt.s32.totalorder %s27, 1
        %s500 = scalar_select %p499, %s27, 1
        %s501 = scalar_lea.vmem %s12, %s500
      $region68: #{vit_forward.4} parent=15 // pred_fallthru
        _
    $region16: #{vit_forward.4} parent=5 // pred_fallthru
      _
    %p502 = scmp.le.s32.totalorder 1, %s19
    %p503 = scmp.lt.s32.totalorder %s19, 5
    %p504 = pnand %p502, %p503
    %p505 = pneg %p504
    // Predicated region
    $region69: #{vit_forward.4} parent=5 // pred_check
      _
    $region70: #{vit_forward.4} parent=5 // pred_check_branch
      %507 = sbr.rel (%p504) target = $region72
    $region71: #{vit_forward.4} parent=5 // pred_region
      %s508 = ssub.s32 %s19, 1
      %p509 = scmp.lt.s32.totalorder %s28, 1
      %s510 = scalar_select %p509, %s28, 1
      %s511 = smul.addr %s510, 3
      %s512 = smul.addr %s511, 8
      %s513 = scalar_lea.vmem %s0, %s512
      %p514 = pneg %p57
      %p515 = pneg %p54
      %p516 = scmp.lt.s32.totalorder %s29, 1
      %s517 = scalar_select %p516, %s29, 1
      %s518 = scalar_lea.vmem %s1, %s517
      %p519 = pneg %p83
      %p520 = pneg %p80
      %p521 = scmp.lt.s32.totalorder %s29, 1
      %s522 = scalar_select %p521, %s29, 1
      %s523 = scalar_lea.vmem %s2, %s522
      %p524 = pneg %p109
      %p525 = pneg %p106
      %p526 = scmp.lt.s32.totalorder %s29, 1
      %s527 = scalar_select %p526, %s29, 1
      %s528 = smul.addr %s527, 4
      %s529 = smul.addr %s528, 4
      %s530 = scalar_lea.vmem %s3, %s529
      %p531 = pneg %p135
      %p532 = pneg %p132
      %p533 = scmp.lt.s32.totalorder %s29, 1
      %s534 = scalar_select %p533, %s29, 1
      %s535 = scalar_lea.vmem %s4, %s534
      %p536 = pneg %p161
      %p537 = pneg %p158
      %p538 = scmp.lt.s32.totalorder %s29, 1
      %s539 = scalar_select %p538, %s29, 1
      %s540 = smul.addr %s539, 4
      %s541 = smul.addr %s540, 4
      %s542 = scalar_lea.vmem %s5, %s541
      %p543 = pneg %p187
      %p544 = pneg %p184
      %p545 = scmp.lt.s32.totalorder %s29, 1
      %s546 = scalar_select %p545, %s29, 1
      %s547 = scalar_lea.vmem %s6, %s546
      %p548 = pneg %p213
      %p549 = pneg %p210
      %p550 = scmp.lt.s32.totalorder %s29, 1
      %s551 = scalar_select %p550, %s29, 1
      %s552 = scalar_lea.vmem %s7, %s551
      %p553 = pneg %p239
      %p554 = pneg %p236
      %p555 = scmp.lt.s32.totalorder %s29, 1
      %s556 = scalar_select %p555, %s29, 1
      %s557 = scalar_lea.vmem %s8, %s556
      %p558 = pneg %p265
      %p559 = pneg %p262
      %p560 = scmp.lt.s32.totalorder %s29, 1
      %s561 = scalar_select %p560, %s29, 1
      %s562 = smul.addr %s561, 4
      %s563 = smul.addr %s562, 4
      %s564 = scalar_lea.vmem %s9, %s563
      %p565 = pneg %p291
      %p566 = pneg %p288
      %p567 = scmp.lt.s32.totalorder %s29, 1
      %s568 = scalar_select %p567, %s29, 1
      %s569 = scalar_lea.vmem %s10, %s568
      %p570 = pneg %p317
      %p571 = pneg %p314
      %p572 = scmp.lt.s32.totalorder %s29, 1
      %s573 = scalar_select %p572, %s29, 1
      %s574 = smul.addr %s573, 16
      %s575 = smul.addr %s574, 4
      %s576 = scalar_lea.vmem %s11, %s575
      %p577 = pneg %p343
      %p578 = pneg %p340
      %p579 = scmp.lt.s32.totalorder %s29, 1
      %s580 = scalar_select %p579, %s29, 1
      %s581 = scalar_lea.vmem %s12, %s580
      %p582 = pneg %p369
      %p583 = pneg %p366
      %p584 = pneg %p395
      %p585 = pneg %p392
      %p586 = scmp.lt.s32.totalorder %s28, 1
      %s587 = scalar_select %p586, %s28, 1
      %s588 = smul.addr %s587, 3
      %s589 = smul.addr %s588, 8
      %s590 = scalar_lea.vmem %s13, %s589
      %p591 = scmp.lt.s32.totalorder %s28, 1
      %s592 = scalar_select %p591, %s28, 1
      %s593 = smul.addr %s592, 3
      %s594 = smul.addr %s593, 8
      %s595 = scalar_lea.vmem %s0, %s594
      %p596 = scmp.lt.s32.totalorder %s29, 1
      %s597 = scalar_select %p596, %s29, 1
      %s598 = scalar_lea.vmem %s1, %s597
      %p599 = scmp.lt.s32.totalorder %s29, 1
      %s600 = scalar_select %p599, %s29, 1
      %s601 = scalar_lea.vmem %s2, %s600
      %p602 = scmp.lt.s32.totalorder %s29, 1
      %s603 = scalar_select %p602, %s29, 1
      %s604 = smul.addr %s603, 4
      %s605 = smul.addr %s604, 4
      %s606 = scalar_lea.vmem %s3, %s605
      %p607 = scmp.lt.s32.totalorder %s29, 1
      %s608 = scalar_select %p607, %s29, 1
      %s609 = scalar_lea.vmem %s4, %s608
      %p610 = scmp.lt.s32.totalorder %s29, 1
      %s611 = scalar_select %p610, %s29, 1
      %s612 = smul.addr %s611, 4
      %s613 = smul.addr %s612, 4
      %s614 = scalar_lea.vmem %s5, %s613
      %p615 = scmp.lt.s32.totalorder %s29, 1
      %s616 = scalar_select %p615, %s29, 1
      %s617 = scalar_lea.vmem %s6, %s616
      %p618 = scmp.lt.s32.totalorder %s29, 1
      %s619 = scalar_select %p618, %s29, 1
      %s620 = scalar_lea.vmem %s7, %s619
      %p621 = scmp.lt.s32.totalorder %s29, 1
      %s622 = scalar_select %p621, %s29, 1
      %s623 = scalar_lea.vmem %s8, %s622
      %p624 = scmp.lt.s32.totalorder %s29, 1
      %s625 = scalar_select %p624, %s29, 1
      %s626 = smul.addr %s625, 4
      %s627 = smul.addr %s626, 4
      %s628 = scalar_lea.vmem %s9, %s627
      %p629 = scmp.lt.s32.totalorder %s29, 1
      %s630 = scalar_select %p629, %s29, 1
      %s631 = scalar_lea.vmem %s10, %s630
      %p632 = scmp.lt.s32.totalorder %s29, 1
      %s633 = scalar_select %p632, %s29, 1
      %s634 = smul.addr %s633, 16
      %s635 = smul.addr %s634, 4
      %s636 = scalar_lea.vmem %s11, %s635
      %p637 = scmp.lt.s32.totalorder %s29, 1
      %s638 = scalar_select %p637, %s29, 1
      %s639 = scalar_lea.vmem %s12, %s638
      %p640 = scmp.lt.s32.totalorder %s28, 1
      %s641 = scalar_select %p640, %s28, 1
      %s642 = smul.addr %s641, 3
      %s643 = smul.addr %s642, 8
      %s644 = scalar_lea.vmem %s13, %s643
      %p646 = scmp.eq.s32.totalorder %s29, 0
      // Predicated region
      $region73: #{vit_forward.4} parent=71 // pred_check
        %p647 = pneg %p646
      $region74: #{vit_forward.4} parent=71 // pred_check_branch
        %649 = sbr.rel (%p647) target = $region76
      $region75: #{vit_forward.4} parent=71 // pred_region
        %v650 = vld [vmem:[%s595] sm:$0xff]
        %v651 = vld [vmem:[%s595 + $0x8] sm:$0xff]
        %v652 = vld [vmem:[%s595 + $0x10] sm:$0x1]
        %vm653 = vcmask 261120
        %654 = vst.msk [vmem:[%s644] sm:$0xff] %vm653, %v650
        %655 = vst.msk [vmem:[%s644 + $0x8] sm:$0xff] %vm653, %v651
        %vm656 = vcmask 253952
        %657 = vst.msk [vmem:[%s644 + $0x10] sm:$0x1] %vm656, %v652
      $region76: #{vit_forward.4} parent=71 // pred_fallthru
        _
      %v658 = vld [vmem:[%s644] sm:$0xff]
      %v659 = vld [vmem:[%s644 + $0x8] sm:$0xff]
      %v660 = vld [vmem:[%s644 + $0x10] sm:$0x1]
      %v661 = vld [vmem:[%s598] sm:$0x1]
      %v662 = vld [vmem:[%s601] sm:$0x1]
      %vm663 = vcmask 261120
      %v664 = vsel %vm663, %v658, 0.0
      %665 = vadd.xlane.f32.xlu0 %v664
      %v666 = vpop.xlane.xlu0 %665
      %v667 = vsel %vm663, %v659, 0.0
      %668 = vadd.xlane.f32.xlu0 %v667
      %v669 = vpop.xlane.xlu0 %668
      %vm670 = vcmask 253952
      %v671 = vsel %vm670, %v660, 0.0
      %672 = vadd.xlane.f32.xlu0 %v671
      %v673 = vpop.xlane.xlu0 %672
      %v674 = vrcp.pop 32.0
      %v675 = vmul.f32 %v666, %v674
      %v676 = vmul.f32 %v669, %v674
      %v677 = vmul.f32 %v673, %v674
      %v678 = vsub.f32 %v658, %v675
      %v679 = vsub.f32 %v659, %v676
      %v680 = vsub.f32 %v660, %v677
      %v681 = vmul.f32 %v678, %v678
      %v682 = vmul.f32 %v679, %v679
      %v683 = vmul.f32 %v680, %v680
      %v684 = vsel %vm663, %v681, 0.0
      %685 = vadd.xlane.f32.xlu0 %v684
      %v686 = vpop.xlane.xlu0 %685
      %v687 = vsel %vm663, %v682, 0.0
      %688 = vadd.xlane.f32.xlu0 %v687
      %v689 = vpop.xlane.xlu0 %688
      %v690 = vsel %vm670, %v683, 0.0
      %691 = vadd.xlane.f32.xlu0 %v690
      %v692 = vpop.xlane.xlu0 %691
      %v693 = vmul.f32 %v686, %v674
      %v694 = vmul.f32 %v689, %v674
      %v695 = vmul.f32 %v692, %v674
      %v696 = vadd.f32 %v693, 1e-05
      %v697 = vadd.f32 %v694, 1e-05
      %v698 = vadd.f32 %v695, 1e-05
      %v699 = vrsqrt.pop %v696
      %v700 = vrsqrt.pop %v697
      %v701 = vrsqrt.pop %v698
      %v702 = vmul.f32 %v678, %v699
      %v703 = vmul.f32 %v679, %v700
      %v704 = vmul.f32 %v680, %v701
      %v706 = vlaneseq
      %v707 = vshrl.u32 %v706, 7
      %v708 = vsub.s32 0, %v707
      %v709 = vrot.slane %v661, %v708
      %v711 = vmul.f32 %v702, %v709
      %v712 = vmul.f32 %v703, %v709
      %v713 = vmul.f32 %v704, %v709
      %v715 = vlaneseq
      %v716 = vshrl.u32 %v715, 7
      %v717 = vsub.s32 0, %v716
      %v718 = vrot.slane %v662, %v717
      %v720 = vadd.f32 %v711, %v718
      %v721 = vadd.f32 %v712, %v718
      %v722 = vadd.f32 %v713, %v718
      %v723 = vpack.c.bf16 %v721, %v720
      %v724 = vpack.c.bf16 %v722, %v722
      %v725 = vld [vmem:[%s606] sm:$0xf]
      %v726 = vld [vmem:[%s606 + $0x4] sm:$0xf]
      %v727 = vld [vmem:[%s606 + $0x8] sm:$0xf]
      %v728 = vld [vmem:[%s606 + $0xc] sm:$0xf]
      %v729 = vld [vmem:[%s609] sm:$0x1]
      %v731 = vlaneseq
      %v732 = vshrl.u32 %v731, 7
      %v733 = vsub.s32 0, %v732
      %v734 = vrot.slane %v729, %v733
      %v740 = vunpack.c.l.b16 %v725
      %v741 = vunpack.c.l.b16 %v726
      %v742 = vunpack.c.l.b16 %v727
      %v743 = vunpack.c.l.b16 %v728
      %v744 = vpack.c.b16 %v741, %v740
      %v745 = vpack.c.b16 %v743, %v742
      %v749 = vsel %vm663, %v723, 0
      %v752 = vsel %vm663, %v724, 0
      %754 = vmatprep.subr.bf16.mxu0 0
      %755 = vmatpush1.bf16.msra.mxu0 %v744
      %756 = vmatprep.subr.bf16.mxu0 0
      %757 = vmatpush1.bf16.msra.mxu0 %v745
      %758 = vmatprep.subr.bf16.mxu0 0
      %759 = vmatpush1.bf16.msra.mxu0 0
      %760 = vmatprep.subr.bf16.mxu0 0
      %761 = vmatpush1.bf16.msra.mxu0 0
      %762 = vmatprep.subr.bf16.mxu0 0
      %763 = vmatpush1.bf16.msra.mxu0 0
      %764 = vmatprep.subr.bf16.mxu0 0
      %765 = vmatpush1.bf16.msra.mxu0 0
      %766 = vmatprep.subr.bf16.mxu0 0
      %767 = vmatpush1.bf16.msra.mxu0 0
      %768 = vmatprep.subr.bf16.mxu0 0
      %769 = vmatpush1.bf16.msra.mxu0 0
      %770 = vmatprep.subr.bf16.mxu0 0
      %771 = vmatpush1.bf16.msra.mxu0 0
      %772 = vmatprep.subr.bf16.mxu0 0
      %773 = vmatpush1.bf16.msra.mxu0 0
      %774 = vmatprep.subr.bf16.mxu0 0
      %775 = vmatpush1.bf16.msra.mxu0 0
      %776 = vmatprep.subr.bf16.mxu0 0
      %777 = vmatpush1.bf16.msra.mxu0 0
      %778 = vmatprep.subr.bf16.mxu0 0
      %779 = vmatpush1.bf16.msra.mxu0 0
      %780 = vmatprep.subr.bf16.mxu0 0
      %781 = vmatpush1.bf16.msra.mxu0 0
      %782 = vmatprep.subr.bf16.mxu0 0
      %783 = vmatpush1.bf16.msra.mxu0 0
      %784 = vmatprep.subr.bf16.mxu0 0
      %785 = vmatpush1.bf16.msra.mxu0 0
      %786 = vmatprep.mubr.bf16.mxu0 0
      %787 = vmatmul.mubr.bf16.gmra.mrb[0].mxu0 %v749
      %v788 = vpop.f32.mrb[0].mxu0
      %v789 = vadd.f32 %v734, %v788
      %v790 = vpop.f32.mrb[0].mxu0
      %v791 = vpop.f32.mrb[0].mxu0
      %v792 = vadd.f32 %v734, %v791
      %v793 = vpop.f32.mrb[0].mxu0
      %794 = vmatprep.mubr.bf16.mxu0 0
      %795 = vmatmul.mubr.bf16.gmra.mrb[0].mxu0 %v752
      %v796 = vpop.f32.mrb[0].mxu0
      %v797 = vadd.f32 %v734, %v796
      %v798 = vpop.f32.mrb[0].mxu0
      %v799 = vpop.f32.mrb[0].mxu0
      %v800 = vpop.f32.mrb[0].mxu0
      %801 = vdwg.mxu0
      %805 = vrot.lane.b32.xlu0 %v789, 120
      %v806 = vpop.permute.xlu0 %805
      %807 = vrot.lane.b32.xlu0 %v792, 120
      %v808 = vpop.permute.xlu0 %807
      %809 = vrot.lane.b32.xlu0 %v797, 120
      %v810 = vpop.permute.xlu0 %809
      %814 = vrot.lane.b32.xlu0 %v789, 112
      %v815 = vpop.permute.xlu0 %814
      %816 = vrot.lane.b32.xlu0 %v792, 112
      %v817 = vpop.permute.xlu0 %816
      %818 = vrot.lane.b32.xlu0 %v797, 112
      %v819 = vpop.permute.xlu0 %818
      %823 = vrot.lane.b32.xlu0 %v789, 104
      %v824 = vpop.permute.xlu0 %823
      %825 = vrot.lane.b32.xlu0 %v792, 104
      %v826 = vpop.permute.xlu0 %825
      %827 = vrot.lane.b32.xlu0 %v797, 104
      %v828 = vpop.permute.xlu0 %827
      %v832 = vpack.c.bf16 %v792, %v789
      %v833 = vpack.c.bf16 %v797, %v797
      %v834 = vpack.c.bf16 %v808, %v806
      %v835 = vpack.c.bf16 %v810, %v810
      %v836 = vpack.c.bf16 %v817, %v815
      %v837 = vpack.c.bf16 %v819, %v819
      %v838 = vpack.c.bf16 %v826, %v824
      %v839 = vpack.c.bf16 %v828, %v828
      %842 = vrot.lane.b32.xlu0 %v832, 96
      %v843 = vpop.permute.xlu0 %842
      %844 = vrot.lane.b32.xlu0 %v833, 96
      %v845 = vpop.permute.xlu0 %844
      %vm846 = vcmask 64512
      %v848 = vsel %vm846, %v832, 0
      %v851 = vsel %vm846, %v833, 0
      %v854 = vsel %vm846, %v843, 0
      %v857 = vsel %vm846, %v845, 0
      %859 = vmatprep.subr.bf16.mxu0 0
      %860 = vmatpush1.bf16.xpose.msra.mxu0 %v854
      %861 = vmatprep.subr.bf16.mxu0 0
      %862 = vmatpush1.bf16.xpose.msra.mxu0 %v857
      %863 = vmatprep.subr.bf16.mxu0 0
      %864 = vmatpush1.bf16.xpose.msra.mxu0 0
      %865 = vmatprep.subr.bf16.mxu0 0
      %866 = vmatpush1.bf16.xpose.msra.mxu0 0
      %867 = vmatprep.subr.bf16.mxu0 0
      %868 = vmatpush1.bf16.xpose.msra.mxu0 0
      %869 = vmatprep.subr.bf16.mxu0 0
      %870 = vmatpush1.bf16.xpose.msra.mxu0 0
      %871 = vmatprep.subr.bf16.mxu0 0
      %872 = vmatpush1.bf16.xpose.msra.mxu0 0
      %873 = vmatprep.subr.bf16.mxu0 0
      %874 = vmatpush1.bf16.xpose.msra.mxu0 0
      %875 = vmatprep.subr.bf16.mxu0 0
      %876 = vmatpush1.bf16.xpose.msra.mxu0 0
      %877 = vmatprep.subr.bf16.mxu0 0
      %878 = vmatpush1.bf16.xpose.msra.mxu0 0
      %879 = vmatprep.subr.bf16.mxu0 0
      %880 = vmatpush1.bf16.xpose.msra.mxu0 0
      %881 = vmatprep.subr.bf16.mxu0 0
      %882 = vmatpush1.bf16.xpose.msra.mxu0 0
      %883 = vmatprep.subr.bf16.mxu0 0
      %884 = vmatpush1.bf16.xpose.msra.mxu0 0
      %885 = vmatprep.subr.bf16.mxu0 0
      %886 = vmatpush1.bf16.xpose.msra.mxu0 0
      %887 = vmatprep.subr.bf16.mxu0 0
      %888 = vmatpush1.bf16.xpose.msra.mxu0 0
      %889 = vmatprep.subr.bf16.mxu0 0
      %890 = vmatpush1.bf16.xpose.msra.mxu0 0
      %891 = vmatprep.mubr.bf16.mxu0 0
      %892 = vmatmul.mubr.bf16.gmra.mrb[0].mxu0 %v848
      %v893 = vpop.f32.mrb[0].mxu0
      %v894 = vadd.f32 0.0, %v893
      %v895 = vpop.f32.mrb[0].mxu0
      %v896 = vpop.f32.mrb[0].mxu0
      %v897 = vadd.f32 0.0, %v896
      %v898 = vpop.f32.mrb[0].mxu0
      %899 = vmatprep.mubr.bf16.mxu0 0
      %900 = vmatmul.mubr.bf16.gmra.mrb[0].mxu0 %v851
      %v901 = vpop.f32.mrb[0].mxu0
      %v902 = vadd.f32 0.0, %v901
      %v903 = vpop.f32.mrb[0].mxu0
      %v904 = vpop.f32.mrb[0].mxu0
      %v905 = vpop.f32.mrb[0].mxu0
      %906 = vdwg.mxu0
      %909 = vrot.lane.b32.xlu0 %v834, 96
      %v910 = vpop.permute.xlu0 %909
      %911 = vrot.lane.b32.xlu0 %v835, 96
      %v912 = vpop.permute.xlu0 %911
      %v914 = vsel %vm846, %v834, 0
      %v917 = vsel %vm846, %v835, 0
      %v920 = vsel %vm846, %v910, 0
      %v923 = vsel %vm846, %v912, 0
      %925 = vmatprep.subr.bf16.mxu0 0
      %926 = vmatpush1.bf16.xpose.msra.mxu0 %v920
      %927 = vmatprep.subr.bf16.mxu0 0
      %928 = vmatpush1.bf16.xpose.msra.mxu0 %v923
      %929 = vmatprep.subr.bf16.mxu0 0
      %930 = vmatpush1.bf16.xpose.msra.mxu0 0
      %931 = vmatprep.subr.bf16.mxu0 0
      %932 = vmatpush1.bf16.xpose.msra.mxu0 0
      %933 = vmatprep.subr.bf16.mxu0 0
      %934 = vmatpush1.bf16.xpose.msra.mxu0 0
      %935 = vmatprep.subr.bf16.mxu0 0
      %936 = vmatpush1.bf16.xpose.msra.mxu0 0
      %937 = vmatprep.subr.bf16.mxu0 0
      %938 = vmatpush1.bf16.xpose.msra.mxu0 0
      %939 = vmatprep.subr.bf16.mxu0 0
      %940 = vmatpush1.bf16.xpose.msra.mxu0 0
      %941 = vmatprep.subr.bf16.mxu0 0
      %942 = vmatpush1.bf16.xpose.msra.mxu0 0
      %943 = vmatprep.subr.bf16.mxu0 0
      %944 = vmatpush1.bf16.xpose.msra.mxu0 0
      %945 = vmatprep.subr.bf16.mxu0 0
      %946 = vmatpush1.bf16.xpose.msra.mxu0 0
      %947 = vmatprep.subr.bf16.mxu0 0
      %948 = vmatpush1.bf16.xpose.msra.mxu0 0
      %949 = vmatprep.subr.bf16.mxu0 0
      %950 = vmatpush1.bf16.xpose.msra.mxu0 0
      %951 = vmatprep.subr.bf16.mxu0 0
      %952 = vmatpush1.bf16.xpose.msra.mxu0 0
      %953 = vmatprep.subr.bf16.mxu0 0
      %954 = vmatpush1.bf16.xpose.msra.mxu0 0
      %955 = vmatprep.subr.bf16.mxu0 0
      %956 = vmatpush1.bf16.xpose.msra.mxu0 0
      %957 = vmatprep.mubr.bf16.mxu0 0
      %958 = vmatmul.mubr.bf16.gmra.mrb[0].mxu0 %v914
      %v959 = vpop.f32.mrb[0].mxu0
      %v960 = vadd.f32 0.0, %v959
      %v961 = vpop.f32.mrb[0].mxu0
      %v962 = vpop.f32.mrb[0].mxu0
      %v963 = vadd.f32 0.0, %v962
      %v964 = vpop.f32.mrb[0].mxu0
      %965 = vmatprep.mubr.bf16.mxu0 0
      %966 = vmatmul.mubr.bf16.gmra.mrb[0].mxu0 %v917
      %v967 = vpop.f32.mrb[0].mxu0
      %v968 = vadd.f32 0.0, %v967
      %v969 = vpop.f32.mrb[0].mxu0
      %v970 = vpop.f32.mrb[0].mxu0
      %v971 = vpop.f32.mrb[0].mxu0
      %972 = vdwg.mxu0
      %975 = vrot.lane.b32.xlu0 %v836, 96
      %v976 = vpop.permute.xlu0 %975
      %977 = vrot.lane.b32.xlu0 %v837, 96
      %v978 = vpop.permute.xlu0 %977
      %v980 = vsel %vm846, %v836, 0
      %v983 = vsel %vm846, %v837, 0
      %v986 = vsel %vm846, %v976, 0
      %v989 = vsel %vm846, %v978, 0
      %991 = vmatprep.subr.bf16.mxu0 0
      %992 = vmatpush1.bf16.xpose.msra.mxu0 %v986
      %993 = vmatprep.subr.bf16.mxu0 0
      %994 = vmatpush1.bf16.xpose.msra.mxu0 %v989
      %995 = vmatprep.subr.bf16.mxu0 0
      %996 = vmatpush1.bf16.xpose.msra.mxu0 0
      %997 = vmatprep.subr.bf16.mxu0 0
      %998 = vmatpush1.bf16.xpose.msra.mxu0 0
      %999 = vmatprep.subr.bf16.mxu0 0
      %1000 = vmatpush1.bf16.xpose.msra.mxu0 0
      %1001 = vmatprep.subr.bf16.mxu0 0
      %1002 = vmatpush1.bf16.xpose.msra.mxu0 0
      %1003 = vmatprep.subr.bf16.mxu0 0
      %1004 = vmatpush1.bf16.xpose.msra.mxu0 0
      %1005 = vmatprep.subr.bf16.mxu0 0
      %1006 = vmatpush1.bf16.xpose.msra.mxu0 0
      %1007 = vmatprep.subr.bf16.mxu0 0
      %1008 = vmatpush1.bf16.xpose.msra.mxu0 0
      %1009 = vmatprep.subr.bf16.mxu0 0
      %1010 = vmatpush1.bf16.xpose.msra.mxu0 0
      %1011 = vmatprep.subr.bf16.mxu0 0
      %1012 = vmatpush1.bf16.xpose.msra.mxu0 0
      %1013 = vmatprep.subr.bf16.mxu0 0
      %1014 = vmatpush1.bf16.xpose.msra.mxu0 0
      %1015 = vmatprep.subr.bf16.mxu0 0
      %1016 = vmatpush1.bf16.xpose.msra.mxu0 0
      %1017 = vmatprep.subr.bf16.mxu0 0
      %1018 = vmatpush1.bf16.xpose.msra.mxu0 0
      %1019 = vmatprep.subr.bf16.mxu0 0
      %1020 = vmatpush1.bf16.xpose.msra.mxu0 0
      %1021 = vmatprep.subr.bf16.mxu0 0
      %1022 = vmatpush1.bf16.xpose.msra.mxu0 0
      %1023 = vmatprep.mubr.bf16.mxu0 0
      %1024 = vmatmul.mubr.bf16.gmra.mrb[0].mxu0 %v980
      %v1025 = vpop.f32.mrb[0].mxu0
      %v1026 = vadd.f32 0.0, %v1025
      %v1027 = vpop.f32.mrb[0].mxu0
      %v1028 = vpop.f32.mrb[0].mxu0
      %v1029 = vadd.f32 0.0, %v1028
      %v1030 = vpop.f32.mrb[0].mxu0
      %1031 = vmatprep.mubr.bf16.mxu0 0
      %1032 = vmatmul.mubr.bf16.gmra.mrb[0].mxu0 %v983
      %v1033 = vpop.f32.mrb[0].mxu0
      %v1034 = vadd.f32 0.0, %v1033
      %v1035 = vpop.f32.mrb[0].mxu0
      %v1036 = vpop.f32.mrb[0].mxu0
      %v1037 = vpop.f32.mrb[0].mxu0
      %1038 = vdwg.mxu0
      %1041 = vrot.lane.b32.xlu0 %v838, 96
      %v1042 = vpop.permute.xlu0 %1041
      %1043 = vrot.lane.b32.xlu0 %v839, 96
      %v1044 = vpop.permute.xlu0 %1043
      %v1046 = vsel %vm846, %v838, 0
      %v1049 = vsel %vm846, %v839, 0
      %v1052 = vsel %vm846, %v1042, 0
      %v1055 = vsel %vm846, %v1044, 0
      %1057 = vmatprep.subr.bf16.mxu0 0
      %1058 = vmatpush1.bf16.xpose.msra.mxu0 %v1052
      %1059 = vmatprep.subr.bf16.mxu0 0
      %1060 = vmatpush1.bf16.xpose.msra.mxu0 %v1055
      %1061 = vmatprep.subr.bf16.mxu0 0
      %1062 = vmatpush1.bf16.xpose.msra.mxu0 0
      %1063 = vmatprep.subr.bf16.mxu0 0
      %1064 = vmatpush1.bf16.xpose.msra.mxu0 0
      %1065 = vmatprep.subr.bf16.mxu0 0
      %1066 = vmatpush1.bf16.xpose.msra.mxu0 0
      %1067 = vmatprep.subr.bf16.mxu0 0
      %1068 = vmatpush1.bf16.xpose.msra.mxu0 0
      %1069 = vmatprep.subr.bf16.mxu0 0
      %1070 = vmatpush1.bf16.xpose.msra.mxu0 0
      %1071 = vmatprep.subr.bf16.mxu0 0
      %1072 = vmatpush1.bf16.xpose.msra.mxu0 0
      %1073 = vmatprep.subr.bf16.mxu0 0
      %1074 = vmatpush1.bf16.xpose.msra.mxu0 0
      %1075 = vmatprep.subr.bf16.mxu0 0
      %1076 = vmatpush1.bf16.xpose.msra.mxu0 0
      %1077 = vmatprep.subr.bf16.mxu0 0
      %1078 = vmatpush1.bf16.xpose.msra.mxu0 0
      %1079 = vmatprep.subr.bf16.mxu0 0
      %1080 = vmatpush1.bf16.xpose.msra.mxu0 0
      %1081 = vmatprep.subr.bf16.mxu0 0
      %1082 = vmatpush1.bf16.xpose.msra.mxu0 0
      %1083 = vmatprep.subr.bf16.mxu0 0
      %1084 = vmatpush1.bf16.xpose.msra.mxu0 0
      %1085 = vmatprep.subr.bf16.mxu0 0
      %1086 = vmatpush1.bf16.xpose.msra.mxu0 0
      %1087 = vmatprep.subr.bf16.mxu0 0
      %1088 = vmatpush1.bf16.xpose.msra.mxu0 0
      %1089 = vmatprep.mubr.bf16.mxu0 0
      %1090 = vmatmul.mubr.bf16.gmra.mrb[0].mxu0 %v1046
      %v1091 = vpop.f32.mrb[0].mxu0
      %v1092 = vadd.f32 0.0, %v1091
      %v1093 = vpop.f32.mrb[0].mxu0
      %v1094 = vpop.f32.mrb[0].mxu0
      %v1095 = vadd.f32 0.0, %v1094
      %v1096 = vpop.f32.mrb[0].mxu0
      %1097 = vmatprep.mubr.bf16.mxu0 0
      %1098 = vmatmul.mubr.bf16.gmra.mrb[0].mxu0 %v1049
      %v1099 = vpop.f32.mrb[0].mxu0
      %v1100 = vadd.f32 0.0, %v1099
      %v1101 = vpop.f32.mrb[0].mxu0
      %v1102 = vpop.f32.mrb[0].mxu0
      %v1103 = vpop.f32.mrb[0].mxu0
      %1104 = vdwg.mxu0
      %v1105 = vmul.f32 %v894, 0.35355338
      %v1106 = vmul.f32 %v897, 0.35355338
      %v1107 = vmul.f32 %v902, 0.35355338
      %v1108 = vmul.f32 %v960, 0.35355338
      %v1109 = vmul.f32 %v963, 0.35355338
      %v1110 = vmul.f32 %v968, 0.35355338
      %v1111 = vmul.f32 %v1026, 0.35355338
      %v1112 = vmul.f32 %v1029, 0.35355338
      %v1113 = vmul.f32 %v1034, 0.35355338
      %v1114 = vmul.f32 %v1092, 0.35355338
      %v1115 = vmul.f32 %v1095, 0.35355338
      %v1116 = vmul.f32 %v1100, 0.35355338
      %vm1117 = vcmask 138240
      %v1118 = vsel %vm1117, %v1105, -inf
      %1119 = vmax.xlane.f32.xlu0 %v1118
      %v1120 = vpop.xlane.xlu0 %1119
      %v1121 = vsel %vm1117, %v1106, -inf
      %1122 = vmax.xlane.f32.xlu0 %v1121
      %v1123 = vpop.xlane.xlu0 %1122
      %vm1124 = vcmask 131072
      %v1125 = vsel %vm1124, %v1107, -inf
      %1126 = vmax.xlane.f32.xlu0 %v1125
      %v1127 = vpop.xlane.xlu0 %1126
      %v1128 = vsel %vm1117, %v1108, -inf
      %1129 = vmax.xlane.f32.xlu0 %v1128
      %v1130 = vpop.xlane.xlu0 %1129
      %v1131 = vsel %vm1117, %v1109, -inf
      %1132 = vmax.xlane.f32.xlu0 %v1131
      %v1133 = vpop.xlane.xlu0 %1132
      %v1134 = vsel %vm1124, %v1110, -inf
      %1135 = vmax.xlane.f32.xlu0 %v1134
      %v1136 = vpop.xlane.xlu0 %1135
      %v1137 = vsel %vm1117, %v1111, -inf
      %1138 = vmax.xlane.f32.xlu0 %v1137
      %v1139 = vpop.xlane.xlu0 %1138
      %v1140 = vsel %vm1117, %v1112, -inf
      %1141 = vmax.xlane.f32.xlu0 %v1140
      %v1142 = vpop.xlane.xlu0 %1141
      %v1143 = vsel %vm1124, %v1113, -inf
      %1144 = vmax.xlane.f32.xlu0 %v1143
      %v1145 = vpop.xlane.xlu0 %1144
      %v1146 = vsel %vm1117, %v1114, -inf
      %1147 = vmax.xlane.f32.xlu0 %v1146
      %v1148 = vpop.xlane.xlu0 %1147
      %v1149 = vsel %vm1117, %v1115, -inf
      %1150 = vmax.xlane.f32.xlu0 %v1149
      %v1151 = vpop.xlane.xlu0 %1150
      %v1152 = vsel %vm1124, %v1116, -inf
      %1153 = vmax.xlane.f32.xlu0 %v1152
      %v1154 = vpop.xlane.xlu0 %1153
      %v1155 = vsub.f32 %v1105, %v1120
      %v1156 = vsub.f32 %v1106, %v1123
      %v1157 = vsub.f32 %v1107, %v1127
      %v1158 = vsub.f32 %v1108, %v1130
      %v1159 = vsub.f32 %v1109, %v1133
      %v1160 = vsub.f32 %v1110, %v1136
      %v1161 = vsub.f32 %v1111, %v1139
      %v1162 = vsub.f32 %v1112, %v1142
      %v1163 = vsub.f32 %v1113, %v1145
      %v1164 = vsub.f32 %v1114, %v1148
      %v1165 = vsub.f32 %v1115, %v1151
      %v1166 = vsub.f32 %v1116, %v1154
      %v1167 = vmul.f32 %v1155, 1.442695
      %v1168 = vpow.pop %v1167
      %v1169 = vmul.f32 %v1156, 1.442695
      %v1170 = vpow.pop %v1169
      %v1171 = vmul.f32 %v1157, 1.442695
      %v1172 = vpow.pop %v1171
      %v1173 = vmul.f32 %v1158, 1.442695
      %v1174 = vpow.pop %v1173
      %v1175 = vmul.f32 %v1159, 1.442695
      %v1176 = vpow.pop %v1175
      %v1177 = vmul.f32 %v1160, 1.442695
      %v1178 = vpow.pop %v1177
      %v1179 = vmul.f32 %v1161, 1.442695
      %v1180 = vpow.pop %v1179
      %v1181 = vmul.f32 %v1162, 1.442695
      %v1182 = vpow.pop %v1181
      %v1183 = vmul.f32 %v1163, 1.442695
      %v1184 = vpow.pop %v1183
      %v1185 = vmul.f32 %v1164, 1.442695
      %v1186 = vpow.pop %v1185
      %v1187 = vmul.f32 %v1165, 1.442695
      %v1188 = vpow.pop %v1187
      %v1189 = vmul.f32 %v1166, 1.442695
      %v1190 = vpow.pop %v1189
      %v1191 = vsel %vm1117, %v1168, 0.0
      %1192 = vadd.xlane.f32.xlu0 %v1191
      %v1193 = vpop.xlane.xlu0 %1192
      %v1194 = vsel %vm1117, %v1170, 0.0
      %1195 = vadd.xlane.f32.xlu0 %v1194
      %v1196 = vpop.xlane.xlu0 %1195
      %v1197 = vsel %vm1124, %v1172, 0.0
      %1198 = vadd.xlane.f32.xlu0 %v1197
      %v1199 = vpop.xlane.xlu0 %1198
      %v1200 = vsel %vm1117, %v1174, 0.0
      %1201 = vadd.xlane.f32.xlu0 %v1200
      %v1202 = vpop.xlane.xlu0 %1201
      %v1203 = vsel %vm1117, %v1176, 0.0
      %1204 = vadd.xlane.f32.xlu0 %v1203
      %v1205 = vpop.xlane.xlu0 %1204
      %v1206 = vsel %vm1124, %v1178, 0.0
      %1207 = vadd.xlane.f32.xlu0 %v1206
      %v1208 = vpop.xlane.xlu0 %1207
      %v1209 = vsel %vm1117, %v1180, 0.0
      %1210 = vadd.xlane.f32.xlu0 %v1209
      %v1211 = vpop.xlane.xlu0 %1210
      %v1212 = vsel %vm1117, %v1182, 0.0
      %1213 = vadd.xlane.f32.xlu0 %v1212
      %v1214 = vpop.xlane.xlu0 %1213
      %v1215 = vsel %vm1124, %v1184, 0.0
      %1216 = vadd.xlane.f32.xlu0 %v1215
      %v1217 = vpop.xlane.xlu0 %1216
      %v1218 = vsel %vm1117, %v1186, 0.0
      %1219 = vadd.xlane.f32.xlu0 %v1218
      %v1220 = vpop.xlane.xlu0 %1219
      %v1221 = vsel %vm1117, %v1188, 0.0
      %1222 = vadd.xlane.f32.xlu0 %v1221
      %v1223 = vpop.xlane.xlu0 %1222
      %v1224 = vsel %vm1124, %v1190, 0.0
      %1225 = vadd.xlane.f32.xlu0 %v1224
      %v1226 = vpop.xlane.xlu0 %1225
      %v1227 = vrcp.pop %v1193
      %v1228 = vrcp.pop %v1196
      %v1229 = vrcp.pop %v1199
      %v1230 = vrcp.pop %v1202
      %v1231 = vrcp.pop %v1205
      %v1232 = vrcp.pop %v1208
      %v1233 = vrcp.pop %v1211
      %v1234 = vrcp.pop %v1214
      %v1235 = vrcp.pop %v1217
      %v1236 = vrcp.pop %v1220
      %v1237 = vrcp.pop %v1223
      %v1238 = vrcp.pop %v1226
      %v1239 = vmul.f32 %v1168, %v1227
      %v1240 = vmul.f32 %v1170, %v1228
      %v1241 = vmul.f32 %v1172, %v1229
      %v1242 = vmul.f32 %v1174, %v1230
      %v1243 = vmul.f32 %v1176, %v1231
      %v1244 = vmul.f32 %v1178, %v1232
      %v1245 = vmul.f32 %v1180, %v1233
      %v1246 = vmul.f32 %v1182, %v1234
      %v1247 = vmul.f32 %v1184, %v1235
      %v1248 = vmul.f32 %v1186, %v1236
      %v1249 = vmul.f32 %v1188, %v1237
      %v1250 = vmul.f32 %v1190, %v1238
      %v1251 = vpack.c.bf16 %v1240, %v1239
      %v1252 = vpack.c.bf16 %v1241, %v1241
      %v1253 = vpack.c.bf16 %v1243, %v1242
      %v1254 = vpack.c.bf16 %v1244, %v1244
      %v1255 = vpack.c.bf16 %v1246, %v1245
      %v1256 = vpack.c.bf16 %v1247, %v1247
      %v1257 = vpack.c.bf16 %v1249, %v1248
      %v1258 = vpack.c.bf16 %v1250, %v1250
      %1259 = vrot.lane.b32.xlu0 %v832, 64
      %v1260 = vpop.permute.xlu0 %1259
      %1261 = vrot.lane.b32.xlu0 %v833, 64
      %v1262 = vpop.permute.xlu0 %1261
      %v1265 = vsel %vm1117, %v1251, 0
      %v1268 = vsel %vm1117, %v1252, 0
      %vm1270 = vcmask 1040384
      %v1271 = vsel 0, 4294967295, 65535
      %v1272 = vsel %vm1270, %v1271, 0
      %v1274 = vand.u32 %v1262, %v1272
      %1276 = vmatprep.subr.bf16.mxu0 0
      %1277 = vmatpush1.bf16.msra.mxu0 %v1260
      %1278 = vmatprep.subr.bf16.mxu0 0
      %1279 = vmatpush1.bf16.msra.mxu0 %v1274
      %1280 = vmatprep.subr.bf16.mxu0 0
      %1281 = vmatpush1.bf16.msra.mxu0 0
      %1282 = vmatprep.subr.bf16.mxu0 0
      %1283 = vmatpush1.bf16.msra.mxu0 0
      %1284 = vmatprep.subr.bf16.mxu0 0
      %1285 = vmatpush1.bf16.msra.mxu0 0
      %1286 = vmatprep.subr.bf16.mxu0 0
      %1287 = vmatpush1.bf16.msra.mxu0 0
      %1288 = vmatprep.subr.bf16.mxu0 0
      %1289 = vmatpush1.bf16.msra.mxu0 0
      %1290 = vmatprep.subr.bf16.mxu0 0
      %1291 = vmatpush1.bf16.msra.mxu0 0
      %1292 = vmatprep.subr.bf16.mxu0 0
      %1293 = vmatpush1.bf16.msra.mxu0 0
      %1294 = vmatprep.subr.bf16.mxu0 0
      %1295 = vmatpush1.bf16.msra.mxu0 0
      %1296 = vmatprep.subr.bf16.mxu0 0
      %1297 = vmatpush1.bf16.msra.mxu0 0
      %1298 = vmatprep.subr.bf16.mxu0 0
      %1299 = vmatpush1.bf16.msra.mxu0 0
      %1300 = vmatprep.subr.bf16.mxu0 0
      %1301 = vmatpush1.bf16.msra.mxu0 0
      %1302 = vmatprep.subr.bf16.mxu0 0
      %1303 = vmatpush1.bf16.msra.mxu0 0
      %1304 = vmatprep.subr.bf16.mxu0 0
      %1305 = vmatpush1.bf16.msra.mxu0 0
      %1306 = vmatprep.subr.bf16.mxu0 0
      %1307 = vmatpush1.bf16.msra.mxu0 0
      %1308 = vmatprep.mubr.bf16.mxu0 0
      %1309 = vmatmul.mubr.bf16.gmra.mrb[0].mxu0 %v1265
      %v1310 = vpop.f32.mrb[0].mxu0
      %v1311 = vadd.f32 0.0, %v1310
      %v1312 = vpop.f32.mrb[0].mxu0
      %v1313 = vpop.f32.mrb[0].mxu0
      %v1314 = vadd.f32 0.0, %v1313
      %v1315 = vpop.f32.mrb[0].mxu0
      %1316 = vmatprep.mubr.bf16.mxu0 0
      %1317 = vmatmul.mubr.bf16.gmra.mrb[0].mxu0 %v1268
      %v1318 = vpop.f32.mrb[0].mxu0
      %v1319 = vadd.f32 0.0, %v1318
      %v1320 = vpop.f32.mrb[0].mxu0
      %v1321 = vpop.f32.mrb[0].mxu0
      %v1322 = vpop.f32.mrb[0].mxu0
      %1323 = vdwg.mxu0
      %1324 = vrot.lane.b32.xlu0 %v834, 64
      %v1325 = vpop.permute.xlu0 %1324
      %1326 = vrot.lane.b32.xlu0 %v835, 64
      %v1327 = vpop.permute.xlu0 %1326
      %v1330 = vsel %vm1117, %v1253, 0
      %v1333 = vsel %vm1117, %v1254, 0
      %v1336 = vand.u32 %v1327, %v1272
      %1338 = vmatprep.subr.bf16.mxu0 0
      %1339 = vmatpush1.bf16.msra.mxu0 %v1325
      %1340 = vmatprep.subr.bf16.mxu0 0
      %1341 = vmatpush1.bf16.msra.mxu0 %v1336
      %1342 = vmatprep.subr.bf16.mxu0 0
      %1343 = vmatpush1.bf16.msra.mxu0 0
      %1344 = vmatprep.subr.bf16.mxu0 0
      %1345 = vmatpush1.bf16.msra.mxu0 0
      %1346 = vmatprep.subr.bf16.mxu0 0
      %1347 = vmatpush1.bf16.msra.mxu0 0
      %1348 = vmatprep.subr.bf16.mxu0 0
      %1349 = vmatpush1.bf16.msra.mxu0 0
      %1350 = vmatprep.subr.bf16.mxu0 0
      %1351 = vmatpush1.bf16.msra.mxu0 0
      %1352 = vmatprep.subr.bf16.mxu0 0
      %1353 = vmatpush1.bf16.msra.mxu0 0
      %1354 = vmatprep.subr.bf16.mxu0 0
      %1355 = vmatpush1.bf16.msra.mxu0 0
      %1356 = vmatprep.subr.bf16.mxu0 0
      %1357 = vmatpush1.bf16.msra.mxu0 0
      %1358 = vmatprep.subr.bf16.mxu0 0
      %1359 = vmatpush1.bf16.msra.mxu0 0
      %1360 = vmatprep.subr.bf16.mxu0 0
      %1361 = vmatpush1.bf16.msra.mxu0 0
      %1362 = vmatprep.subr.bf16.mxu0 0
      %1363 = vmatpush1.bf16.msra.mxu0 0
      %1364 = vmatprep.subr.bf16.mxu0 0
      %1365 = vmatpush1.bf16.msra.mxu0 0
      %1366 = vmatprep.subr.bf16.mxu0 0
      %1367 = vmatpush1.bf16.msra.mxu0 0
      %1368 = vmatprep.subr.bf16.mxu0 0
      %1369 = vmatpush1.bf16.msra.mxu0 0
      %1370 = vmatprep.mubr.bf16.mxu0 0
      %1371 = vmatmul.mubr.bf16.gmra.mrb[0].mxu0 %v1330
      %v1372 = vpop.f32.mrb[0].mxu0
      %v1373 = vadd.f32 0.0, %v1372
      %v1374 = vpop.f32.mrb[0].mxu0
      %v1375 = vpop.f32.mrb[0].mxu0
      %v1376 = vadd.f32 0.0, %v1375
      %v1377 = vpop.f32.mrb[0].mxu0
      %1378 = vmatprep.mubr.bf16.mxu0 0
      %1379 = vmatmul.mubr.bf16.gmra.mrb[0].mxu0 %v1333
      %v1380 = vpop.f32.mrb[0].mxu0
      %v1381 = vadd.f32 0.0, %v1380
      %v1382 = vpop.f32.mrb[0].mxu0
      %v1383 = vpop.f32.mrb[0].mxu0
      %v1384 = vpop.f32.mrb[0].mxu0
      %1385 = vdwg.mxu0
      %1386 = vrot.lane.b32.xlu0 %v836, 64
      %v1387 = vpop.permute.xlu0 %1386
      %1388 = vrot.lane.b32.xlu0 %v837, 64
      %v1389 = vpop.permute.xlu0 %1388
      %v1392 = vsel %vm1117, %v1255, 0
      %v1395 = vsel %vm1117, %v1256, 0
      %v1398 = vand.u32 %v1389, %v1272
      %1400 = vmatprep.subr.bf16.mxu0 0
      %1401 = vmatpush1.bf16.msra.mxu0 %v1387
      %1402 = vmatprep.subr.bf16.mxu0 0
      %1403 = vmatpush1.bf16.msra.mxu0 %v1398
      %1404 = vmatprep.subr.bf16.mxu0 0
      %1405 = vmatpush1.bf16.msra.mxu0 0
      %1406 = vmatprep.subr.bf16.mxu0 0
      %1407 = vmatpush1.bf16.msra.mxu0 0
      %1408 = vmatprep.subr.bf16.mxu0 0
      %1409 = vmatpush1.bf16.msra.mxu0 0
      %1410 = vmatprep.subr.bf16.mxu0 0
      %1411 = vmatpush1.bf16.msra.mxu0 0
      %1412 = vmatprep.subr.bf16.mxu0 0
      %1413 = vmatpush1.bf16.msra.mxu0 0
      %1414 = vmatprep.subr.bf16.mxu0 0
      %1415 = vmatpush1.bf16.msra.mxu0 0
      %1416 = vmatprep.subr.bf16.mxu0 0
      %1417 = vmatpush1.bf16.msra.mxu0 0
      %1418 = vmatprep.subr.bf16.mxu0 0
      %1419 = vmatpush1.bf16.msra.mxu0 0
      %1420 = vmatprep.subr.bf16.mxu0 0
      %1421 = vmatpush1.bf16.msra.mxu0 0
      %1422 = vmatprep.subr.bf16.mxu0 0
      %1423 = vmatpush1.bf16.msra.mxu0 0
      %1424 = vmatprep.subr.bf16.mxu0 0
      %1425 = vmatpush1.bf16.msra.mxu0 0
      %1426 = vmatprep.subr.bf16.mxu0 0
      %1427 = vmatpush1.bf16.msra.mxu0 0
      %1428 = vmatprep.subr.bf16.mxu0 0
      %1429 = vmatpush1.bf16.msra.mxu0 0
      %1430 = vmatprep.subr.bf16.mxu0 0
      %1431 = vmatpush1.bf16.msra.mxu0 0
      %1432 = vmatprep.mubr.bf16.mxu0 0
      %1433 = vmatmul.mubr.bf16.gmra.mrb[0].mxu0 %v1392
      %v1434 = vpop.f32.mrb[0].mxu0
      %v1435 = vadd.f32 0.0, %v1434
      %v1436 = vpop.f32.mrb[0].mxu0
      %v1437 = vpop.f32.mrb[0].mxu0
      %v1438 = vadd.f32 0.0, %v1437
      %v1439 = vpop.f32.mrb[0].mxu0
      %1440 = vmatprep.mubr.bf16.mxu0 0
      %1441 = vmatmul.mubr.bf16.gmra.mrb[0].mxu0 %v1395
      %v1442 = vpop.f32.mrb[0].mxu0
      %v1443 = vadd.f32 0.0, %v1442
      %v1444 = vpop.f32.mrb[0].mxu0
      %v1445 = vpop.f32.mrb[0].mxu0
      %v1446 = vpop.f32.mrb[0].mxu0
      %1447 = vdwg.mxu0
      %1448 = vrot.lane.b32.xlu0 %v838, 64
      %v1449 = vpop.permute.xlu0 %1448
      %1450 = vrot.lane.b32.xlu0 %v839, 64
      %v1451 = vpop.permute.xlu0 %1450
      %v1454 = vsel %vm1117, %v1257, 0
      %v1457 = vsel %vm1117, %v1258, 0
      %v1460 = vand.u32 %v1451, %v1272
      %1462 = vmatprep.subr.bf16.mxu0 0
      %1463 = vmatpush1.bf16.msra.mxu0 %v1449
      %1464 = vmatprep.subr.bf16.mxu0 0
      %1465 = vmatpush1.bf16.msra.mxu0 %v1460
      %1466 = vmatprep.subr.bf16.mxu0 0
      %1467 = vmatpush1.bf16.msra.mxu0 0
      %1468 = vmatprep.subr.bf16.mxu0 0
      %1469 = vmatpush1.bf16.msra.mxu0 0
      %1470 = vmatprep.subr.bf16.mxu0 0
      %1471 = vmatpush1.bf16.msra.mxu0 0
      %1472 = vmatprep.subr.bf16.mxu0 0
      %1473 = vmatpush1.bf16.msra.mxu0 0
      %1474 = vmatprep.subr.bf16.mxu0 0
      %1475 = vmatpush1.bf16.msra.mxu0 0
      %1476 = vmatprep.subr.bf16.mxu0 0
      %1477 = vmatpush1.bf16.msra.mxu0 0
      %1478 = vmatprep.subr.bf16.mxu0 0
      %1479 = vmatpush1.bf16.msra.mxu0 0
      %1480 = vmatprep.subr.bf16.mxu0 0
      %1481 = vmatpush1.bf16.msra.mxu0 0
      %1482 = vmatprep.subr.bf16.mxu0 0
      %1483 = vmatpush1.bf16.msra.mxu0 0
      %1484 = vmatprep.subr.bf16.mxu0 0
      %1485 = vmatpush1.bf16.msra.mxu0 0
      %1486 = vmatprep.subr.bf16.mxu0 0
      %1487 = vmatpush1.bf16.msra.mxu0 0
      %1488 = vmatprep.subr.bf16.mxu0 0
      %1489 = vmatpush1.bf16.msra.mxu0 0
      %1490 = vmatprep.subr.bf16.mxu0 0
      %1491 = vmatpush1.bf16.msra.mxu0 0
      %1492 = vmatprep.subr.bf16.mxu0 0
      %1493 = vmatpush1.bf16.msra.mxu0 0
      %1494 = vmatprep.mubr.bf16.mxu0 0
      %1495 = vmatmul.mubr.bf16.gmra.mrb[0].mxu0 %v1454
      %v1496 = vpop.f32.mrb[0].mxu0
      %v1497 = vadd.f32 0.0, %v1496
      %v1498 = vpop.f32.mrb[0].mxu0
      %v1499 = vpop.f32.mrb[0].mxu0
      %v1500 = vadd.f32 0.0, %v1499
      %v1501 = vpop.f32.mrb[0].mxu0
      %1502 = vmatprep.mubr.bf16.mxu0 0
      %1503 = vmatmul.mubr.bf16.gmra.mrb[0].mxu0 %v1457
      %v1504 = vpop.f32.mrb[0].mxu0
      %v1505 = vadd.f32 0.0, %v1504
      %v1506 = vpop.f32.mrb[0].mxu0
      %v1507 = vpop.f32.mrb[0].mxu0
      %v1508 = vpop.f32.mrb[0].mxu0
      %1509 = vdwg.mxu0
      %1513 = vrot.lane.b32.xlu0 %v1373, 8
      %v1514 = vpop.permute.xlu0 %1513
      %1515 = vrot.lane.b32.xlu0 %v1376, 8
      %v1516 = vpop.permute.xlu0 %1515
      %1517 = vrot.lane.b32.xlu0 %v1381, 8
      %v1518 = vpop.permute.xlu0 %1517
      %1525 = vrot.lane.b32.xlu0 %v1435, 16
      %v1526 = vpop.permute.xlu0 %1525
      %1527 = vrot.lane.b32.xlu0 %v1438, 16
      %v1528 = vpop.permute.xlu0 %1527
      %1529 = vrot.lane.b32.xlu0 %v1443, 16
      %v1530 = vpop.permute.xlu0 %1529
      %1537 = vrot.lane.b32.xlu0 %v1497, 24
      %v1538 = vpop.permute.xlu0 %1537
      %1539 = vrot.lane.b32.xlu0 %v1500, 24
      %v1540 = vpop.permute.xlu0 %1539
      %1541 = vrot.lane.b32.xlu0 %v1505, 24
      %v1542 = vpop.permute.xlu0 %1541
      %v1546 = vsel %vm846, %v1311, %v1514
      %v1547 = vsel %vm846, %v1314, %v1516
      %v1548 = vsel %vm846, %v1319, %v1518
      %vm1549 = vcmask 130048
      %v1550 = vsel %vm1549, %v1546, %v1526
      %v1551 = vsel %vm1549, %v1547, %v1528
      %v1552 = vsel %vm1549, %v1548, %v1530
      %vm1553 = vcmask 195584
      %v1554 = vsel %vm1553, %v1550, %v1538
      %v1555 = vsel %vm1553, %v1551, %v1540
      %v1556 = vsel %vm1553, %v1552, %v1542
      %v1557 = vpack.c.bf16 %v1555, %v1554
      %v1558 = vpack.c.bf16 %v1556, %v1556
      %v1559 = vld [vmem:[%s614] sm:$0xf]
      %v1560 = vld [vmem:[%s614 + $0x4] sm:$0xf]
      %v1561 = vld [vmem:[%s614 + $0x8] sm:$0xf]
      %v1562 = vld [vmem:[%s614 + $0xc] sm:$0xf]
      %v1563 = vld [vmem:[%s617] sm:$0x1]
      %v1565 = vlaneseq
      %v1566 = vshrl.u32 %v1565, 7
      %v1567 = vsub.s32 0, %v1566
      %v1568 = vrot.slane %v1563, %v1567
      %v1574 = vunpack.c.l.b16 %v1559
      %v1575 = vunpack.c.l.b16 %v1560
      %v1576 = vunpack.c.l.b16 %v1561
      %v1577 = vunpack.c.l.b16 %v1562
      %v1578 = vpack.c.b16 %v1575, %v1574
      %v1579 = vpack.c.b16 %v1577, %v1576
      %v1583 = vsel %vm663, %v1557, 0
      %v1586 = vsel %vm663, %v1558, 0
      %1588 = vmatprep.subr.bf16.mxu0 0
      %1589 = vmatpush1.bf16.msra.mxu0 %v1578
      %1590 = vmatprep.subr.bf16.mxu0 0
      %1591 = vmatpush1.bf16.msra.mxu0 %v1579
      %1592 = vmatprep.subr.bf16.mxu0 0
      %1593 = vmatpush1.bf16.msra.mxu0 0
      %1594 = vmatprep.subr.bf16.mxu0 0
      %1595 = vmatpush1.bf16.msra.mxu0 0
      %1596 = vmatprep.subr.bf16.mxu0 0
      %1597 = vmatpush1.bf16.msra.mxu0 0
      %1598 = vmatprep.subr.bf16.mxu0 0
      %1599 = vmatpush1.bf16.msra.mxu0 0
      %1600 = vmatprep.subr.bf16.mxu0 0
      %1601 = vmatpush1.bf16.msra.mxu0 0
      %1602 = vmatprep.subr.bf16.mxu0 0
      %1603 = vmatpush1.bf16.msra.mxu0 0
      %1604 = vmatprep.subr.bf16.mxu0 0
      %1605 = vmatpush1.bf16.msra.mxu0 0
      %1606 = vmatprep.subr.bf16.mxu0 0
      %1607 = vmatpush1.bf16.msra.mxu0 0
      %1608 = vmatprep.subr.bf16.mxu0 0
      %1609 = vmatpush1.bf16.msra.mxu0 0
      %1610 = vmatprep.subr.bf16.mxu0 0
      %1611 = vmatpush1.bf16.msra.mxu0 0
      %1612 = vmatprep.subr.bf16.mxu0 0
      %1613 = vmatpush1.bf16.msra.mxu0 0
      %1614 = vmatprep.subr.bf16.mxu0 0
      %1615 = vmatpush1.bf16.msra.mxu0 0
      %1616 = vmatprep.subr.bf16.mxu0 0
      %1617 = vmatpush1.bf16.msra.mxu0 0
      %1618 = vmatprep.subr.bf16.mxu0 0
      %1619 = vmatpush1.bf16.msra.mxu0 0
      %1620 = vmatprep.mubr.bf16.mxu0 0
      %1621 = vmatmul.mubr.bf16.gmra.mrb[0].mxu0 %v1583
      %v1622 = vpop.f32.mrb[0].mxu0
      %v1623 = vadd.f32 %v1568, %v1622
      %v1624 = vpop.f32.mrb[0].mxu0
      %v1625 = vpop.f32.mrb[0].mxu0
      %v1626 = vadd.f32 %v1568, %v1625
      %v1627 = vpop.f32.mrb[0].mxu0
      %1628 = vmatprep.mubr.bf16.mxu0 0
      %1629 = vmatmul.mubr.bf16.gmra.mrb[0].mxu0 %v1586
      %v1630 = vpop.f32.mrb[0].mxu0
      %v1631 = vadd.f32 %v1568, %v1630
      %v1632 = vpop.f32.mrb[0].mxu0
      %v1633 = vpop.f32.mrb[0].mxu0
      %v1634 = vpop.f32.mrb[0].mxu0
      %1635 = vdwg.mxu0
      %v1636 = vadd.f32 %v658, %v1623
      %v1637 = vadd.f32 %v659, %v1626
      %v1638 = vadd.f32 %v660, %v1631
      %v1639 = vld [vmem:[%s620] sm:$0x1]
      %v1640 = vld [vmem:[%s623] sm:$0x1]
      %v1641 = vsel %vm663, %v1636, 0.0
      %1642 = vadd.xlane.f32.xlu0 %v1641
      %v1643 = vpop.xlane.xlu0 %1642
      %v1644 = vsel %vm663, %v1637, 0.0
      %1645 = vadd.xlane.f32.xlu0 %v1644
      %v1646 = vpop.xlane.xlu0 %1645
      %v1647 = vsel %vm670, %v1638, 0.0
      %1648 = vadd.xlane.f32.xlu0 %v1647
      %v1649 = vpop.xlane.xlu0 %1648
      %v1650 = vmul.f32 %v1643, %v674
      %v1651 = vmul.f32 %v1646, %v674
      %v1652 = vmul.f32 %v1649, %v674
      %v1653 = vsub.f32 %v1636, %v1650
      %v1654 = vsub.f32 %v1637, %v1651
      %v1655 = vsub.f32 %v1638, %v1652
      %v1656 = vmul.f32 %v1653, %v1653
      %v1657 = vmul.f32 %v1654, %v1654
      %v1658 = vmul.f32 %v1655, %v1655
      %v1659 = vsel %vm663, %v1656, 0.0
      %1660 = vadd.xlane.f32.xlu0 %v1659
      %v1661 = vpop.xlane.xlu0 %1660
      %v1662 = vsel %vm663, %v1657, 0.0
      %1663 = vadd.xlane.f32.xlu0 %v1662
      %v1664 = vpop.xlane.xlu0 %1663
      %v1665 = vsel %vm670, %v1658, 0.0
      %1666 = vadd.xlane.f32.xlu0 %v1665
      %v1667 = vpop.xlane.xlu0 %1666
      %v1668 = vmul.f32 %v1661, %v674
      %v1669 = vmul.f32 %v1664, %v674
      %v1670 = vmul.f32 %v1667, %v674
      %v1671 = vadd.f32 %v1668, 1e-05
      %v1672 = vadd.f32 %v1669, 1e-05
      %v1673 = vadd.f32 %v1670, 1e-05
      %v1674 = vrsqrt.pop %v1671
      %v1675 = vrsqrt.pop %v1672
      %v1676 = vrsqrt.pop %v1673
      %v1677 = vmul.f32 %v1653, %v1674
      %v1678 = vmul.f32 %v1654, %v1675
      %v1679 = vmul.f32 %v1655, %v1676
      %v1681 = vlaneseq
      %v1682 = vshrl.u32 %v1681, 7
      %v1683 = vsub.s32 0, %v1682
      %v1684 = vrot.slane %v1639, %v1683
      %v1686 = vmul.f32 %v1677, %v1684
      %v1687 = vmul.f32 %v1678, %v1684
      %v1688 = vmul.f32 %v1679, %v1684
      %v1690 = vlaneseq
      %v1691 = vshrl.u32 %v1690, 7
      %v1692 = vsub.s32 0, %v1691
      %v1693 = vrot.slane %v1640, %v1692
      %v1695 = vadd.f32 %v1686, %v1693
      %v1696 = vadd.f32 %v1687, %v1693
      %v1697 = vadd.f32 %v1688, %v1693
      %v1698 = vpack.c.bf16 %v1696, %v1695
      %v1699 = vpack.c.bf16 %v1697, %v1697
      %v1700 = vld [vmem:[%s628] sm:$0xf]
      %v1701 = vld [vmem:[%s628 + $0x4] sm:$0xf]
      %v1702 = vld [vmem:[%s628 + $0x8] sm:$0xf]
      %v1703 = vld [vmem:[%s628 + $0xc] sm:$0xf]
      %v1704 = vld [vmem:[%s631] sm:$0x1]
      %v1706 = vlaneseq
      %v1707 = vshrl.u32 %v1706, 7
      %v1708 = vsub.s32 0, %v1707
      %v1709 = vrot.slane %v1704, %v1708
      %v1715 = vunpack.c.l.b16 %v1700
      %v1716 = vunpack.c.l.b16 %v1701
      %v1717 = vunpack.c.l.b16 %v1702
      %v1718 = vunpack.c.l.b16 %v1703
      %v1719 = vpack.c.b16 %v1716, %v1715
      %v1720 = vpack.c.b16 %v1718, %v1717
      %v1724 = vsel %vm663, %v1698, 0
      %v1727 = vsel %vm663, %v1699, 0
      %1729 = vmatprep.subr.bf16.mxu0 0
      %1730 = vmatpush1.bf16.msra.mxu0 %v1719
      %1731 = vmatprep.subr.bf16.mxu0 0
      %1732 = vmatpush1.bf16.msra.mxu0 %v1720
      %1733 = vmatprep.subr.bf16.mxu0 0
      %1734 = vmatpush1.bf16.msra.mxu0 0
      %1735 = vmatprep.subr.bf16.mxu0 0
      %1736 = vmatpush1.bf16.msra.mxu0 0
      %1737 = vmatprep.subr.bf16.mxu0 0
      %1738 = vmatpush1.bf16.msra.mxu0 0
      %1739 = vmatprep.subr.bf16.mxu0 0
      %1740 = vmatpush1.bf16.msra.mxu0 0
      %1741 = vmatprep.subr.bf16.mxu0 0
      %1742 = vmatpush1.bf16.msra.mxu0 0
      %1743 = vmatprep.subr.bf16.mxu0 0
      %1744 = vmatpush1.bf16.msra.mxu0 0
      %1745 = vmatprep.subr.bf16.mxu0 0
      %1746 = vmatpush1.bf16.msra.mxu0 0
      %1747 = vmatprep.subr.bf16.mxu0 0
      %1748 = vmatpush1.bf16.msra.mxu0 0
      %1749 = vmatprep.subr.bf16.mxu0 0
      %1750 = vmatpush1.bf16.msra.mxu0 0
      %1751 = vmatprep.subr.bf16.mxu0 0
      %1752 = vmatpush1.bf16.msra.mxu0 0
      %1753 = vmatprep.subr.bf16.mxu0 0
      %1754 = vmatpush1.bf16.msra.mxu0 0
      %1755 = vmatprep.subr.bf16.mxu0 0
      %1756 = vmatpush1.bf16.msra.mxu0 0
      %1757 = vmatprep.subr.bf16.mxu0 0
      %1758 = vmatpush1.bf16.msra.mxu0 0
      %1759 = vmatprep.subr.bf16.mxu0 0
      %1760 = vmatpush1.bf16.msra.mxu0 0
      %1761 = vmatprep.mubr.bf16.mxu0 0
      %1762 = vmatmul.mubr.bf16.gmra.mrb[0].mxu0 %v1724
      %v1763 = vpop.f32.mrb[0].mxu0
      %v1764 = vadd.f32 %v1709, %v1763
      %v1765 = vpop.f32.mrb[0].mxu0
      %v1766 = vpop.f32.mrb[0].mxu0
      %v1767 = vadd.f32 %v1709, %v1766
      %v1768 = vpop.f32.mrb[0].mxu0
      %1769 = vmatprep.mubr.bf16.mxu0 0
      %1770 = vmatmul.mubr.bf16.gmra.mrb[0].mxu0 %v1727
      %v1771 = vpop.f32.mrb[0].mxu0
      %v1772 = vadd.f32 %v1709, %v1771
      %v1773 = vpop.f32.mrb[0].mxu0
      %v1774 = vpop.f32.mrb[0].mxu0
      %v1775 = vpop.f32.mrb[0].mxu0
      %1776 = vdwg.mxu0
      %v1777 = vmul.f32 %v1764, 0.5
      %v1778 = vmul.f32 %v1767, 0.5
      %v1779 = vmul.f32 %v1772, 0.5
      %v1780 = vmul.f32 %v1764, 0.70710677
      %v1781 = vmul.f32 %v1767, 0.70710677
      %v1782 = vmul.f32 %v1772, 0.70710677
      %vm1783 = vcmp.ge.f32.partialorder %v1780, 0.0
      %vm1784 = vcmp.ge.f32.partialorder %v1781, 0.0
      %vm1785 = vcmp.ge.f32.partialorder %v1782, 0.0
      %v1786 = vsel %vm1783, 1.0, -1.0
      %v1787 = vsel %vm1784, 1.0, -1.0
      %v1788 = vsel %vm1785, 1.0, -1.0
      %v1789 = vand.u32 2147483647, %v1780
      %v1790 = vand.u32 2147483647, %v1781
      %v1791 = vand.u32 2147483647, %v1782
      %v1792 = vmul.f32 %v1789, 0.3275911
      %v1793 = vmul.f32 %v1790, 0.3275911
      %v1794 = vmul.f32 %v1791, 0.3275911
      %v1795 = vadd.f32 %v1792, 1.0
      %v1796 = vadd.f32 %v1793, 1.0
      %v1797 = vadd.f32 %v1794, 1.0
      %v1798 = vrcp.pop %v1795
      %v1799 = vmul.f32 1.0, %v1798
      %v1800 = vrcp.pop %v1796
      %v1801 = vmul.f32 1.0, %v1800
      %v1802 = vrcp.pop %v1797
      %v1803 = vmul.f32 1.0, %v1802
      %v1804 = vmul.f32 %v1799, 1.0614054
      %v1805 = vmul.f32 %v1801, 1.0614054
      %v1806 = vmul.f32 %v1803, 1.0614054
      %v1807 = vadd.f32 %v1804, -1.4531521
      %v1808 = vadd.f32 %v1805, -1.4531521
      %v1809 = vadd.f32 %v1806, -1.4531521
      %v1810 = vmul.f32 %v1807, %v1799
      %v1811 = vmul.f32 %v1808, %v1801
      %v1812 = vmul.f32 %v1809, %v1803
      %v1813 = vadd.f32 %v1810, 1.4214138
      %v1814 = vadd.f32 %v1811, 1.4214138
      %v1815 = vadd.f32 %v1812, 1.4214138
      %v1816 = vmul.f32 %v1813, %v1799
      %v1817 = vmul.f32 %v1814, %v1801
      %v1818 = vmul.f32 %v1815, %v1803
      %v1819 = vadd.f32 %v1816, -0.28449672
      %v1820 = vadd.f32 %v1817, -0.28449672
      %v1821 = vadd.f32 %v1818, -0.28449672
      %v1822 = vmul.f32 %v1819, %v1799
      %v1823 = vmul.f32 %v1820, %v1801
      %v1824 = vmul.f32 %v1821, %v1803
      %v1825 = vadd.f32 %v1822, 0.2548296
      %v1826 = vadd.f32 %v1823, 0.2548296
      %v1827 = vadd.f32 %v1824, 0.2548296
      %v1828 = vmul.f32 %v1825, %v1799
      %v1829 = vmul.f32 %v1826, %v1801
      %v1830 = vmul.f32 %v1827, %v1803
      %v1831 = vsub.f32 0.0, %v1789
      %v1832 = vsub.f32 0.0, %v1790
      %v1833 = vsub.f32 0.0, %v1791
      %v1834 = vmul.f32 %v1831, %v1789
      %v1835 = vmul.f32 %v1832, %v1790
      %v1836 = vmul.f32 %v1833, %v1791
      %v1837 = vmul.f32 %v1834, 1.442695
      %v1838 = vpow.pop %v1837
      %v1839 = vmul.f32 %v1835, 1.442695
      %v1840 = vpow.pop %v1839
      %v1841 = vmul.f32 %v1836, 1.442695
      %v1842 = vpow.pop %v1841
      %v1843 = vmul.f32 %v1828, %v1838
      %v1844 = vmul.f32 %v1829, %v1840
      %v1845 = vmul.f32 %v1830, %v1842
      %v1846 = vsub.f32 1.0, %v1843
      %v1847 = vsub.f32 1.0, %v1844
      %v1848 = vsub.f32 1.0, %v1845
      %v1849 = vmul.f32 %v1786, %v1846
      %v1850 = vmul.f32 %v1787, %v1847
      %v1851 = vmul.f32 %v1788, %v1848
      %v1852 = vadd.f32 %v1849, 1.0
      %v1853 = vadd.f32 %v1850, 1.0
      %v1854 = vadd.f32 %v1851, 1.0
      %v1855 = vmul.f32 %v1777, %v1852
      %v1856 = vmul.f32 %v1778, %v1853
      %v1857 = vmul.f32 %v1779, %v1854
      %v1858 = vpack.c.bf16 %v1856, %v1855
      %v1859 = vpack.c.bf16 %v1857, %v1857
      %v1860 = vld [vmem:[%s636] sm:$0xf]
      %v1861 = vld [vmem:[%s636 + $0x4] sm:$0xf]
      %v1862 = vld [vmem:[%s636 + $0x8] sm:$0xf]
      %v1863 = vld [vmem:[%s636 + $0xc] sm:$0xf]
      %v1864 = vld [vmem:[%s636 + $0x10] sm:$0xf]
      %v1865 = vld [vmem:[%s636 + $0x14] sm:$0xf]
      %v1866 = vld [vmem:[%s636 + $0x18] sm:$0xf]
      %v1867 = vld [vmem:[%s636 + $0x1c] sm:$0xf]
      %v1868 = vld [vmem:[%s636 + $0x20] sm:$0xf]
      %v1869 = vld [vmem:[%s636 + $0x24] sm:$0xf]
      %v1870 = vld [vmem:[%s636 + $0x28] sm:$0xf]
      %v1871 = vld [vmem:[%s636 + $0x2c] sm:$0xf]
      %v1872 = vld [vmem:[%s636 + $0x30] sm:$0xf]
      %v1873 = vld [vmem:[%s636 + $0x34] sm:$0xf]
      %v1874 = vld [vmem:[%s636 + $0x38] sm:$0xf]
      %v1875 = vld [vmem:[%s636 + $0x3c] sm:$0xf]
      %v1876 = vld [vmem:[%s639] sm:$0x1]
      %v1878 = vlaneseq
      %v1879 = vshrl.u32 %v1878, 7
      %v1880 = vsub.s32 0, %v1879
      %v1881 = vrot.slane %v1876, %v1880
      %v1899 = vunpack.c.l.b16 %v1860
      %v1900 = vunpack.c.l.b16 %v1861
      %v1901 = vunpack.c.l.b16 %v1862
      %v1902 = vunpack.c.l.b16 %v1863
      %v1903 = vunpack.c.l.b16 %v1864
      %v1904 = vunpack.c.l.b16 %v1865
      %v1905 = vunpack.c.l.b16 %v1866
      %v1906 = vunpack.c.l.b16 %v1867
      %v1907 = vunpack.c.l.b16 %v1868
      %v1908 = vunpack.c.l.b16 %v1869
      %v1909 = vunpack.c.l.b16 %v1870
      %v1910 = vunpack.c.l.b16 %v1871
      %v1911 = vunpack.c.l.b16 %v1872
      %v1912 = vunpack.c.l.b16 %v1873
      %v1913 = vunpack.c.l.b16 %v1874
      %v1914 = vunpack.c.l.b16 %v1875
      %v1915 = vpack.c.b16 %v1900, %v1899
      %v1916 = vpack.c.b16 %v1902, %v1901
      %v1917 = vpack.c.b16 %v1904, %v1903
      %v1918 = vpack.c.b16 %v1906, %v1905
      %v1919 = vpack.c.b16 %v1908, %v1907
      %v1920 = vpack.c.b16 %v1910, %v1909
      %v1921 = vpack.c.b16 %v1912, %v1911
      %v1922 = vpack.c.b16 %v1914, %v1913
      %1931 = vmatprep.subr.bf16.mxu0 0
      %1932 = vmatpush1.bf16.msra.mxu0 %v1915
      %1933 = vmatprep.subr.bf16.mxu0 0
      %1934 = vmatpush1.bf16.msra.mxu0 %v1916
      %1935 = vmatprep.subr.bf16.mxu0 0
      %1936 = vmatpush1.bf16.msra.mxu0 %v1917
      %1937 = vmatprep.subr.bf16.mxu0 0
      %1938 = vmatpush1.bf16.msra.mxu0 %v1918
      %1939 = vmatprep.subr.bf16.mxu0 0
      %1940 = vmatpush1.bf16.msra.mxu0 %v1919
      %1941 = vmatprep.subr.bf16.mxu0 0
      %1942 = vmatpush1.bf16.msra.mxu0 %v1920
      %1943 = vmatprep.subr.bf16.mxu0 0
      %1944 = vmatpush1.bf16.msra.mxu0 %v1921
      %1945 = vmatprep.subr.bf16.mxu0 0
      %1946 = vmatpush1.bf16.msra.mxu0 %v1922
      %1947 = vmatprep.subr.bf16.mxu0 0
      %1948 = vmatpush1.bf16.msra.mxu0 0
      %1949 = vmatprep.subr.bf16.mxu0 0
      %1950 = vmatpush1.bf16.msra.mxu0 0
      %1951 = vmatprep.subr.bf16.mxu0 0
      %1952 = vmatpush1.bf16.msra.mxu0 0
      %1953 = vmatprep.subr.bf16.mxu0 0
      %1954 = vmatpush1.bf16.msra.mxu0 0
      %1955 = vmatprep.subr.bf16.mxu0 0
      %1956 = vmatpush1.bf16.msra.mxu0 0
      %1957 = vmatprep.subr.bf16.mxu0 0
      %1958 = vmatpush1.bf16.msra.mxu0 0
      %1959 = vmatprep.subr.bf16.mxu0 0
      %1960 = vmatpush1.bf16.msra.mxu0 0
      %1961 = vmatprep.subr.bf16.mxu0 0
      %1962 = vmatpush1.bf16.msra.mxu0 0
      %1963 = vmatprep.mubr.bf16.mxu0 0
      %1964 = vmatmul.mubr.bf16.gmra.mrb[0].mxu0 %v1858
      %v1965 = vpop.f32.mrb[0].mxu0
      %v1966 = vadd.f32 %v1881, %v1965
      %v1967 = vpop.f32.mrb[0].mxu0
      %v1968 = vpop.f32.mrb[0].mxu0
      %v1969 = vadd.f32 %v1881, %v1968
      %v1970 = vpop.f32.mrb[0].mxu0
      %1971 = vmatprep.mubr.bf16.mxu0 0
      %1972 = vmatmul.mubr.bf16.gmra.mrb[0].mxu0 %v1859
      %v1973 = vpop.f32.mrb[0].mxu0
      %v1974 = vadd.f32 %v1881, %v1973
      %v1975 = vpop.f32.mrb[0].mxu0
      %v1976 = vpop.f32.mrb[0].mxu0
      %v1977 = vpop.f32.mrb[0].mxu0
      %1978 = vdwg.mxu0
      %v1979 = vadd.f32 %v1636, %v1966
      %v1980 = vadd.f32 %v1637, %v1969
      %v1981 = vadd.f32 %v1638, %v1974
      %1982 = vst.msk [vmem:[%s644] sm:$0xff] %vm663, %v1979
      %1983 = vst.msk [vmem:[%s644 + $0x8] sm:$0xff] %vm663, %v1980
      %1984 = vst.msk [vmem:[%s644 + $0x10] sm:$0x1] %vm670, %v1981
      %p1985 = scmp.lt.s32.totalorder %s28, 1
      %s1986 = scalar_select %p1985, %s28, 1
      %s1987 = smul.addr %s1986, 3
      %s1988 = smul.addr %s1987, 8
      %s1989 = scalar_lea.vmem %s13, %s1988
      // Predicated region
      $region77: #{vit_forward.4} parent=71 // pred_check
        %p1990 = pneg %p392
      $region78: #{vit_forward.4} parent=71 // pred_check_branch
        %1992 = sbr.rel (%p1990) target = $region80
      $region79: #{vit_forward.4} parent=71 // pred_region
        _
      $region80: #{vit_forward.4} parent=71 // pred_fallthru
        _
    $region72: #{vit_forward.4} parent=5 // pred_fallthru
      _
    %p1993 = scmp.le.s32.totalorder 2, %s19
    // Predicated region
    $region81: #{vit_forward.4} parent=5 // pred_check
      %p1994 = pneg %p1993
    $region82: #{vit_forward.4} parent=5 // pred_check_branch
      %1996 = sbr.rel (%p1994) target = $region84
    $region83: #{vit_forward.4} parent=5 // pred_region
      %s1997 = ssub.s32 %s19, 2
      // Predicated region
      $region85: #{vit_forward.4} parent=83 // pred_check
        %p1998 = pneg %p398
      $region86: #{vit_forward.4} parent=83 // pred_check_branch
        %2000 = sbr.rel (%p1998) target = $region88
      $region87: #{vit_forward.4} parent=83 // pred_region
        %p2001 = scmp.lt.s32.totalorder %s30, 1
        %s2002 = scalar_select %p2001, %s30, 1
        %s2003 = smul.addr %s2002, 3
        %s2004 = smul.addr %s2003, 8
        %s2005 = scalar_lea.vmem %s13, %s2004
      $region88: #{vit_forward.4} parent=83 // pred_fallthru
        _
    $region84: #{vit_forward.4} parent=5 // pred_fallthru
      _
  $region6: #{vit_forward.4} parent=0 // loop_footer
    %s23 = sadd.s32 1, %s19
  $region7: #{vit_forward.4} parent=0 // loop_footer_branch
    %18 = sbr.rel target = $region3
  $region8: #{vit_forward.4} parent=0 // loop_exit
    _

</llo_original>
